<compile_context>
chip_gen: v6e
topology: v6e:2x2x1
jax: 0.10.0
libtpu: 0.0.40
codegen_flags: <defaults>
</compile_context>

<pallas_src>
import numpy as np
import jax
import jax.numpy as jnp
from jax import lax
from jax.experimental import pallas as pl
from jax.experimental.pallas import tpu as pltpu


def _dkvmn_kernel(
    # per-batch inputs
    k_ref, v_ref, emat_ref,
    # shared parameters
    mk_ref, mv0_ref,
    w_e_ref, b_e_ref, w_a_ref, b_a_ref,
    w_f1_ref, w_f2_ref, b_f_ref,
    w_fu1_ref, w_fu2_ref, b_fu_ref,
    w_p1_ref, w_p2_ref, b_p_ref,
    # outputs
    p_ref, mv_ref, wt_out_ref,
    # scratch
    read_s,
):
    f32 = jnp.float32
    n, dim_s = k_ref.shape
    nt = (((1,), (1,)), ((), ()))  # contract the last dims of both operands

    k = k_ref[...]
    v = v_ref[...]
    mk = mk_ref[...]

    # --- correlation weights, computed once, directly in the transposed
    # (size_m, n) layout the recurrence consumes (size_m on sublanes, time on
    # lanes).  The (n, size_m) `w` returned to the caller is a wrapper-side
    # transpose of this same tensor, so output and recurrence share numerics.
    logits_t = lax.dot_general(mk, k, nt, preferred_element_type=f32)   # (size_m, n)
    logits_t = logits_t - jnp.max(logits_t, axis=0, keepdims=True)
    ew = jnp.exp(logits_t)
    w_t = ew / jnp.sum(ew, axis=0, keepdims=True)
    wt_out_ref[...] = w_t

    # --- erase / add vectors (kept as values; tiny)
    e = jax.nn.sigmoid(
        jnp.dot(v, w_e_ref[...], preferred_element_type=f32) + b_e_ref[...])
    a = jnp.tanh(
        jnp.dot(v, w_a_ref[...], preferred_element_type=f32) + b_a_ref[...])

    # --- value-memory recurrence, fully unrolled (n is a static Python int)
    mvt = mv0_ref[...]
    mv_ref[0] = mvt
    for t in range(n):
        wt_col = w_t[:, t:t + 1]                 # (size_m, 1), static lane slice
        et = e[t:t + 1, :]                       # (1, dim_s)
        at = a[t:t + 1, :]
        # read of the PREVIOUS state (matches Mv[:, :-1] in the reference)
        read_s[t:t + 1, :] = jnp.sum(wt_col * mvt, axis=0, keepdims=True)
        mvt = mvt * (1.0 - wt_col * et) + wt_col * at
        mv_ref[t + 1] = mvt

    # --- f = tanh(f_layer([read, k]))
    f = jnp.tanh(
        jnp.dot(read_s[...], w_f1_ref[...], preferred_element_type=f32)
        + jnp.dot(k, w_f2_ref[...], preferred_element_type=f32)
        + b_f_ref[...])                                                  # (n, dim_s)

    # --- f_l = relu(fusion_layer([v, em_at])).permute(0, 2, 1), computed
    # directly transposed (out-features on sublanes, sequence on lanes).
    fu_t = jax.nn.relu(
        lax.dot_general(w_fu1_ref[...], v, nt, preferred_element_type=f32)
        + lax.dot_general(w_fu2_ref[...], emat_ref[...], nt,
                          preferred_element_type=f32)
        + b_fu_ref[...])                                                 # (dim_s, n)

    # --- p = sigmoid(p_layer([dropout(f), f_l]))   (dropout == identity, eval)
    # fused head: elementwise multiply + lane reductions instead of N=1 matmuls
    p1 = jnp.sum(f * w_p1_ref[...], axis=-1, keepdims=True)             # (n, 1)
    p2 = jnp.sum(fu_t * w_p2_ref[...], axis=-1, keepdims=True)          # (n, 1)
    p_ref[...] = jax.nn.sigmoid(p1 + p2 + b_p_ref[...])


def back_dkvmn_forward(params, q, r, bert_last_hidden):
    B, n = q.shape
    num_q, dim_s = params["k_emb"].shape
    size_m = params["Mk"].shape[0]
    assert n == dim_s, "original module's concatenations require seq_len == dim_s"

    # embedding lookups (glue, plain JAX gathers)
    x = q + num_q * r
    k = jnp.take(params["k_emb"], q, axis=0).astype(jnp.float32)   # (B, n, dim_s)
    v = jnp.take(params["v_emb"], x, axis=0).astype(jnp.float32)   # (B, n, dim_s)

    # --- answer-text branch hoisted out of the kernel (batched XLA matmuls):
    # em_at = at2_emb_layer(at_emb_layer(bert_h).permute(0, 2, 1))
    em1 = bert_last_hidden.astype(jnp.float32) @ params["at_w"].T + params["at_b"]
    em_at = jnp.swapaxes(em1, 1, 2) @ params["at2_w"].T + params["at2_b"]  # (B, dim_s, dim_s)

    # orient the weights so every in-kernel contraction is a plain matmul
    W_e, b_e = params["e_w"].T, params["e_b"][None, :]
    W_a, b_a = params["a_w"].T, params["a_b"][None, :]
    W_f_t = params["f_w"].T                                          # (2*dim_s, dim_s)
    W_f1, W_f2, b_f = W_f_t[:dim_s], W_f_t[dim_s:], params["f_b"][None, :]
    W_fu1 = params["fu_w"][:, :dim_s]                                # torch-oriented (out, in)
    W_fu2 = params["fu_w"][:, dim_s:]
    b_fu = params["fu_b"][:, None]                                   # (dim_s, 1)
    W_p1 = params["p_w"][:, :dim_s]                                  # (1, dim_s)
    W_p2 = params["p_w"][:, dim_s:]                                  # (1, dim_s) == (1, n)
    b_p = params["p_b"][None, :]                                     # (1, 1)

    def batched(shape):
        nd = len(shape)
        return pl.BlockSpec((None,) + tuple(shape),
                            lambda b, _nd=nd: (b,) + (0,) * _nd)

    def whole(arr):
        nd = arr.ndim
        return pl.BlockSpec(arr.shape, lambda b, _nd=nd: (0,) * _nd)

    operands = [k, v, em_at, params["Mk"], params["Mv0"],
                W_e, b_e, W_a, b_a,
                W_f1, W_f2, b_f,
                W_fu1, W_fu2, b_fu,
                W_p1, W_p2, b_p]
    in_specs = [batched((n, dim_s)), batched((n, dim_s)), batched((dim_s, dim_s))] \
        + [whole(a) for a in operands[3:]]

    out_shape = (
        jax.ShapeDtypeStruct((B, n, 1), jnp.float32),
        jax.ShapeDtypeStruct((B, n + 1, size_m, dim_s), jnp.float32),
        jax.ShapeDtypeStruct((B, size_m, n), jnp.float32),
    )
    out_specs = [
        pl.BlockSpec((None, n, 1), lambda b: (b, 0, 0)),
        pl.BlockSpec((None, n + 1, size_m, dim_s), lambda b: (b, 0, 0, 0)),
        pl.BlockSpec((None, size_m, n), lambda b: (b, 0, 0)),
    ]

    p, Mv, w_t = pl.pallas_call(
        _dkvmn_kernel,
        out_shape=out_shape,
        grid_spec=pltpu.PrefetchScalarGridSpec(
            num_scalar_prefetch=0,
            grid=(B,),
            in_specs=in_specs,
            out_specs=out_specs,
            scratch_shapes=[pltpu.VMEM((n, dim_s), jnp.float32)],
        ),
        compiler_params=pltpu.CompilerParams(
            dimension_semantics=("parallel",)),
    )(*operands)
    w = jnp.swapaxes(w_t, 1, 2)                                       # (B, n, size_m)
    return p[..., 0], Mv, w


def reference_forward(params, q, r, bert_h):
    """Pure-JAX transliteration of the PyTorch forward (eval-mode dropout)."""
    num_q, dim_s = params["k_emb"].shape
    size_m = params["Mk"].shape[0]
    B, n = q.shape
    x = q + num_q * r
    em1 = bert_h @ params["at_w"].T + params["at_b"]
    em_at = jnp.swapaxes(em1, 1, 2) @ params["at2_w"].T + params["at2_b"]
    k = params["k_emb"][q]
    v = params["v_emb"][x]
    w = jax.nn.softmax(k @ params["Mk"].T, axis=-1)
    e = jax.nn.sigmoid(v @ params["e_w"].T + params["e_b"])
    a = jnp.tanh(v @ params["a_w"].T + params["a_b"])
    Mv0 = jnp.broadcast_to(params["Mv0"], (B, size_m, dim_s))

    def step(mvt, inp):
        wt, et, at = inp
        new = mvt * (1 - wt[:, :, None] * et[:, None, :]) + wt[:, :, None] * at[:, None, :]
        return new, new

    _, mv_steps = lax.scan(
        step, Mv0,
        (jnp.swapaxes(w, 0, 1), jnp.swapaxes(e, 0, 1), jnp.swapaxes(a, 0, 1)))
    Mv = jnp.concatenate([Mv0[None], mv_steps], axis=0)
    Mv = jnp.moveaxis(Mv, 0, 1)                                       # (B, n+1, size_m, dim_s)
    read = jnp.sum(w[..., None] * Mv[:, :-1], axis=-2)
    f = jnp.tanh(jnp.concatenate([read, k], -1) @ params["f_w"].T + params["f_b"])
    f_l = jax.nn.relu(jnp.swapaxes(
        jnp.concatenate([v, em_at], -1) @ params["fu_w"].T + params["fu_b"], 1, 2))
    p = jax.nn.sigmoid(jnp.concatenate([f, f_l], -1) @ params["p_w"].T + params["p_b"])
    return p[..., 0], Mv, w


def init_params(key, num_q, dim_s, size_m, bert_hidden=768, bert_len=512):
    ks = jax.random.split(key, 18)

    def linear(kw, kb, out_f, in_f):
        bound = 1.0 / np.sqrt(in_f)
        wgt = jax.random.uniform(kw, (out_f, in_f), jnp.float32, -bound, bound)
        b = jax.random.uniform(kb, (out_f,), jnp.float32, -bound, bound)
        return wgt, b

    p = {}
    p["k_emb"] = jax.random.normal(ks[0], (num_q, dim_s), jnp.float32)
    p["v_emb"] = jax.random.normal(ks[1], (2 * num_q, dim_s), jnp.float32)
    p["Mk"] = jax.random.normal(ks[2], (size_m, dim_s), jnp.float32) * np.sqrt(2.0 / dim_s)
    p["Mv0"] = jax.random.normal(ks[3], (size_m, dim_s), jnp.float32) * np.sqrt(2.0 / dim_s)
    p["at_w"], p["at_b"] = linear(ks[4], ks[5], dim_s, bert_hidden)
    p["at2_w"], p["at2_b"] = linear(ks[6], ks[7], dim_s, bert_len)
    p["e_w"], p["e_b"] = linear(ks[8], ks[9], dim_s, dim_s)
    p["a_w"], p["a_b"] = linear(ks[10], ks[11], dim_s, dim_s)
    p["f_w"], p["f_b"] = linear(ks[12], ks[13], dim_s, 2 * dim_s)
    p["fu_w"], p["fu_b"] = linear(ks[14], ks[15], dim_s, 2 * dim_s)
    p["p_w"], p["p_b"] = linear(ks[16], ks[17], 1, 2 * dim_s)
    return p


if __name__ == "__main__":
    num_q, dim_s, size_m = 50, 32, 16
    B, n = 2, dim_s           # the module's concatenations force seq_len == dim_s
    bert_len, bert_hidden = 512, 768

    key = jax.random.PRNGKey(0)
    kp, kq, kr, kb = jax.random.split(key, 4)
    params = init_params(kp, num_q, dim_s, size_m, bert_hidden, bert_len)
    q = jax.random.randint(kq, (B, n), 0, num_q, dtype=jnp.int32)
    r = jax.random.randint(kr, (B, n), 0, 2, dtype=jnp.int32)
    bert_h = jax.random.normal(kb, (B, bert_len, bert_hidden), jnp.float32)

    p, Mv, w = back_dkvmn_forward(params, q, r, bert_h)
    jax.block_until_ready((p, Mv, w))

    p_ref, Mv_ref, w_ref = reference_forward(params, q, r, bert_h)
    np.testing.assert_allclose(np.asarray(p), np.asarray(p_ref), rtol=2e-2, atol=2e-2)
    np.testing.assert_allclose(np.asarray(w), np.asarray(w_ref), rtol=2e-2, atol=2e-2)
    np.testing.assert_allclose(np.asarray(Mv), np.asarray(Mv_ref), rtol=2e-2, atol=2e-2)

    print("KERNEL_OK")
</pallas_src>

<mosaic_0001>
module attributes {stable_mosaic.version = 11 : i64} {
  func.func @_dkvmn_kernel(%arg0: i32, %arg1: memref<1x32x32xf32, #tpu.memory_space<vmem>>, %arg2: memref<1x32x32xf32, #tpu.memory_space<vmem>>, %arg3: memref<1x32x32xf32, #tpu.memory_space<vmem>>, %arg4: memref<16x32xf32, #tpu.memory_space<vmem>>, %arg5: memref<16x32xf32, #tpu.memory_space<vmem>>, %arg6: memref<32x32xf32, #tpu.memory_space<vmem>>, %arg7: memref<1x32xf32, #tpu.memory_space<vmem>>, %arg8: memref<32x32xf32, #tpu.memory_space<vmem>>, %arg9: memref<1x32xf32, #tpu.memory_space<vmem>>, %arg10: memref<32x32xf32, #tpu.memory_space<vmem>>, %arg11: memref<32x32xf32, #tpu.memory_space<vmem>>, %arg12: memref<1x32xf32, #tpu.memory_space<vmem>>, %arg13: memref<32x32xf32, #tpu.memory_space<vmem>>, %arg14: memref<32x32xf32, #tpu.memory_space<vmem>>, %arg15: memref<32x1xf32, #tpu.memory_space<vmem>>, %arg16: memref<1x32xf32, #tpu.memory_space<vmem>>, %arg17: memref<1x32xf32, #tpu.memory_space<vmem>>, %arg18: memref<1x1xf32, #tpu.memory_space<vmem>>, %arg19: memref<1x32x1xf32, #tpu.memory_space<vmem>>, %arg20: memref<1x33x16x32xf32, #tpu.memory_space<vmem>>, %arg21: memref<1x16x32xf32, #tpu.memory_space<vmem>>, %arg22: memref<32x32xf32, #tpu.memory_space<vmem>>) attributes {dimension_semantics = [#tpu.dimension_semantics<parallel>], iteration_bounds = array<i64: 2>, scalar_prefetch = 0 : i64, scratch_operands = 1 : i64, tpu.core_type = #tpu.core_type<tc>, window_params = [{transform_indices = @transform_0, window_bounds = array<i64: 1, 32, 32>}, {transform_indices = @transform_1, window_bounds = array<i64: 1, 32, 32>}, {transform_indices = @transform_2, window_bounds = array<i64: 1, 32, 32>}, {pipeline_mode = #tpu.pipeline_mode<synchronous>, transform_indices = @transform_3, window_bounds = array<i64: 16, 32>}, {pipeline_mode = #tpu.pipeline_mode<synchronous>, transform_indices = @transform_4, window_bounds = array<i64: 16, 32>}, {pipeline_mode = #tpu.pipeline_mode<synchronous>, transform_indices = @transform_5, window_bounds = array<i64: 32, 32>}, {pipeline_mode = #tpu.pipeline_mode<synchronous>, transform_indices = @transform_6, window_bounds = array<i64: 1, 32>}, {pipeline_mode = #tpu.pipeline_mode<synchronous>, transform_indices = @transform_7, window_bounds = array<i64: 32, 32>}, {pipeline_mode = #tpu.pipeline_mode<synchronous>, transform_indices = @transform_8, window_bounds = array<i64: 1, 32>}, {pipeline_mode = #tpu.pipeline_mode<synchronous>, transform_indices = @transform_9, window_bounds = array<i64: 32, 32>}, {pipeline_mode = #tpu.pipeline_mode<synchronous>, transform_indices = @transform_10, window_bounds = array<i64: 32, 32>}, {pipeline_mode = #tpu.pipeline_mode<synchronous>, transform_indices = @transform_11, window_bounds = array<i64: 1, 32>}, {pipeline_mode = #tpu.pipeline_mode<synchronous>, transform_indices = @transform_12, window_bounds = array<i64: 32, 32>}, {pipeline_mode = #tpu.pipeline_mode<synchronous>, transform_indices = @transform_13, window_bounds = array<i64: 32, 32>}, {pipeline_mode = #tpu.pipeline_mode<synchronous>, transform_indices = @transform_14, window_bounds = array<i64: 32, 1>}, {pipeline_mode = #tpu.pipeline_mode<synchronous>, transform_indices = @transform_15, window_bounds = array<i64: 1, 32>}, {pipeline_mode = #tpu.pipeline_mode<synchronous>, transform_indices = @transform_16, window_bounds = array<i64: 1, 32>}, {pipeline_mode = #tpu.pipeline_mode<synchronous>, transform_indices = @transform_17, window_bounds = array<i64: 1, 1>}, {transform_indices = @transform_18, window_bounds = array<i64: 1, 32, 1>}, {transform_indices = @transform_19, window_bounds = array<i64: 1, 33, 16, 32>}, {transform_indices = @transform_20, window_bounds = array<i64: 1, 16, 32>}]} {
    %c0 = arith.constant 0 : index
    %c0_0 = arith.constant 0 : index
    %c0_1 = arith.constant 0 : index
    %0 = vector.load %arg1[%c0, %c0_0, %c0_1] : memref<1x32x32xf32, #tpu.memory_space<vmem>>, vector<1x32x32xf32>
    %1 = vector.shape_cast %0 : vector<1x32x32xf32> to vector<32x32xf32>
    %c0_2 = arith.constant 0 : index
    %c0_3 = arith.constant 0 : index
    %c0_4 = arith.constant 0 : index
    %2 = vector.load %arg2[%c0_2, %c0_3, %c0_4] : memref<1x32x32xf32, #tpu.memory_space<vmem>>, vector<1x32x32xf32>
    %3 = vector.shape_cast %2 : vector<1x32x32xf32> to vector<32x32xf32>
    %c0_5 = arith.constant 0 : index
    %c0_6 = arith.constant 0 : index
    %4 = vector.load %arg4[%c0_5, %c0_6] : memref<16x32xf32, #tpu.memory_space<vmem>>, vector<16x32xf32>
    %cst = arith.constant dense<0.000000e+00> : vector<16x32xf32>
    %5 = tpu.matmul %4, %1, %cst {dimension_numbers = #tpu.dot_dimension_numbers<[1], [1], [0], [0], [0, 0, 1, 0], [], []>} : vector<16x32xf32>, vector<32x32xf32>, vector<16x32xf32> -> vector<16x32xf32>
    %cst_7 = arith.constant dense<0xFF800000> : vector<32xf32>
    %6 = vector.multi_reduction <maximumf>, %5, %cst_7 [0] : vector<16x32xf32> to vector<32xf32>
    %7 = vector.shape_cast %6 : vector<32xf32> to vector<1x32xf32>
    %8 = vector.broadcast %7 : vector<1x32xf32> to vector<16x32xf32>
    %9 = arith.subf %5, %8 : vector<16x32xf32>
    %10 = math.exp %9 : vector<16x32xf32>
    %cst_8 = arith.constant dense<0.000000e+00> : vector<32xf32>
    %11 = vector.multi_reduction <add>, %10, %cst_8 [0] : vector<16x32xf32> to vector<32xf32>
    %12 = vector.shape_cast %11 : vector<32xf32> to vector<1x32xf32>
    %13 = vector.broadcast %12 : vector<1x32xf32> to vector<16x32xf32>
    %14 = arith.divf %10, %13 : vector<16x32xf32>
    %c0_9 = arith.constant 0 : index
    %c0_10 = arith.constant 0 : index
    %c0_11 = arith.constant 0 : index
    %15 = vector.load %arg21[%c0_9, %c0_10, %c0_11] : memref<1x16x32xf32, #tpu.memory_space<vmem>>, vector<1x16x32xf32>
    %16 = vector.shape_cast %15 : vector<1x16x32xf32> to vector<16x32xf32>
    %17 = vector.shape_cast %14 : vector<16x32xf32> to vector<1x16x32xf32>
    tpu.vector_store %arg21[%c0_9, %c0_10, %c0_11], %17 {strides = array<i32>} : memref<1x16x32xf32, #tpu.memory_space<vmem>>, vector<1x16x32xf32>,
    %c0_12 = arith.constant 0 : index
    %c0_13 = arith.constant 0 : index
    %18 = vector.load %arg6[%c0_12, %c0_13] : memref<32x32xf32, #tpu.memory_space<vmem>>, vector<32x32xf32>
    %cst_14 = arith.constant dense<0.000000e+00> : vector<32x32xf32>
    %19 = tpu.matmul %3, %18, %cst_14 {dimension_numbers = #tpu.dot_dimension_numbers<[1], [0], [0], [1], [0, 0, 1, 1], [], []>} : vector<32x32xf32>, vector<32x32xf32>, vector<32x32xf32> -> vector<32x32xf32>
    %c0_15 = arith.constant 0 : index
    %c0_16 = arith.constant 0 : index
    %20 = vector.load %arg7[%c0_15, %c0_16] : memref<1x32xf32, #tpu.memory_space<vmem>>, vector<1x32xf32>
    %21 = vector.broadcast %20 : vector<1x32xf32> to vector<32x32xf32>
    %22 = arith.addf %19, %21 : vector<32x32xf32>
    %23 = arith.negf %22 : vector<32x32xf32>
    %24 = math.exp %23 : vector<32x32xf32>
    %cst_17 = arith.constant 1.000000e+00 : f32
    %25 = vector.broadcast %cst_17 : f32 to vector<32x32xf32>
    %26 = arith.addf %25, %24 : vector<32x32xf32>
    %27 = arith.divf %25, %26 : vector<32x32xf32>
    %c0_18 = arith.constant 0 : index
    %c0_19 = arith.constant 0 : index
    %28 = vector.load %arg8[%c0_18, %c0_19] : memref<32x32xf32, #tpu.memory_space<vmem>>, vector<32x32xf32>
    %cst_20 = arith.constant dense<0.000000e+00> : vector<32x32xf32>
    %29 = tpu.matmul %3, %28, %cst_20 {dimension_numbers = #tpu.dot_dimension_numbers<[1], [0], [0], [1], [0, 0, 1, 1], [], []>} : vector<32x32xf32>, vector<32x32xf32>, vector<32x32xf32> -> vector<32x32xf32>
    %c0_21 = arith.constant 0 : index
    %c0_22 = arith.constant 0 : index
    %30 = vector.load %arg9[%c0_21, %c0_22] : memref<1x32xf32, #tpu.memory_space<vmem>>, vector<1x32xf32>
    %31 = vector.broadcast %30 : vector<1x32xf32> to vector<32x32xf32>
    %32 = arith.addf %29, %31 : vector<32x32xf32>
    %33 = math.tanh %32 : vector<32x32xf32>
    %c0_23 = arith.constant 0 : index
    %c0_24 = arith.constant 0 : index
    %34 = vector.load %arg5[%c0_23, %c0_24] : memref<16x32xf32, #tpu.memory_space<vmem>>, vector<16x32xf32>
    %c0_25 = arith.constant 0 : index
    %c0_26 = arith.constant 0 : index
    %c0_27 = arith.constant 0 : index
    %c0_28 = arith.constant 0 : index
    %35 = vector.load %arg20[%c0_25, %c0_26, %c0_27, %c0_28] : memref<1x33x16x32xf32, #tpu.memory_space<vmem>>, vector<1x1x16x32xf32>
    %36 = vector.shape_cast %35 : vector<1x1x16x32xf32> to vector<16x32xf32>
    %37 = vector.shape_cast %34 : vector<16x32xf32> to vector<1x1x16x32xf32>
    tpu.vector_store %arg20[%c0_25, %c0_26, %c0_27, %c0_28], %37 {strides = array<i32>} : memref<1x33x16x32xf32, #tpu.memory_space<vmem>>, vector<1x1x16x32xf32>,
    %38 = vector.extract_strided_slice %14 {offsets = [0, 0], sizes = [16, 1], strides = [1, 1]} : vector<16x32xf32> to vector<16x1xf32>
    %39 = vector.extract_strided_slice %27 {offsets = [0, 0], sizes = [1, 32], strides = [1, 1]} : vector<32x32xf32> to vector<1x32xf32>
    %40 = vector.extract_strided_slice %33 {offsets = [0, 0], sizes = [1, 32], strides = [1, 1]} : vector<32x32xf32> to vector<1x32xf32>
    %41 = vector.broadcast %38 : vector<16x1xf32> to vector<16x32xf32>
    %42 = arith.mulf %41, %34 : vector<16x32xf32>
    %cst_29 = arith.constant dense<0.000000e+00> : vector<32xf32>
    %43 = vector.multi_reduction <add>, %42, %cst_29 [0] : vector<16x32xf32> to vector<32xf32>
    %44 = vector.shape_cast %43 : vector<32xf32> to vector<1x32xf32>
    %c0_30 = arith.constant 0 : index
    %c0_31 = arith.constant 0 : index
    %45 = vector.load %arg22[%c0_30, %c0_31] : memref<32x32xf32, #tpu.memory_space<vmem>>, vector<1x32xf32>
    tpu.vector_store %arg22[%c0_30, %c0_31], %44 {strides = array<i32>} : memref<32x32xf32, #tpu.memory_space<vmem>>, vector<1x32xf32>,
    %46 = vector.broadcast %38 : vector<16x1xf32> to vector<16x32xf32>
    %47 = vector.broadcast %39 : vector<1x32xf32> to vector<16x32xf32>
    %48 = arith.mulf %46, %47 : vector<16x32xf32>
    %cst_32 = arith.constant 1.000000e+00 : f32
    %49 = vector.broadcast %cst_32 : f32 to vector<16x32xf32>
    %50 = arith.subf %49, %48 : vector<16x32xf32>
    %51 = arith.mulf %34, %50 : vector<16x32xf32>
    %52 = vector.broadcast %38 : vector<16x1xf32> to vector<16x32xf32>
    %53 = vector.broadcast %40 : vector<1x32xf32> to vector<16x32xf32>
    %54 = arith.mulf %52, %53 : vector<16x32xf32>
    %55 = arith.addf %51, %54 : vector<16x32xf32>
    %c0_33 = arith.constant 0 : index
    %c1 = arith.constant 1 : index
    %c0_34 = arith.constant 0 : index
    %c0_35 = arith.constant 0 : index
    %56 = vector.load %arg20[%c0_33, %c1, %c0_34, %c0_35] : memref<1x33x16x32xf32, #tpu.memory_space<vmem>>, vector<1x1x16x32xf32>
    %57 = vector.shape_cast %56 : vector<1x1x16x32xf32> to vector<16x32xf32>
    %58 = vector.shape_cast %55 : vector<16x32xf32> to vector<1x1x16x32xf32>
    tpu.vector_store %arg20[%c0_33, %c1, %c0_34, %c0_35], %58 {strides = array<i32>} : memref<1x33x16x32xf32, #tpu.memory_space<vmem>>, vector<1x1x16x32xf32>,
    %59 = vector.extract_strided_slice %14 {offsets = [0, 1], sizes = [16, 1], strides = [1, 1]} : vector<16x32xf32> to vector<16x1xf32>
    %60 = vector.extract_strided_slice %27 {offsets = [1, 0], sizes = [1, 32], strides = [1, 1]} : vector<32x32xf32> to vector<1x32xf32>
    %61 = vector.extract_strided_slice %33 {offsets = [1, 0], sizes = [1, 32], strides = [1, 1]} : vector<32x32xf32> to vector<1x32xf32>
    %62 = vector.broadcast %59 : vector<16x1xf32> to vector<16x32xf32>
    %63 = arith.mulf %62, %55 : vector<16x32xf32>
    %cst_36 = arith.constant dense<0.000000e+00> : vector<32xf32>
    %64 = vector.multi_reduction <add>, %63, %cst_36 [0] : vector<16x32xf32> to vector<32xf32>
    %65 = vector.shape_cast %64 : vector<32xf32> to vector<1x32xf32>
    %c1_37 = arith.constant 1 : index
    %c0_38 = arith.constant 0 : index
    %66 = vector.load %arg22[%c1_37, %c0_38] : memref<32x32xf32, #tpu.memory_space<vmem>>, vector<1x32xf32>
    tpu.vector_store %arg22[%c1_37, %c0_38], %65 {strides = array<i32>} : memref<32x32xf32, #tpu.memory_space<vmem>>, vector<1x32xf32>,
    %67 = vector.broadcast %59 : vector<16x1xf32> to vector<16x32xf32>
    %68 = vector.broadcast %60 : vector<1x32xf32> to vector<16x32xf32>
    %69 = arith.mulf %67, %68 : vector<16x32xf32>
    %cst_39 = arith.constant 1.000000e+00 : f32
    %70 = vector.broadcast %cst_39 : f32 to vector<16x32xf32>
    %71 = arith.subf %70, %69 : vector<16x32xf32>
    %72 = arith.mulf %55, %71 : vector<16x32xf32>
    %73 = vector.broadcast %59 : vector<16x1xf32> to vector<16x32xf32>
    %74 = vector.broadcast %61 : vector<1x32xf32> to vector<16x32xf32>
    %75 = arith.mulf %73, %74 : vector<16x32xf32>
    %76 = arith.addf %72, %75 : vector<16x32xf32>
    %c0_40 = arith.constant 0 : index
    %c2 = arith.constant 2 : index
    %c0_41 = arith.constant 0 : index
    %c0_42 = arith.constant 0 : index
    %77 = vector.load %arg20[%c0_40, %c2, %c0_41, %c0_42] : memref<1x33x16x32xf32, #tpu.memory_space<vmem>>, vector<1x1x16x32xf32>
    %78 = vector.shape_cast %77 : vector<1x1x16x32xf32> to vector<16x32xf32>
    %79 = vector.shape_cast %76 : vector<16x32xf32> to vector<1x1x16x32xf32>
    tpu.vector_store %arg20[%c0_40, %c2, %c0_41, %c0_42], %79 {strides = array<i32>} : memref<1x33x16x32xf32, #tpu.memory_space<vmem>>, vector<1x1x16x32xf32>,
    %80 = vector.extract_strided_slice %14 {offsets = [0, 2], sizes = [16, 1], strides = [1, 1]} : vector<16x32xf32> to vector<16x1xf32>
    %81 = vector.extract_strided_slice %27 {offsets = [2, 0], sizes = [1, 32], strides = [1, 1]} : vector<32x32xf32> to vector<1x32xf32>
    %82 = vector.extract_strided_slice %33 {offsets = [2, 0], sizes = [1, 32], strides = [1, 1]} : vector<32x32xf32> to vector<1x32xf32>
    %83 = vector.broadcast %80 : vector<16x1xf32> to vector<16x32xf32>
    %84 = arith.mulf %83, %76 : vector<16x32xf32>
    %cst_43 = arith.constant dense<0.000000e+00> : vector<32xf32>
    %85 = vector.multi_reduction <add>, %84, %cst_43 [0] : vector<16x32xf32> to vector<32xf32>
    %86 = vector.shape_cast %85 : vector<32xf32> to vector<1x32xf32>
    %c2_44 = arith.constant 2 : index
    %c0_45 = arith.constant 0 : index
    %87 = vector.load %arg22[%c2_44, %c0_45] : memref<32x32xf32, #tpu.memory_space<vmem>>, vector<1x32xf32>
    tpu.vector_store %arg22[%c2_44, %c0_45], %86 {strides = array<i32>} : memref<32x32xf32, #tpu.memory_space<vmem>>, vector<1x32xf32>,
    %88 = vector.broadcast %80 : vector<16x1xf32> to vector<16x32xf32>
    %89 = vector.broadcast %81 : vector<1x32xf32> to vector<16x32xf32>
    %90 = arith.mulf %88, %89 : vector<16x32xf32>
    %cst_46 = arith.constant 1.000000e+00 : f32
    %91 = vector.broadcast %cst_46 : f32 to vector<16x32xf32>
    %92 = arith.subf %91, %90 : vector<16x32xf32>
    %93 = arith.mulf %76, %92 : vector<16x32xf32>
    %94 = vector.broadcast %80 : vector<16x1xf32> to vector<16x32xf32>
    %95 = vector.broadcast %82 : vector<1x32xf32> to vector<16x32xf32>
    %96 = arith.mulf %94, %95 : vector<16x32xf32>
    %97 = arith.addf %93, %96 : vector<16x32xf32>
    %c0_47 = arith.constant 0 : index
    %c3 = arith.constant 3 : index
    %c0_48 = arith.constant 0 : index
    %c0_49 = arith.constant 0 : index
    %98 = vector.load %arg20[%c0_47, %c3, %c0_48, %c0_49] : memref<1x33x16x32xf32, #tpu.memory_space<vmem>>, vector<1x1x16x32xf32>
    %99 = vector.shape_cast %98 : vector<1x1x16x32xf32> to vector<16x32xf32>
    %100 = vector.shape_cast %97 : vector<16x32xf32> to vector<1x1x16x32xf32>
    tpu.vector_store %arg20[%c0_47, %c3, %c0_48, %c0_49], %100 {strides = array<i32>} : memref<1x33x16x32xf32, #tpu.memory_space<vmem>>, vector<1x1x16x32xf32>,
    %101 = vector.extract_strided_slice %14 {offsets = [0, 3], sizes = [16, 1], strides = [1, 1]} : vector<16x32xf32> to vector<16x1xf32>
    %102 = vector.extract_strided_slice %27 {offsets = [3, 0], sizes = [1, 32], strides = [1, 1]} : vector<32x32xf32> to vector<1x32xf32>
    %103 = vector.extract_strided_slice %33 {offsets = [3, 0], sizes = [1, 32], strides = [1, 1]} : vector<32x32xf32> to vector<1x32xf32>
    %104 = vector.broadcast %101 : vector<16x1xf32> to vector<16x32xf32>
    %105 = arith.mulf %104, %97 : vector<16x32xf32>
    %cst_50 = arith.constant dense<0.000000e+00> : vector<32xf32>
    %106 = vector.multi_reduction <add>, %105, %cst_50 [0] : vector<16x32xf32> to vector<32xf32>
    %107 = vector.shape_cast %106 : vector<32xf32> to vector<1x32xf32>
    %c3_51 = arith.constant 3 : index
    %c0_52 = arith.constant 0 : index
    %108 = vector.load %arg22[%c3_51, %c0_52] : memref<32x32xf32, #tpu.memory_space<vmem>>, vector<1x32xf32>
    tpu.vector_store %arg22[%c3_51, %c0_52], %107 {strides = array<i32>} : memref<32x32xf32, #tpu.memory_space<vmem>>, vector<1x32xf32>,
    %109 = vector.broadcast %101 : vector<16x1xf32> to vector<16x32xf32>
    %110 = vector.broadcast %102 : vector<1x32xf32> to vector<16x32xf32>
    %111 = arith.mulf %109, %110 : vector<16x32xf32>
    %cst_53 = arith.constant 1.000000e+00 : f32
    %112 = vector.broadcast %cst_53 : f32 to vector<16x32xf32>
    %113 = arith.subf %112, %111 : vector<16x32xf32>
    %114 = arith.mulf %97, %113 : vector<16x32xf32>
    %115 = vector.broadcast %101 : vector<16x1xf32> to vector<16x32xf32>
    %116 = vector.broadcast %103 : vector<1x32xf32> to vector<16x32xf32>
    %117 = arith.mulf %115, %116 : vector<16x32xf32>
    %118 = arith.addf %114, %117 : vector<16x32xf32>
    %c0_54 = arith.constant 0 : index
    %c4 = arith.constant 4 : index
    %c0_55 = arith.constant 0 : index
    %c0_56 = arith.constant 0 : index
    %119 = vector.load %arg20[%c0_54, %c4, %c0_55, %c0_56] : memref<1x33x16x32xf32, #tpu.memory_space<vmem>>, vector<1x1x16x32xf32>
    %120 = vector.shape_cast %119 : vector<1x1x16x32xf32> to vector<16x32xf32>
    %121 = vector.shape_cast %118 : vector<16x32xf32> to vector<1x1x16x32xf32>
    tpu.vector_store %arg20[%c0_54, %c4, %c0_55, %c0_56], %121 {strides = array<i32>} : memref<1x33x16x32xf32, #tpu.memory_space<vmem>>, vector<1x1x16x32xf32>,
    %122 = vector.extract_strided_slice %14 {offsets = [0, 4], sizes = [16, 1], strides = [1, 1]} : vector<16x32xf32> to vector<16x1xf32>
    %123 = vector.extract_strided_slice %27 {offsets = [4, 0], sizes = [1, 32], strides = [1, 1]} : vector<32x32xf32> to vector<1x32xf32>
    %124 = vector.extract_strided_slice %33 {offsets = [4, 0], sizes = [1, 32], strides = [1, 1]} : vector<32x32xf32> to vector<1x32xf32>
    %125 = vector.broadcast %122 : vector<16x1xf32> to vector<16x32xf32>
    %126 = arith.mulf %125, %118 : vector<16x32xf32>
    %cst_57 = arith.constant dense<0.000000e+00> : vector<32xf32>
    %127 = vector.multi_reduction <add>, %126, %cst_57 [0] : vector<16x32xf32> to vector<32xf32>
    %128 = vector.shape_cast %127 : vector<32xf32> to vector<1x32xf32>
    %c4_58 = arith.constant 4 : index
    %c0_59 = arith.constant 0 : index
    %129 = vector.load %arg22[%c4_58, %c0_59] : memref<32x32xf32, #tpu.memory_space<vmem>>, vector<1x32xf32>
    tpu.vector_store %arg22[%c4_58, %c0_59], %128 {strides = array<i32>} : memref<32x32xf32, #tpu.memory_space<vmem>>, vector<1x32xf32>,
    %130 = vector.broadcast %122 : vector<16x1xf32> to vector<16x32xf32>
    %131 = vector.broadcast %123 : vector<1x32xf32> to vector<16x32xf32>
    %132 = arith.mulf %130, %131 : vector<16x32xf32>
    %cst_60 = arith.constant 1.000000e+00 : f32
    %133 = vector.broadcast %cst_60 : f32 to vector<16x32xf32>
    %134 = arith.subf %133, %132 : vector<16x32xf32>
    %135 = arith.mulf %118, %134 : vector<16x32xf32>
    %136 = vector.broadcast %122 : vector<16x1xf32> to vector<16x32xf32>
    %137 = vector.broadcast %124 : vector<1x32xf32> to vector<16x32xf32>
    %138 = arith.mulf %136, %137 : vector<16x32xf32>
    %139 = arith.addf %135, %138 : vector<16x32xf32>
    %c0_61 = arith.constant 0 : index
    %c5 = arith.constant 5 : index
    %c0_62 = arith.constant 0 : index
    %c0_63 = arith.constant 0 : index
    %140 = vector.load %arg20[%c0_61, %c5, %c0_62, %c0_63] : memref<1x33x16x32xf32, #tpu.memory_space<vmem>>, vector<1x1x16x32xf32>
    %141 = vector.shape_cast %140 : vector<1x1x16x32xf32> to vector<16x32xf32>
    %142 = vector.shape_cast %139 : vector<16x32xf32> to vector<1x1x16x32xf32>
    tpu.vector_store %arg20[%c0_61, %c5, %c0_62, %c0_63], %142 {strides = array<i32>} : memref<1x33x16x32xf32, #tpu.memory_space<vmem>>, vector<1x1x16x32xf32>,
    %143 = vector.extract_strided_slice %14 {offsets = [0, 5], sizes = [16, 1], strides = [1, 1]} : vector<16x32xf32> to vector<16x1xf32>
    %144 = vector.extract_strided_slice %27 {offsets = [5, 0], sizes = [1, 32], strides = [1, 1]} : vector<32x32xf32> to vector<1x32xf32>
    %145 = vector.extract_strided_slice %33 {offsets = [5, 0], sizes = [1, 32], strides = [1, 1]} : vector<32x32xf32> to vector<1x32xf32>
    %146 = vector.broadcast %143 : vector<16x1xf32> to vector<16x32xf32>
    %147 = arith.mulf %146, %139 : vector<16x32xf32>
    %cst_64 = arith.constant dense<0.000000e+00> : vector<32xf32>
    %148 = vector.multi_reduction <add>, %147, %cst_64 [0] : vector<16x32xf32> to vector<32xf32>
    %149 = vector.shape_cast %148 : vector<32xf32> to vector<1x32xf32>
    %c5_65 = arith.constant 5 : index
    %c0_66 = arith.constant 0 : index
    %150 = vector.load %arg22[%c5_65, %c0_66] : memref<32x32xf32, #tpu.memory_space<vmem>>, vector<1x32xf32>
    tpu.vector_store %arg22[%c5_65, %c0_66], %149 {strides = array<i32>} : memref<32x32xf32, #tpu.memory_space<vmem>>, vector<1x32xf32>,
    %151 = vector.broadcast %143 : vector<16x1xf32> to vector<16x32xf32>
    %152 = vector.broadcast %144 : vector<1x32xf32> to vector<16x32xf32>
    %153 = arith.mulf %151, %152 : vector<16x32xf32>
    %cst_67 = arith.constant 1.000000e+00 : f32
    %154 = vector.broadcast %cst_67 : f32 to vector<16x32xf32>
    %155 = arith.subf %154, %153 : vector<16x32xf32>
    %156 = arith.mulf %139, %155 : vector<16x32xf32>
    %157 = vector.broadcast %143 : vector<16x1xf32> to vector<16x32xf32>
    %158 = vector.broadcast %145 : vector<1x32xf32> to vector<16x32xf32>
    %159 = arith.mulf %157, %158 : vector<16x32xf32>
    %160 = arith.addf %156, %159 : vector<16x32xf32>
    %c0_68 = arith.constant 0 : index
    %c6 = arith.constant 6 : index
    %c0_69 = arith.constant 0 : index
    %c0_70 = arith.constant 0 : index
    %161 = vector.load %arg20[%c0_68, %c6, %c0_69, %c0_70] : memref<1x33x16x32xf32, #tpu.memory_space<vmem>>, vector<1x1x16x32xf32>
    %162 = vector.shape_cast %161 : vector<1x1x16x32xf32> to vector<16x32xf32>
    %163 = vector.shape_cast %160 : vector<16x32xf32> to vector<1x1x16x32xf32>
    tpu.vector_store %arg20[%c0_68, %c6, %c0_69, %c0_70], %163 {strides = array<i32>} : memref<1x33x16x32xf32, #tpu.memory_space<vmem>>, vector<1x1x16x32xf32>,
    %164 = vector.extract_strided_slice %14 {offsets = [0, 6], sizes = [16, 1], strides = [1, 1]} : vector<16x32xf32> to vector<16x1xf32>
    %165 = vector.extract_strided_slice %27 {offsets = [6, 0], sizes = [1, 32], strides = [1, 1]} : vector<32x32xf32> to vector<1x32xf32>
    %166 = vector.extract_strided_slice %33 {offsets = [6, 0], sizes = [1, 32], strides = [1, 1]} : vector<32x32xf32> to vector<1x32xf32>
    %167 = vector.broadcast %164 : vector<16x1xf32> to vector<16x32xf32>
    %168 = arith.mulf %167, %160 : vector<16x32xf32>
    %cst_71 = arith.constant dense<0.000000e+00> : vector<32xf32>
    %169 = vector.multi_reduction <add>, %168, %cst_71 [0] : vector<16x32xf32> to vector<32xf32>
    %170 = vector.shape_cast %169 : vector<32xf32> to vector<1x32xf32>
    %c6_72 = arith.constant 6 : index
    %c0_73 = arith.constant 0 : index
    %171 = vector.load %arg22[%c6_72, %c0_73] : memref<32x32xf32, #tpu.memory_space<vmem>>, vector<1x32xf32>
    tpu.vector_store %arg22[%c6_72, %c0_73], %170 {strides = array<i32>} : memref<32x32xf32, #tpu.memory_space<vmem>>, vector<1x32xf32>,
    %172 = vector.broadcast %164 : vector<16x1xf32> to vector<16x32xf32>
    %173 = vector.broadcast %165 : vector<1x32xf32> to vector<16x32xf32>
    %174 = arith.mulf %172, %173 : vector<16x32xf32>
    %cst_74 = arith.constant 1.000000e+00 : f32
    %175 = vector.broadcast %cst_74 : f32 to vector<16x32xf32>
    %176 = arith.subf %175, %174 : vector<16x32xf32>
    %177 = arith.mulf %160, %176 : vector<16x32xf32>
    %178 = vector.broadcast %164 : vector<16x1xf32> to vector<16x32xf32>
    %179 = vector.broadcast %166 : vector<1x32xf32> to vector<16x32xf32>
    %180 = arith.mulf %178, %179 : vector<16x32xf32>
    %181 = arith.addf %177, %180 : vector<16x32xf32>
    %c0_75 = arith.constant 0 : index
    %c7 = arith.constant 7 : index
    %c0_76 = arith.constant 0 : index
    %c0_77 = arith.constant 0 : index
    %182 = vector.load %arg20[%c0_75, %c7, %c0_76, %c0_77] : memref<1x33x16x32xf32, #tpu.memory_space<vmem>>, vector<1x1x16x32xf32>
    %183 = vector.shape_cast %182 : vector<1x1x16x32xf32> to vector<16x32xf32>
    %184 = vector.shape_cast %181 : vector<16x32xf32> to vector<1x1x16x32xf32>
    tpu.vector_store %arg20[%c0_75, %c7, %c0_76, %c0_77], %184 {strides = array<i32>} : memref<1x33x16x32xf32, #tpu.memory_space<vmem>>, vector<1x1x16x32xf32>,
    %185 = vector.extract_strided_slice %14 {offsets = [0, 7], sizes = [16, 1], strides = [1, 1]} : vector<16x32xf32> to vector<16x1xf32>
    %186 = vector.extract_strided_slice %27 {offsets = [7, 0], sizes = [1, 32], strides = [1, 1]} : vector<32x32xf32> to vector<1x32xf32>
    %187 = vector.extract_strided_slice %33 {offsets = [7, 0], sizes = [1, 32], strides = [1, 1]} : vector<32x32xf32> to vector<1x32xf32>
    %188 = vector.broadcast %185 : vector<16x1xf32> to vector<16x32xf32>
    %189 = arith.mulf %188, %181 : vector<16x32xf32>
    %cst_78 = arith.constant dense<0.000000e+00> : vector<32xf32>
    %190 = vector.multi_reduction <add>, %189, %cst_78 [0] : vector<16x32xf32> to vector<32xf32>
    %191 = vector.shape_cast %190 : vector<32xf32> to vector<1x32xf32>
    %c7_79 = arith.constant 7 : index
    %c0_80 = arith.constant 0 : index
    %192 = vector.load %arg22[%c7_79, %c0_80] : memref<32x32xf32, #tpu.memory_space<vmem>>, vector<1x32xf32>
    tpu.vector_store %arg22[%c7_79, %c0_80], %191 {strides = array<i32>} : memref<32x32xf32, #tpu.memory_space<vmem>>, vector<1x32xf32>,
    %193 = vector.broadcast %185 : vector<16x1xf32> to vector<16x32xf32>
    %194 = vector.broadcast %186 : vector<1x32xf32> to vector<16x32xf32>
    %195 = arith.mulf %193, %194 : vector<16x32xf32>
    %cst_81 = arith.constant 1.000000e+00 : f32
    %196 = vector.broadcast %cst_81 : f32 to vector<16x32xf32>
    %197 = arith.subf %196, %195 : vector<16x32xf32>
    %198 = arith.mulf %181, %197 : vector<16x32xf32>
    %199 = vector.broadcast %185 : vector<16x1xf32> to vector<16x32xf32>
    %200 = vector.broadcast %187 : vector<1x32xf32> to vector<16x32xf32>
    %201 = arith.mulf %199, %200 : vector<16x32xf32>
    %202 = arith.addf %198, %201 : vector<16x32xf32>
    %c0_82 = arith.constant 0 : index
    %c8 = arith.constant 8 : index
    %c0_83 = arith.constant 0 : index
    %c0_84 = arith.constant 0 : index
    %203 = vector.load %arg20[%c0_82, %c8, %c0_83, %c0_84] : memref<1x33x16x32xf32, #tpu.memory_space<vmem>>, vector<1x1x16x32xf32>
    %204 = vector.shape_cast %203 : vector<1x1x16x32xf32> to vector<16x32xf32>
    %205 = vector.shape_cast %202 : vector<16x32xf32> to vector<1x1x16x32xf32>
    tpu.vector_store %arg20[%c0_82, %c8, %c0_83, %c0_84], %205 {strides = array<i32>} : memref<1x33x16x32xf32, #tpu.memory_space<vmem>>, vector<1x1x16x32xf32>,
    %206 = vector.extract_strided_slice %14 {offsets = [0, 8], sizes = [16, 1], strides = [1, 1]} : vector<16x32xf32> to vector<16x1xf32>
    %207 = vector.extract_strided_slice %27 {offsets = [8, 0], sizes = [1, 32], strides = [1, 1]} : vector<32x32xf32> to vector<1x32xf32>
    %208 = vector.extract_strided_slice %33 {offsets = [8, 0], sizes = [1, 32], strides = [1, 1]} : vector<32x32xf32> to vector<1x32xf32>
    %209 = vector.broadcast %206 : vector<16x1xf32> to vector<16x32xf32>
    %210 = arith.mulf %209, %202 : vector<16x32xf32>
    %cst_85 = arith.constant dense<0.000000e+00> : vector<32xf32>
    %211 = vector.multi_reduction <add>, %210, %cst_85 [0] : vector<16x32xf32> to vector<32xf32>
    %212 = vector.shape_cast %211 : vector<32xf32> to vector<1x32xf32>
    %c8_86 = arith.constant 8 : index
    %c0_87 = arith.constant 0 : index
    %213 = vector.load %arg22[%c8_86, %c0_87] : memref<32x32xf32, #tpu.memory_space<vmem>>, vector<1x32xf32>
    tpu.vector_store %arg22[%c8_86, %c0_87], %212 {strides = array<i32>} : memref<32x32xf32, #tpu.memory_space<vmem>>, vector<1x32xf32>,
    %214 = vector.broadcast %206 : vector<16x1xf32> to vector<16x32xf32>
    %215 = vector.broadcast %207 : vector<1x32xf32> to vector<16x32xf32>
    %216 = arith.mulf %214, %215 : vector<16x32xf32>
    %cst_88 = arith.constant 1.000000e+00 : f32
    %217 = vector.broadcast %cst_88 : f32 to vector<16x32xf32>
    %218 = arith.subf %217, %216 : vector<16x32xf32>
    %219 = arith.mulf %202, %218 : vector<16x32xf32>
    %220 = vector.broadcast %206 : vector<16x1xf32> to vector<16x32xf32>
    %221 = vector.broadcast %208 : vector<1x32xf32> to vector<16x32xf32>
    %222 = arith.mulf %220, %221 : vector<16x32xf32>
    %223 = arith.addf %219, %222 : vector<16x32xf32>
    %c0_89 = arith.constant 0 : index
    %c9 = arith.constant 9 : index
    %c0_90 = arith.constant 0 : index
    %c0_91 = arith.constant 0 : index
    %224 = vector.load %arg20[%c0_89, %c9, %c0_90, %c0_91] : memref<1x33x16x32xf32, #tpu.memory_space<vmem>>, vector<1x1x16x32xf32>
    %225 = vector.shape_cast %224 : vector<1x1x16x32xf32> to vector<16x32xf32>
    %226 = vector.shape_cast %223 : vector<16x32xf32> to vector<1x1x16x32xf32>
    tpu.vector_store %arg20[%c0_89, %c9, %c0_90, %c0_91], %226 {strides = array<i32>} : memref<1x33x16x32xf32, #tpu.memory_space<vmem>>, vector<1x1x16x32xf32>,
    %227 = vector.extract_strided_slice %14 {offsets = [0, 9], sizes = [16, 1], strides = [1, 1]} : vector<16x32xf32> to vector<16x1xf32>
    %228 = vector.extract_strided_slice %27 {offsets = [9, 0], sizes = [1, 32], strides = [1, 1]} : vector<32x32xf32> to vector<1x32xf32>
    %229 = vector.extract_strided_slice %33 {offsets = [9, 0], sizes = [1, 32], strides = [1, 1]} : vector<32x32xf32> to vector<1x32xf32>
    %230 = vector.broadcast %227 : vector<16x1xf32> to vector<16x32xf32>
    %231 = arith.mulf %230, %223 : vector<16x32xf32>
    %cst_92 = arith.constant dense<0.000000e+00> : vector<32xf32>
    %232 = vector.multi_reduction <add>, %231, %cst_92 [0] : vector<16x32xf32> to vector<32xf32>
    %233 = vector.shape_cast %232 : vector<32xf32> to vector<1x32xf32>
    %c9_93 = arith.constant 9 : index
    %c0_94 = arith.constant 0 : index
    %234 = vector.load %arg22[%c9_93, %c0_94] : memref<32x32xf32, #tpu.memory_space<vmem>>, vector<1x32xf32>
    tpu.vector_store %arg22[%c9_93, %c0_94], %233 {strides = array<i32>} : memref<32x32xf32, #tpu.memory_space<vmem>>, vector<1x32xf32>,
    %235 = vector.broadcast %227 : vector<16x1xf32> to vector<16x32xf32>
    %236 = vector.broadcast %228 : vector<1x32xf32> to vector<16x32xf32>
    %237 = arith.mulf %235, %236 : vector<16x32xf32>
    %cst_95 = arith.constant 1.000000e+00 : f32
    %238 = vector.broadcast %cst_95 : f32 to vector<16x32xf32>
    %239 = arith.subf %238, %237 : vector<16x32xf32>
    %240 = arith.mulf %223, %239 : vector<16x32xf32>
    %241 = vector.broadcast %227 : vector<16x1xf32> to vector<16x32xf32>
    %242 = vector.broadcast %229 : vector<1x32xf32> to vector<16x32xf32>
    %243 = arith.mulf %241, %242 : vector<16x32xf32>
    %244 = arith.addf %240, %243 : vector<16x32xf32>
    %c0_96 = arith.constant 0 : index
    %c10 = arith.constant 10 : index
    %c0_97 = arith.constant 0 : index
    %c0_98 = arith.constant 0 : index
    %245 = vector.load %arg20[%c0_96, %c10, %c0_97, %c0_98] : memref<1x33x16x32xf32, #tpu.memory_space<vmem>>, vector<1x1x16x32xf32>
    %246 = vector.shape_cast %245 : vector<1x1x16x32xf32> to vector<16x32xf32>
    %247 = vector.shape_cast %244 : vector<16x32xf32> to vector<1x1x16x32xf32>
    tpu.vector_store %arg20[%c0_96, %c10, %c0_97, %c0_98], %247 {strides = array<i32>} : memref<1x33x16x32xf32, #tpu.memory_space<vmem>>, vector<1x1x16x32xf32>,
    %248 = vector.extract_strided_slice %14 {offsets = [0, 10], sizes = [16, 1], strides = [1, 1]} : vector<16x32xf32> to vector<16x1xf32>
    %249 = vector.extract_strided_slice %27 {offsets = [10, 0], sizes = [1, 32], strides = [1, 1]} : vector<32x32xf32> to vector<1x32xf32>
    %250 = vector.extract_strided_slice %33 {offsets = [10, 0], sizes = [1, 32], strides = [1, 1]} : vector<32x32xf32> to vector<1x32xf32>
    %251 = vector.broadcast %248 : vector<16x1xf32> to vector<16x32xf32>
    %252 = arith.mulf %251, %244 : vector<16x32xf32>
    %cst_99 = arith.constant dense<0.000000e+00> : vector<32xf32>
    %253 = vector.multi_reduction <add>, %252, %cst_99 [0] : vector<16x32xf32> to vector<32xf32>
    %254 = vector.shape_cast %253 : vector<32xf32> to vector<1x32xf32>
    %c10_100 = arith.constant 10 : index
    %c0_101 = arith.constant 0 : index
    %255 = vector.load %arg22[%c10_100, %c0_101] : memref<32x32xf32, #tpu.memory_space<vmem>>, vector<1x32xf32>
    tpu.vector_store %arg22[%c10_100, %c0_101], %254 {strides = array<i32>} : memref<32x32xf32, #tpu.memory_space<vmem>>, vector<1x32xf32>,
    %256 = vector.broadcast %248 : vector<16x1xf32> to vector<16x32xf32>
    %257 = vector.broadcast %249 : vector<1x32xf32> to vector<16x32xf32>
    %258 = arith.mulf %256, %257 : vector<16x32xf32>
    %cst_102 = arith.constant 1.000000e+00 : f32
    %259 = vector.broadcast %cst_102 : f32 to vector<16x32xf32>
    %260 = arith.subf %259, %258 : vector<16x32xf32>
    %261 = arith.mulf %244, %260 : vector<16x32xf32>
    %262 = vector.broadcast %248 : vector<16x1xf32> to vector<16x32xf32>
    %263 = vector.broadcast %250 : vector<1x32xf32> to vector<16x32xf32>
    %264 = arith.mulf %262, %263 : vector<16x32xf32>
    %265 = arith.addf %261, %264 : vector<16x32xf32>
    %c0_103 = arith.constant 0 : index
    %c11 = arith.constant 11 : index
    %c0_104 = arith.constant 0 : index
    %c0_105 = arith.constant 0 : index
    %266 = vector.load %arg20[%c0_103, %c11, %c0_104, %c0_105] : memref<1x33x16x32xf32, #tpu.memory_space<vmem>>, vector<1x1x16x32xf32>
    %267 = vector.shape_cast %266 : vector<1x1x16x32xf32> to vector<16x32xf32>
    %268 = vector.shape_cast %265 : vector<16x32xf32> to vector<1x1x16x32xf32>
    tpu.vector_store %arg20[%c0_103, %c11, %c0_104, %c0_105], %268 {strides = array<i32>} : memref<1x33x16x32xf32, #tpu.memory_space<vmem>>, vector<1x1x16x32xf32>,
    %269 = vector.extract_strided_slice %14 {offsets = [0, 11], sizes = [16, 1], strides = [1, 1]} : vector<16x32xf32> to vector<16x1xf32>
    %270 = vector.extract_strided_slice %27 {offsets = [11, 0], sizes = [1, 32], strides = [1, 1]} : vector<32x32xf32> to vector<1x32xf32>
    %271 = vector.extract_strided_slice %33 {offsets = [11, 0], sizes = [1, 32], strides = [1, 1]} : vector<32x32xf32> to vector<1x32xf32>
    %272 = vector.broadcast %269 : vector<16x1xf32> to vector<16x32xf32>
    %273 = arith.mulf %272, %265 : vector<16x32xf32>
    %cst_106 = arith.constant dense<0.000000e+00> : vector<32xf32>
    %274 = vector.multi_reduction <add>, %273, %cst_106 [0] : vector<16x32xf32> to vector<32xf32>
    %275 = vector.shape_cast %274 : vector<32xf32> to vector<1x32xf32>
    %c11_107 = arith.constant 11 : index
    %c0_108 = arith.constant 0 : index
    %276 = vector.load %arg22[%c11_107, %c0_108] : memref<32x32xf32, #tpu.memory_space<vmem>>, vector<1x32xf32>
    tpu.vector_store %arg22[%c11_107, %c0_108], %275 {strides = array<i32>} : memref<32x32xf32, #tpu.memory_space<vmem>>, vector<1x32xf32>,
    %277 = vector.broadcast %269 : vector<16x1xf32> to vector<16x32xf32>
    %278 = vector.broadcast %270 : vector<1x32xf32> to vector<16x32xf32>
    %279 = arith.mulf %277, %278 : vector<16x32xf32>
    %cst_109 = arith.constant 1.000000e+00 : f32
    %280 = vector.broadcast %cst_109 : f32 to vector<16x32xf32>
    %281 = arith.subf %280, %279 : vector<16x32xf32>
    %282 = arith.mulf %265, %281 : vector<16x32xf32>
    %283 = vector.broadcast %269 : vector<16x1xf32> to vector<16x32xf32>
    %284 = vector.broadcast %271 : vector<1x32xf32> to vector<16x32xf32>
    %285 = arith.mulf %283, %284 : vector<16x32xf32>
    %286 = arith.addf %282, %285 : vector<16x32xf32>
    %c0_110 = arith.constant 0 : index
    %c12 = arith.constant 12 : index
    %c0_111 = arith.constant 0 : index
    %c0_112 = arith.constant 0 : index
    %287 = vector.load %arg20[%c0_110, %c12, %c0_111, %c0_112] : memref<1x33x16x32xf32, #tpu.memory_space<vmem>>, vector<1x1x16x32xf32>
    %288 = vector.shape_cast %287 : vector<1x1x16x32xf32> to vector<16x32xf32>
    %289 = vector.shape_cast %286 : vector<16x32xf32> to vector<1x1x16x32xf32>
    tpu.vector_store %arg20[%c0_110, %c12, %c0_111, %c0_112], %289 {strides = array<i32>} : memref<1x33x16x32xf32, #tpu.memory_space<vmem>>, vector<1x1x16x32xf32>,
    %290 = vector.extract_strided_slice %14 {offsets = [0, 12], sizes = [16, 1], strides = [1, 1]} : vector<16x32xf32> to vector<16x1xf32>
    %291 = vector.extract_strided_slice %27 {offsets = [12, 0], sizes = [1, 32], strides = [1, 1]} : vector<32x32xf32> to vector<1x32xf32>
    %292 = vector.extract_strided_slice %33 {offsets = [12, 0], sizes = [1, 32], strides = [1, 1]} : vector<32x32xf32> to vector<1x32xf32>
    %293 = vector.broadcast %290 : vector<16x1xf32> to vector<16x32xf32>
    %294 = arith.mulf %293, %286 : vector<16x32xf32>
    %cst_113 = arith.constant dense<0.000000e+00> : vector<32xf32>
    %295 = vector.multi_reduction <add>, %294, %cst_113 [0] : vector<16x32xf32> to vector<32xf32>
    %296 = vector.shape_cast %295 : vector<32xf32> to vector<1x32xf32>
    %c12_114 = arith.constant 12 : index
    %c0_115 = arith.constant 0 : index
    %297 = vector.load %arg22[%c12_114, %c0_115] : memref<32x32xf32, #tpu.memory_space<vmem>>, vector<1x32xf32>
    tpu.vector_store %arg22[%c12_114, %c0_115], %296 {strides = array<i32>} : memref<32x32xf32, #tpu.memory_space<vmem>>, vector<1x32xf32>,
    %298 = vector.broadcast %290 : vector<16x1xf32> to vector<16x32xf32>
    %299 = vector.broadcast %291 : vector<1x32xf32> to vector<16x32xf32>
    %300 = arith.mulf %298, %299 : vector<16x32xf32>
    %cst_116 = arith.constant 1.000000e+00 : f32
    %301 = vector.broadcast %cst_116 : f32 to vector<16x32xf32>
    %302 = arith.subf %301, %300 : vector<16x32xf32>
    %303 = arith.mulf %286, %302 : vector<16x32xf32>
    %304 = vector.broadcast %290 : vector<16x1xf32> to vector<16x32xf32>
    %305 = vector.broadcast %292 : vector<1x32xf32> to vector<16x32xf32>
    %306 = arith.mulf %304, %305 : vector<16x32xf32>
    %307 = arith.addf %303, %306 : vector<16x32xf32>
    %c0_117 = arith.constant 0 : index
    %c13 = arith.constant 13 : index
    %c0_118 = arith.constant 0 : index
    %c0_119 = arith.constant 0 : index
    %308 = vector.load %arg20[%c0_117, %c13, %c0_118, %c0_119] : memref<1x33x16x32xf32, #tpu.memory_space<vmem>>, vector<1x1x16x32xf32>
    %309 = vector.shape_cast %308 : vector<1x1x16x32xf32> to vector<16x32xf32>
    %310 = vector.shape_cast %307 : vector<16x32xf32> to vector<1x1x16x32xf32>
    tpu.vector_store %arg20[%c0_117, %c13, %c0_118, %c0_119], %310 {strides = array<i32>} : memref<1x33x16x32xf32, #tpu.memory_space<vmem>>, vector<1x1x16x32xf32>,
    %311 = vector.extract_strided_slice %14 {offsets = [0, 13], sizes = [16, 1], strides = [1, 1]} : vector<16x32xf32> to vector<16x1xf32>
    %312 = vector.extract_strided_slice %27 {offsets = [13, 0], sizes = [1, 32], strides = [1, 1]} : vector<32x32xf32> to vector<1x32xf32>
    %313 = vector.extract_strided_slice %33 {offsets = [13, 0], sizes = [1, 32], strides = [1, 1]} : vector<32x32xf32> to vector<1x32xf32>
    %314 = vector.broadcast %311 : vector<16x1xf32> to vector<16x32xf32>
    %315 = arith.mulf %314, %307 : vector<16x32xf32>
    %cst_120 = arith.constant dense<0.000000e+00> : vector<32xf32>
    %316 = vector.multi_reduction <add>, %315, %cst_120 [0] : vector<16x32xf32> to vector<32xf32>
    %317 = vector.shape_cast %316 : vector<32xf32> to vector<1x32xf32>
    %c13_121 = arith.constant 13 : index
    %c0_122 = arith.constant 0 : index
    %318 = vector.load %arg22[%c13_121, %c0_122] : memref<32x32xf32, #tpu.memory_space<vmem>>, vector<1x32xf32>
    tpu.vector_store %arg22[%c13_121, %c0_122], %317 {strides = array<i32>} : memref<32x32xf32, #tpu.memory_space<vmem>>, vector<1x32xf32>,
    %319 = vector.broadcast %311 : vector<16x1xf32> to vector<16x32xf32>
    %320 = vector.broadcast %312 : vector<1x32xf32> to vector<16x32xf32>
    %321 = arith.mulf %319, %320 : vector<16x32xf32>
    %cst_123 = arith.constant 1.000000e+00 : f32
    %322 = vector.broadcast %cst_123 : f32 to vector<16x32xf32>
    %323 = arith.subf %322, %321 : vector<16x32xf32>
    %324 = arith.mulf %307, %323 : vector<16x32xf32>
    %325 = vector.broadcast %311 : vector<16x1xf32> to vector<16x32xf32>
    %326 = vector.broadcast %313 : vector<1x32xf32> to vector<16x32xf32>
    %327 = arith.mulf %325, %326 : vector<16x32xf32>
    %328 = arith.addf %324, %327 : vector<16x32xf32>
    %c0_124 = arith.constant 0 : index
    %c14 = arith.constant 14 : index
    %c0_125 = arith.constant 0 : index
    %c0_126 = arith.constant 0 : index
    %329 = vector.load %arg20[%c0_124, %c14, %c0_125, %c0_126] : memref<1x33x16x32xf32, #tpu.memory_space<vmem>>, vector<1x1x16x32xf32>
    %330 = vector.shape_cast %329 : vector<1x1x16x32xf32> to vector<16x32xf32>
    %331 = vector.shape_cast %328 : vector<16x32xf32> to vector<1x1x16x32xf32>
    tpu.vector_store %arg20[%c0_124, %c14, %c0_125, %c0_126], %331 {strides = array<i32>} : memref<1x33x16x32xf32, #tpu.memory_space<vmem>>, vector<1x1x16x32xf32>,
    %332 = vector.extract_strided_slice %14 {offsets = [0, 14], sizes = [16, 1], strides = [1, 1]} : vector<16x32xf32> to vector<16x1xf32>
    %333 = vector.extract_strided_slice %27 {offsets = [14, 0], sizes = [1, 32], strides = [1, 1]} : vector<32x32xf32> to vector<1x32xf32>
    %334 = vector.extract_strided_slice %33 {offsets = [14, 0], sizes = [1, 32], strides = [1, 1]} : vector<32x32xf32> to vector<1x32xf32>
    %335 = vector.broadcast %332 : vector<16x1xf32> to vector<16x32xf32>
    %336 = arith.mulf %335, %328 : vector<16x32xf32>
    %cst_127 = arith.constant dense<0.000000e+00> : vector<32xf32>
    %337 = vector.multi_reduction <add>, %336, %cst_127 [0] : vector<16x32xf32> to vector<32xf32>
    %338 = vector.shape_cast %337 : vector<32xf32> to vector<1x32xf32>
    %c14_128 = arith.constant 14 : index
    %c0_129 = arith.constant 0 : index
    %339 = vector.load %arg22[%c14_128, %c0_129] : memref<32x32xf32, #tpu.memory_space<vmem>>, vector<1x32xf32>
    tpu.vector_store %arg22[%c14_128, %c0_129], %338 {strides = array<i32>} : memref<32x32xf32, #tpu.memory_space<vmem>>, vector<1x32xf32>,
    %340 = vector.broadcast %332 : vector<16x1xf32> to vector<16x32xf32>
    %341 = vector.broadcast %333 : vector<1x32xf32> to vector<16x32xf32>
    %342 = arith.mulf %340, %341 : vector<16x32xf32>
    %cst_130 = arith.constant 1.000000e+00 : f32
    %343 = vector.broadcast %cst_130 : f32 to vector<16x32xf32>
    %344 = arith.subf %343, %342 : vector<16x32xf32>
    %345 = arith.mulf %328, %344 : vector<16x32xf32>
    %346 = vector.broadcast %332 : vector<16x1xf32> to vector<16x32xf32>
    %347 = vector.broadcast %334 : vector<1x32xf32> to vector<16x32xf32>
    %348 = arith.mulf %346, %347 : vector<16x32xf32>
    %349 = arith.addf %345, %348 : vector<16x32xf32>
    %c0_131 = arith.constant 0 : index
    %c15 = arith.constant 15 : index
    %c0_132 = arith.constant 0 : index
    %c0_133 = arith.constant 0 : index
    %350 = vector.load %arg20[%c0_131, %c15, %c0_132, %c0_133] : memref<1x33x16x32xf32, #tpu.memory_space<vmem>>, vector<1x1x16x32xf32>
    %351 = vector.shape_cast %350 : vector<1x1x16x32xf32> to vector<16x32xf32>
    %352 = vector.shape_cast %349 : vector<16x32xf32> to vector<1x1x16x32xf32>
    tpu.vector_store %arg20[%c0_131, %c15, %c0_132, %c0_133], %352 {strides = array<i32>} : memref<1x33x16x32xf32, #tpu.memory_space<vmem>>, vector<1x1x16x32xf32>,
    %353 = vector.extract_strided_slice %14 {offsets = [0, 15], sizes = [16, 1], strides = [1, 1]} : vector<16x32xf32> to vector<16x1xf32>
    %354 = vector.extract_strided_slice %27 {offsets = [15, 0], sizes = [1, 32], strides = [1, 1]} : vector<32x32xf32> to vector<1x32xf32>
    %355 = vector.extract_strided_slice %33 {offsets = [15, 0], sizes = [1, 32], strides = [1, 1]} : vector<32x32xf32> to vector<1x32xf32>
    %356 = vector.broadcast %353 : vector<16x1xf32> to vector<16x32xf32>
    %357 = arith.mulf %356, %349 : vector<16x32xf32>
    %cst_134 = arith.constant dense<0.000000e+00> : vector<32xf32>
    %358 = vector.multi_reduction <add>, %357, %cst_134 [0] : vector<16x32xf32> to vector<32xf32>
    %359 = vector.shape_cast %358 : vector<32xf32> to vector<1x32xf32>
    %c15_135 = arith.constant 15 : index
    %c0_136 = arith.constant 0 : index
    %360 = vector.load %arg22[%c15_135, %c0_136] : memref<32x32xf32, #tpu.memory_space<vmem>>, vector<1x32xf32>
    tpu.vector_store %arg22[%c15_135, %c0_136], %359 {strides = array<i32>} : memref<32x32xf32, #tpu.memory_space<vmem>>, vector<1x32xf32>,
    %361 = vector.broadcast %353 : vector<16x1xf32> to vector<16x32xf32>
    %362 = vector.broadcast %354 : vector<1x32xf32> to vector<16x32xf32>
    %363 = arith.mulf %361, %362 : vector<16x32xf32>
    %cst_137 = arith.constant 1.000000e+00 : f32
    %364 = vector.broadcast %cst_137 : f32 to vector<16x32xf32>
    %365 = arith.subf %364, %363 : vector<16x32xf32>
    %366 = arith.mulf %349, %365 : vector<16x32xf32>
    %367 = vector.broadcast %353 : vector<16x1xf32> to vector<16x32xf32>
    %368 = vector.broadcast %355 : vector<1x32xf32> to vector<16x32xf32>
    %369 = arith.mulf %367, %368 : vector<16x32xf32>
    %370 = arith.addf %366, %369 : vector<16x32xf32>
    %c0_138 = arith.constant 0 : index
    %c16 = arith.constant 16 : index
    %c0_139 = arith.constant 0 : index
    %c0_140 = arith.constant 0 : index
    %371 = vector.load %arg20[%c0_138, %c16, %c0_139, %c0_140] : memref<1x33x16x32xf32, #tpu.memory_space<vmem>>, vector<1x1x16x32xf32>
    %372 = vector.shape_cast %371 : vector<1x1x16x32xf32> to vector<16x32xf32>
    %373 = vector.shape_cast %370 : vector<16x32xf32> to vector<1x1x16x32xf32>
    tpu.vector_store %arg20[%c0_138, %c16, %c0_139, %c0_140], %373 {strides = array<i32>} : memref<1x33x16x32xf32, #tpu.memory_space<vmem>>, vector<1x1x16x32xf32>,
    %374 = vector.extract_strided_slice %14 {offsets = [0, 16], sizes = [16, 1], strides = [1, 1]} : vector<16x32xf32> to vector<16x1xf32>
    %375 = vector.extract_strided_slice %27 {offsets = [16, 0], sizes = [1, 32], strides = [1, 1]} : vector<32x32xf32> to vector<1x32xf32>
    %376 = vector.extract_strided_slice %33 {offsets = [16, 0], sizes = [1, 32], strides = [1, 1]} : vector<32x32xf32> to vector<1x32xf32>
    %377 = vector.broadcast %374 : vector<16x1xf32> to vector<16x32xf32>
    %378 = arith.mulf %377, %370 : vector<16x32xf32>
    %cst_141 = arith.constant dense<0.000000e+00> : vector<32xf32>
    %379 = vector.multi_reduction <add>, %378, %cst_141 [0] : vector<16x32xf32> to vector<32xf32>
    %380 = vector.shape_cast %379 : vector<32xf32> to vector<1x32xf32>
    %c16_142 = arith.constant 16 : index
    %c0_143 = arith.constant 0 : index
    %381 = vector.load %arg22[%c16_142, %c0_143] : memref<32x32xf32, #tpu.memory_space<vmem>>, vector<1x32xf32>
    tpu.vector_store %arg22[%c16_142, %c0_143], %380 {strides = array<i32>} : memref<32x32xf32, #tpu.memory_space<vmem>>, vector<1x32xf32>,
    %382 = vector.broadcast %374 : vector<16x1xf32> to vector<16x32xf32>
    %383 = vector.broadcast %375 : vector<1x32xf32> to vector<16x32xf32>
    %384 = arith.mulf %382, %383 : vector<16x32xf32>
    %cst_144 = arith.constant 1.000000e+00 : f32
    %385 = vector.broadcast %cst_144 : f32 to vector<16x32xf32>
    %386 = arith.subf %385, %384 : vector<16x32xf32>
    %387 = arith.mulf %370, %386 : vector<16x32xf32>
    %388 = vector.broadcast %374 : vector<16x1xf32> to vector<16x32xf32>
    %389 = vector.broadcast %376 : vector<1x32xf32> to vector<16x32xf32>
    %390 = arith.mulf %388, %389 : vector<16x32xf32>
    %391 = arith.addf %387, %390 : vector<16x32xf32>
    %c0_145 = arith.constant 0 : index
    %c17 = arith.constant 17 : index
    %c0_146 = arith.constant 0 : index
    %c0_147 = arith.constant 0 : index
    %392 = vector.load %arg20[%c0_145, %c17, %c0_146, %c0_147] : memref<1x33x16x32xf32, #tpu.memory_space<vmem>>, vector<1x1x16x32xf32>
    %393 = vector.shape_cast %392 : vector<1x1x16x32xf32> to vector<16x32xf32>
    %394 = vector.shape_cast %391 : vector<16x32xf32> to vector<1x1x16x32xf32>
    tpu.vector_store %arg20[%c0_145, %c17, %c0_146, %c0_147], %394 {strides = array<i32>} : memref<1x33x16x32xf32, #tpu.memory_space<vmem>>, vector<1x1x16x32xf32>,
    %395 = vector.extract_strided_slice %14 {offsets = [0, 17], sizes = [16, 1], strides = [1, 1]} : vector<16x32xf32> to vector<16x1xf32>
    %396 = vector.extract_strided_slice %27 {offsets = [17, 0], sizes = [1, 32], strides = [1, 1]} : vector<32x32xf32> to vector<1x32xf32>
    %397 = vector.extract_strided_slice %33 {offsets = [17, 0], sizes = [1, 32], strides = [1, 1]} : vector<32x32xf32> to vector<1x32xf32>
    %398 = vector.broadcast %395 : vector<16x1xf32> to vector<16x32xf32>
    %399 = arith.mulf %398, %391 : vector<16x32xf32>
    %cst_148 = arith.constant dense<0.000000e+00> : vector<32xf32>
    %400 = vector.multi_reduction <add>, %399, %cst_148 [0] : vector<16x32xf32> to vector<32xf32>
    %401 = vector.shape_cast %400 : vector<32xf32> to vector<1x32xf32>
    %c17_149 = arith.constant 17 : index
    %c0_150 = arith.constant 0 : index
    %402 = vector.load %arg22[%c17_149, %c0_150] : memref<32x32xf32, #tpu.memory_space<vmem>>, vector<1x32xf32>
    tpu.vector_store %arg22[%c17_149, %c0_150], %401 {strides = array<i32>} : memref<32x32xf32, #tpu.memory_space<vmem>>, vector<1x32xf32>,
    %403 = vector.broadcast %395 : vector<16x1xf32> to vector<16x32xf32>
    %404 = vector.broadcast %396 : vector<1x32xf32> to vector<16x32xf32>
    %405 = arith.mulf %403, %404 : vector<16x32xf32>
    %cst_151 = arith.constant 1.000000e+00 : f32
    %406 = vector.broadcast %cst_151 : f32 to vector<16x32xf32>
    %407 = arith.subf %406, %405 : vector<16x32xf32>
    %408 = arith.mulf %391, %407 : vector<16x32xf32>
    %409 = vector.broadcast %395 : vector<16x1xf32> to vector<16x32xf32>
    %410 = vector.broadcast %397 : vector<1x32xf32> to vector<16x32xf32>
    %411 = arith.mulf %409, %410 : vector<16x32xf32>
    %412 = arith.addf %408, %411 : vector<16x32xf32>
    %c0_152 = arith.constant 0 : index
    %c18 = arith.constant 18 : index
    %c0_153 = arith.constant 0 : index
    %c0_154 = arith.constant 0 : index
    %413 = vector.load %arg20[%c0_152, %c18, %c0_153, %c0_154] : memref<1x33x16x32xf32, #tpu.memory_space<vmem>>, vector<1x1x16x32xf32>
    %414 = vector.shape_cast %413 : vector<1x1x16x32xf32> to vector<16x32xf32>
    %415 = vector.shape_cast %412 : vector<16x32xf32> to vector<1x1x16x32xf32>
    tpu.vector_store %arg20[%c0_152, %c18, %c0_153, %c0_154], %415 {strides = array<i32>} : memref<1x33x16x32xf32, #tpu.memory_space<vmem>>, vector<1x1x16x32xf32>,
    %416 = vector.extract_strided_slice %14 {offsets = [0, 18], sizes = [16, 1], strides = [1, 1]} : vector<16x32xf32> to vector<16x1xf32>
    %417 = vector.extract_strided_slice %27 {offsets = [18, 0], sizes = [1, 32], strides = [1, 1]} : vector<32x32xf32> to vector<1x32xf32>
    %418 = vector.extract_strided_slice %33 {offsets = [18, 0], sizes = [1, 32], strides = [1, 1]} : vector<32x32xf32> to vector<1x32xf32>
    %419 = vector.broadcast %416 : vector<16x1xf32> to vector<16x32xf32>
    %420 = arith.mulf %419, %412 : vector<16x32xf32>
    %cst_155 = arith.constant dense<0.000000e+00> : vector<32xf32>
    %421 = vector.multi_reduction <add>, %420, %cst_155 [0] : vector<16x32xf32> to vector<32xf32>
    %422 = vector.shape_cast %421 : vector<32xf32> to vector<1x32xf32>
    %c18_156 = arith.constant 18 : index
    %c0_157 = arith.constant 0 : index
    %423 = vector.load %arg22[%c18_156, %c0_157] : memref<32x32xf32, #tpu.memory_space<vmem>>, vector<1x32xf32>
    tpu.vector_store %arg22[%c18_156, %c0_157], %422 {strides = array<i32>} : memref<32x32xf32, #tpu.memory_space<vmem>>, vector<1x32xf32>,
    %424 = vector.broadcast %416 : vector<16x1xf32> to vector<16x32xf32>
    %425 = vector.broadcast %417 : vector<1x32xf32> to vector<16x32xf32>
    %426 = arith.mulf %424, %425 : vector<16x32xf32>
    %cst_158 = arith.constant 1.000000e+00 : f32
    %427 = vector.broadcast %cst_158 : f32 to vector<16x32xf32>
    %428 = arith.subf %427, %426 : vector<16x32xf32>
    %429 = arith.mulf %412, %428 : vector<16x32xf32>
    %430 = vector.broadcast %416 : vector<16x1xf32> to vector<16x32xf32>
    %431 = vector.broadcast %418 : vector<1x32xf32> to vector<16x32xf32>
    %432 = arith.mulf %430, %431 : vector<16x32xf32>
    %433 = arith.addf %429, %432 : vector<16x32xf32>
    %c0_159 = arith.constant 0 : index
    %c19 = arith.constant 19 : index
    %c0_160 = arith.constant 0 : index
    %c0_161 = arith.constant 0 : index
    %434 = vector.load %arg20[%c0_159, %c19, %c0_160, %c0_161] : memref<1x33x16x32xf32, #tpu.memory_space<vmem>>, vector<1x1x16x32xf32>
    %435 = vector.shape_cast %434 : vector<1x1x16x32xf32> to vector<16x32xf32>
    %436 = vector.shape_cast %433 : vector<16x32xf32> to vector<1x1x16x32xf32>
    tpu.vector_store %arg20[%c0_159, %c19, %c0_160, %c0_161], %436 {strides = array<i32>} : memref<1x33x16x32xf32, #tpu.memory_space<vmem>>, vector<1x1x16x32xf32>,
    %437 = vector.extract_strided_slice %14 {offsets = [0, 19], sizes = [16, 1], strides = [1, 1]} : vector<16x32xf32> to vector<16x1xf32>
    %438 = vector.extract_strided_slice %27 {offsets = [19, 0], sizes = [1, 32], strides = [1, 1]} : vector<32x32xf32> to vector<1x32xf32>
    %439 = vector.extract_strided_slice %33 {offsets = [19, 0], sizes = [1, 32], strides = [1, 1]} : vector<32x32xf32> to vector<1x32xf32>
    %440 = vector.broadcast %437 : vector<16x1xf32> to vector<16x32xf32>
    %441 = arith.mulf %440, %433 : vector<16x32xf32>
    %cst_162 = arith.constant dense<0.000000e+00> : vector<32xf32>
    %442 = vector.multi_reduction <add>, %441, %cst_162 [0] : vector<16x32xf32> to vector<32xf32>
    %443 = vector.shape_cast %442 : vector<32xf32> to vector<1x32xf32>
    %c19_163 = arith.constant 19 : index
    %c0_164 = arith.constant 0 : index
    %444 = vector.load %arg22[%c19_163, %c0_164] : memref<32x32xf32, #tpu.memory_space<vmem>>, vector<1x32xf32>
    tpu.vector_store %arg22[%c19_163, %c0_164], %443 {strides = array<i32>} : memref<32x32xf32, #tpu.memory_space<vmem>>, vector<1x32xf32>,
    %445 = vector.broadcast %437 : vector<16x1xf32> to vector<16x32xf32>
    %446 = vector.broadcast %438 : vector<1x32xf32> to vector<16x32xf32>
    %447 = arith.mulf %445, %446 : vector<16x32xf32>
    %cst_165 = arith.constant 1.000000e+00 : f32
    %448 = vector.broadcast %cst_165 : f32 to vector<16x32xf32>
    %449 = arith.subf %448, %447 : vector<16x32xf32>
    %450 = arith.mulf %433, %449 : vector<16x32xf32>
    %451 = vector.broadcast %437 : vector<16x1xf32> to vector<16x32xf32>
    %452 = vector.broadcast %439 : vector<1x32xf32> to vector<16x32xf32>
    %453 = arith.mulf %451, %452 : vector<16x32xf32>
    %454 = arith.addf %450, %453 : vector<16x32xf32>
    %c0_166 = arith.constant 0 : index
    %c20 = arith.constant 20 : index
    %c0_167 = arith.constant 0 : index
    %c0_168 = arith.constant 0 : index
    %455 = vector.load %arg20[%c0_166, %c20, %c0_167, %c0_168] : memref<1x33x16x32xf32, #tpu.memory_space<vmem>>, vector<1x1x16x32xf32>
    %456 = vector.shape_cast %455 : vector<1x1x16x32xf32> to vector<16x32xf32>
    %457 = vector.shape_cast %454 : vector<16x32xf32> to vector<1x1x16x32xf32>
    tpu.vector_store %arg20[%c0_166, %c20, %c0_167, %c0_168], %457 {strides = array<i32>} : memref<1x33x16x32xf32, #tpu.memory_space<vmem>>, vector<1x1x16x32xf32>,
    %458 = vector.extract_strided_slice %14 {offsets = [0, 20], sizes = [16, 1], strides = [1, 1]} : vector<16x32xf32> to vector<16x1xf32>
    %459 = vector.extract_strided_slice %27 {offsets = [20, 0], sizes = [1, 32], strides = [1, 1]} : vector<32x32xf32> to vector<1x32xf32>
    %460 = vector.extract_strided_slice %33 {offsets = [20, 0], sizes = [1, 32], strides = [1, 1]} : vector<32x32xf32> to vector<1x32xf32>
    %461 = vector.broadcast %458 : vector<16x1xf32> to vector<16x32xf32>
    %462 = arith.mulf %461, %454 : vector<16x32xf32>
    %cst_169 = arith.constant dense<0.000000e+00> : vector<32xf32>
    %463 = vector.multi_reduction <add>, %462, %cst_169 [0] : vector<16x32xf32> to vector<32xf32>
    %464 = vector.shape_cast %463 : vector<32xf32> to vector<1x32xf32>
    %c20_170 = arith.constant 20 : index
    %c0_171 = arith.constant 0 : index
    %465 = vector.load %arg22[%c20_170, %c0_171] : memref<32x32xf32, #tpu.memory_space<vmem>>, vector<1x32xf32>
    tpu.vector_store %arg22[%c20_170, %c0_171], %464 {strides = array<i32>} : memref<32x32xf32, #tpu.memory_space<vmem>>, vector<1x32xf32>,
    %466 = vector.broadcast %458 : vector<16x1xf32> to vector<16x32xf32>
    %467 = vector.broadcast %459 : vector<1x32xf32> to vector<16x32xf32>
    %468 = arith.mulf %466, %467 : vector<16x32xf32>
    %cst_172 = arith.constant 1.000000e+00 : f32
    %469 = vector.broadcast %cst_172 : f32 to vector<16x32xf32>
    %470 = arith.subf %469, %468 : vector<16x32xf32>
    %471 = arith.mulf %454, %470 : vector<16x32xf32>
    %472 = vector.broadcast %458 : vector<16x1xf32> to vector<16x32xf32>
    %473 = vector.broadcast %460 : vector<1x32xf32> to vector<16x32xf32>
    %474 = arith.mulf %472, %473 : vector<16x32xf32>
    %475 = arith.addf %471, %474 : vector<16x32xf32>
    %c0_173 = arith.constant 0 : index
    %c21 = arith.constant 21 : index
    %c0_174 = arith.constant 0 : index
    %c0_175 = arith.constant 0 : index
    %476 = vector.load %arg20[%c0_173, %c21, %c0_174, %c0_175] : memref<1x33x16x32xf32, #tpu.memory_space<vmem>>, vector<1x1x16x32xf32>
    %477 = vector.shape_cast %476 : vector<1x1x16x32xf32> to vector<16x32xf32>
    %478 = vector.shape_cast %475 : vector<16x32xf32> to vector<1x1x16x32xf32>
    tpu.vector_store %arg20[%c0_173, %c21, %c0_174, %c0_175], %478 {strides = array<i32>} : memref<1x33x16x32xf32, #tpu.memory_space<vmem>>, vector<1x1x16x32xf32>,
    %479 = vector.extract_strided_slice %14 {offsets = [0, 21], sizes = [16, 1], strides = [1, 1]} : vector<16x32xf32> to vector<16x1xf32>
    %480 = vector.extract_strided_slice %27 {offsets = [21, 0], sizes = [1, 32], strides = [1, 1]} : vector<32x32xf32> to vector<1x32xf32>
    %481 = vector.extract_strided_slice %33 {offsets = [21, 0], sizes = [1, 32], strides = [1, 1]} : vector<32x32xf32> to vector<1x32xf32>
    %482 = vector.broadcast %479 : vector<16x1xf32> to vector<16x32xf32>
    %483 = arith.mulf %482, %475 : vector<16x32xf32>
    %cst_176 = arith.constant dense<0.000000e+00> : vector<32xf32>
    %484 = vector.multi_reduction <add>, %483, %cst_176 [0] : vector<16x32xf32> to vector<32xf32>
    %485 = vector.shape_cast %484 : vector<32xf32> to vector<1x32xf32>
    %c21_177 = arith.constant 21 : index
    %c0_178 = arith.constant 0 : index
    %486 = vector.load %arg22[%c21_177, %c0_178] : memref<32x32xf32, #tpu.memory_space<vmem>>, vector<1x32xf32>
    tpu.vector_store %arg22[%c21_177, %c0_178], %485 {strides = array<i32>} : memref<32x32xf32, #tpu.memory_space<vmem>>, vector<1x32xf32>,
    %487 = vector.broadcast %479 : vector<16x1xf32> to vector<16x32xf32>
    %488 = vector.broadcast %480 : vector<1x32xf32> to vector<16x32xf32>
    %489 = arith.mulf %487, %488 : vector<16x32xf32>
    %cst_179 = arith.constant 1.000000e+00 : f32
    %490 = vector.broadcast %cst_179 : f32 to vector<16x32xf32>
    %491 = arith.subf %490, %489 : vector<16x32xf32>
    %492 = arith.mulf %475, %491 : vector<16x32xf32>
    %493 = vector.broadcast %479 : vector<16x1xf32> to vector<16x32xf32>
    %494 = vector.broadcast %481 : vector<1x32xf32> to vector<16x32xf32>
    %495 = arith.mulf %493, %494 : vector<16x32xf32>
    %496 = arith.addf %492, %495 : vector<16x32xf32>
    %c0_180 = arith.constant 0 : index
    %c22 = arith.constant 22 : index
    %c0_181 = arith.constant 0 : index
    %c0_182 = arith.constant 0 : index
    %497 = vector.load %arg20[%c0_180, %c22, %c0_181, %c0_182] : memref<1x33x16x32xf32, #tpu.memory_space<vmem>>, vector<1x1x16x32xf32>
    %498 = vector.shape_cast %497 : vector<1x1x16x32xf32> to vector<16x32xf32>
    %499 = vector.shape_cast %496 : vector<16x32xf32> to vector<1x1x16x32xf32>
    tpu.vector_store %arg20[%c0_180, %c22, %c0_181, %c0_182], %499 {strides = array<i32>} : memref<1x33x16x32xf32, #tpu.memory_space<vmem>>, vector<1x1x16x32xf32>,
    %500 = vector.extract_strided_slice %14 {offsets = [0, 22], sizes = [16, 1], strides = [1, 1]} : vector<16x32xf32> to vector<16x1xf32>
    %501 = vector.extract_strided_slice %27 {offsets = [22, 0], sizes = [1, 32], strides = [1, 1]} : vector<32x32xf32> to vector<1x32xf32>
    %502 = vector.extract_strided_slice %33 {offsets = [22, 0], sizes = [1, 32], strides = [1, 1]} : vector<32x32xf32> to vector<1x32xf32>
    %503 = vector.broadcast %500 : vector<16x1xf32> to vector<16x32xf32>
    %504 = arith.mulf %503, %496 : vector<16x32xf32>
    %cst_183 = arith.constant dense<0.000000e+00> : vector<32xf32>
    %505 = vector.multi_reduction <add>, %504, %cst_183 [0] : vector<16x32xf32> to vector<32xf32>
    %506 = vector.shape_cast %505 : vector<32xf32> to vector<1x32xf32>
    %c22_184 = arith.constant 22 : index
    %c0_185 = arith.constant 0 : index
    %507 = vector.load %arg22[%c22_184, %c0_185] : memref<32x32xf32, #tpu.memory_space<vmem>>, vector<1x32xf32>
    tpu.vector_store %arg22[%c22_184, %c0_185], %506 {strides = array<i32>} : memref<32x32xf32, #tpu.memory_space<vmem>>, vector<1x32xf32>,
    %508 = vector.broadcast %500 : vector<16x1xf32> to vector<16x32xf32>
    %509 = vector.broadcast %501 : vector<1x32xf32> to vector<16x32xf32>
    %510 = arith.mulf %508, %509 : vector<16x32xf32>
    %cst_186 = arith.constant 1.000000e+00 : f32
    %511 = vector.broadcast %cst_186 : f32 to vector<16x32xf32>
    %512 = arith.subf %511, %510 : vector<16x32xf32>
    %513 = arith.mulf %496, %512 : vector<16x32xf32>
    %514 = vector.broadcast %500 : vector<16x1xf32> to vector<16x32xf32>
    %515 = vector.broadcast %502 : vector<1x32xf32> to vector<16x32xf32>
    %516 = arith.mulf %514, %515 : vector<16x32xf32>
    %517 = arith.addf %513, %516 : vector<16x32xf32>
    %c0_187 = arith.constant 0 : index
    %c23 = arith.constant 23 : index
    %c0_188 = arith.constant 0 : index
    %c0_189 = arith.constant 0 : index
    %518 = vector.load %arg20[%c0_187, %c23, %c0_188, %c0_189] : memref<1x33x16x32xf32, #tpu.memory_space<vmem>>, vector<1x1x16x32xf32>
    %519 = vector.shape_cast %518 : vector<1x1x16x32xf32> to vector<16x32xf32>
    %520 = vector.shape_cast %517 : vector<16x32xf32> to vector<1x1x16x32xf32>
    tpu.vector_store %arg20[%c0_187, %c23, %c0_188, %c0_189], %520 {strides = array<i32>} : memref<1x33x16x32xf32, #tpu.memory_space<vmem>>, vector<1x1x16x32xf32>,
    %521 = vector.extract_strided_slice %14 {offsets = [0, 23], sizes = [16, 1], strides = [1, 1]} : vector<16x32xf32> to vector<16x1xf32>
    %522 = vector.extract_strided_slice %27 {offsets = [23, 0], sizes = [1, 32], strides = [1, 1]} : vector<32x32xf32> to vector<1x32xf32>
    %523 = vector.extract_strided_slice %33 {offsets = [23, 0], sizes = [1, 32], strides = [1, 1]} : vector<32x32xf32> to vector<1x32xf32>
    %524 = vector.broadcast %521 : vector<16x1xf32> to vector<16x32xf32>
    %525 = arith.mulf %524, %517 : vector<16x32xf32>
    %cst_190 = arith.constant dense<0.000000e+00> : vector<32xf32>
    %526 = vector.multi_reduction <add>, %525, %cst_190 [0] : vector<16x32xf32> to vector<32xf32>
    %527 = vector.shape_cast %526 : vector<32xf32> to vector<1x32xf32>
    %c23_191 = arith.constant 23 : index
    %c0_192 = arith.constant 0 : index
    %528 = vector.load %arg22[%c23_191, %c0_192] : memref<32x32xf32, #tpu.memory_space<vmem>>, vector<1x32xf32>
    tpu.vector_store %arg22[%c23_191, %c0_192], %527 {strides = array<i32>} : memref<32x32xf32, #tpu.memory_space<vmem>>, vector<1x32xf32>,
    %529 = vector.broadcast %521 : vector<16x1xf32> to vector<16x32xf32>
    %530 = vector.broadcast %522 : vector<1x32xf32> to vector<16x32xf32>
    %531 = arith.mulf %529, %530 : vector<16x32xf32>
    %cst_193 = arith.constant 1.000000e+00 : f32
    %532 = vector.broadcast %cst_193 : f32 to vector<16x32xf32>
    %533 = arith.subf %532, %531 : vector<16x32xf32>
    %534 = arith.mulf %517, %533 : vector<16x32xf32>
    %535 = vector.broadcast %521 : vector<16x1xf32> to vector<16x32xf32>
    %536 = vector.broadcast %523 : vector<1x32xf32> to vector<16x32xf32>
    %537 = arith.mulf %535, %536 : vector<16x32xf32>
    %538 = arith.addf %534, %537 : vector<16x32xf32>
    %c0_194 = arith.constant 0 : index
    %c24 = arith.constant 24 : index
    %c0_195 = arith.constant 0 : index
    %c0_196 = arith.constant 0 : index
    %539 = vector.load %arg20[%c0_194, %c24, %c0_195, %c0_196] : memref<1x33x16x32xf32, #tpu.memory_space<vmem>>, vector<1x1x16x32xf32>
    %540 = vector.shape_cast %539 : vector<1x1x16x32xf32> to vector<16x32xf32>
    %541 = vector.shape_cast %538 : vector<16x32xf32> to vector<1x1x16x32xf32>
    tpu.vector_store %arg20[%c0_194, %c24, %c0_195, %c0_196], %541 {strides = array<i32>} : memref<1x33x16x32xf32, #tpu.memory_space<vmem>>, vector<1x1x16x32xf32>,
    %542 = vector.extract_strided_slice %14 {offsets = [0, 24], sizes = [16, 1], strides = [1, 1]} : vector<16x32xf32> to vector<16x1xf32>
    %543 = vector.extract_strided_slice %27 {offsets = [24, 0], sizes = [1, 32], strides = [1, 1]} : vector<32x32xf32> to vector<1x32xf32>
    %544 = vector.extract_strided_slice %33 {offsets = [24, 0], sizes = [1, 32], strides = [1, 1]} : vector<32x32xf32> to vector<1x32xf32>
    %545 = vector.broadcast %542 : vector<16x1xf32> to vector<16x32xf32>
    %546 = arith.mulf %545, %538 : vector<16x32xf32>
    %cst_197 = arith.constant dense<0.000000e+00> : vector<32xf32>
    %547 = vector.multi_reduction <add>, %546, %cst_197 [0] : vector<16x32xf32> to vector<32xf32>
    %548 = vector.shape_cast %547 : vector<32xf32> to vector<1x32xf32>
    %c24_198 = arith.constant 24 : index
    %c0_199 = arith.constant 0 : index
    %549 = vector.load %arg22[%c24_198, %c0_199] : memref<32x32xf32, #tpu.memory_space<vmem>>, vector<1x32xf32>
    tpu.vector_store %arg22[%c24_198, %c0_199], %548 {strides = array<i32>} : memref<32x32xf32, #tpu.memory_space<vmem>>, vector<1x32xf32>,
    %550 = vector.broadcast %542 : vector<16x1xf32> to vector<16x32xf32>
    %551 = vector.broadcast %543 : vector<1x32xf32> to vector<16x32xf32>
    %552 = arith.mulf %550, %551 : vector<16x32xf32>
    %cst_200 = arith.constant 1.000000e+00 : f32
    %553 = vector.broadcast %cst_200 : f32 to vector<16x32xf32>
    %554 = arith.subf %553, %552 : vector<16x32xf32>
    %555 = arith.mulf %538, %554 : vector<16x32xf32>
    %556 = vector.broadcast %542 : vector<16x1xf32> to vector<16x32xf32>
    %557 = vector.broadcast %544 : vector<1x32xf32> to vector<16x32xf32>
    %558 = arith.mulf %556, %557 : vector<16x32xf32>
    %559 = arith.addf %555, %558 : vector<16x32xf32>
    %c0_201 = arith.constant 0 : index
    %c25 = arith.constant 25 : index
    %c0_202 = arith.constant 0 : index
    %c0_203 = arith.constant 0 : index
    %560 = vector.load %arg20[%c0_201, %c25, %c0_202, %c0_203] : memref<1x33x16x32xf32, #tpu.memory_space<vmem>>, vector<1x1x16x32xf32>
    %561 = vector.shape_cast %560 : vector<1x1x16x32xf32> to vector<16x32xf32>
    %562 = vector.shape_cast %559 : vector<16x32xf32> to vector<1x1x16x32xf32>
    tpu.vector_store %arg20[%c0_201, %c25, %c0_202, %c0_203], %562 {strides = array<i32>} : memref<1x33x16x32xf32, #tpu.memory_space<vmem>>, vector<1x1x16x32xf32>,
    %563 = vector.extract_strided_slice %14 {offsets = [0, 25], sizes = [16, 1], strides = [1, 1]} : vector<16x32xf32> to vector<16x1xf32>
    %564 = vector.extract_strided_slice %27 {offsets = [25, 0], sizes = [1, 32], strides = [1, 1]} : vector<32x32xf32> to vector<1x32xf32>
    %565 = vector.extract_strided_slice %33 {offsets = [25, 0], sizes = [1, 32], strides = [1, 1]} : vector<32x32xf32> to vector<1x32xf32>
    %566 = vector.broadcast %563 : vector<16x1xf32> to vector<16x32xf32>
    %567 = arith.mulf %566, %559 : vector<16x32xf32>
    %cst_204 = arith.constant dense<0.000000e+00> : vector<32xf32>
    %568 = vector.multi_reduction <add>, %567, %cst_204 [0] : vector<16x32xf32> to vector<32xf32>
    %569 = vector.shape_cast %568 : vector<32xf32> to vector<1x32xf32>
    %c25_205 = arith.constant 25 : index
    %c0_206 = arith.constant 0 : index
    %570 = vector.load %arg22[%c25_205, %c0_206] : memref<32x32xf32, #tpu.memory_space<vmem>>, vector<1x32xf32>
    tpu.vector_store %arg22[%c25_205, %c0_206], %569 {strides = array<i32>} : memref<32x32xf32, #tpu.memory_space<vmem>>, vector<1x32xf32>,
    %571 = vector.broadcast %563 : vector<16x1xf32> to vector<16x32xf32>
    %572 = vector.broadcast %564 : vector<1x32xf32> to vector<16x32xf32>
    %573 = arith.mulf %571, %572 : vector<16x32xf32>
    %cst_207 = arith.constant 1.000000e+00 : f32
    %574 = vector.broadcast %cst_207 : f32 to vector<16x32xf32>
    %575 = arith.subf %574, %573 : vector<16x32xf32>
    %576 = arith.mulf %559, %575 : vector<16x32xf32>
    %577 = vector.broadcast %563 : vector<16x1xf32> to vector<16x32xf32>
    %578 = vector.broadcast %565 : vector<1x32xf32> to vector<16x32xf32>
    %579 = arith.mulf %577, %578 : vector<16x32xf32>
    %580 = arith.addf %576, %579 : vector<16x32xf32>
    %c0_208 = arith.constant 0 : index
    %c26 = arith.constant 26 : index
    %c0_209 = arith.constant 0 : index
    %c0_210 = arith.constant 0 : index
    %581 = vector.load %arg20[%c0_208, %c26, %c0_209, %c0_210] : memref<1x33x16x32xf32, #tpu.memory_space<vmem>>, vector<1x1x16x32xf32>
    %582 = vector.shape_cast %581 : vector<1x1x16x32xf32> to vector<16x32xf32>
    %583 = vector.shape_cast %580 : vector<16x32xf32> to vector<1x1x16x32xf32>
    tpu.vector_store %arg20[%c0_208, %c26, %c0_209, %c0_210], %583 {strides = array<i32>} : memref<1x33x16x32xf32, #tpu.memory_space<vmem>>, vector<1x1x16x32xf32>,
    %584 = vector.extract_strided_slice %14 {offsets = [0, 26], sizes = [16, 1], strides = [1, 1]} : vector<16x32xf32> to vector<16x1xf32>
    %585 = vector.extract_strided_slice %27 {offsets = [26, 0], sizes = [1, 32], strides = [1, 1]} : vector<32x32xf32> to vector<1x32xf32>
    %586 = vector.extract_strided_slice %33 {offsets = [26, 0], sizes = [1, 32], strides = [1, 1]} : vector<32x32xf32> to vector<1x32xf32>
    %587 = vector.broadcast %584 : vector<16x1xf32> to vector<16x32xf32>
    %588 = arith.mulf %587, %580 : vector<16x32xf32>
    %cst_211 = arith.constant dense<0.000000e+00> : vector<32xf32>
    %589 = vector.multi_reduction <add>, %588, %cst_211 [0] : vector<16x32xf32> to vector<32xf32>
    %590 = vector.shape_cast %589 : vector<32xf32> to vector<1x32xf32>
    %c26_212 = arith.constant 26 : index
    %c0_213 = arith.constant 0 : index
    %591 = vector.load %arg22[%c26_212, %c0_213] : memref<32x32xf32, #tpu.memory_space<vmem>>, vector<1x32xf32>
    tpu.vector_store %arg22[%c26_212, %c0_213], %590 {strides = array<i32>} : memref<32x32xf32, #tpu.memory_space<vmem>>, vector<1x32xf32>,
    %592 = vector.broadcast %584 : vector<16x1xf32> to vector<16x32xf32>
    %593 = vector.broadcast %585 : vector<1x32xf32> to vector<16x32xf32>
    %594 = arith.mulf %592, %593 : vector<16x32xf32>
    %cst_214 = arith.constant 1.000000e+00 : f32
    %595 = vector.broadcast %cst_214 : f32 to vector<16x32xf32>
    %596 = arith.subf %595, %594 : vector<16x32xf32>
    %597 = arith.mulf %580, %596 : vector<16x32xf32>
    %598 = vector.broadcast %584 : vector<16x1xf32> to vector<16x32xf32>
    %599 = vector.broadcast %586 : vector<1x32xf32> to vector<16x32xf32>
    %600 = arith.mulf %598, %599 : vector<16x32xf32>
    %601 = arith.addf %597, %600 : vector<16x32xf32>
    %c0_215 = arith.constant 0 : index
    %c27 = arith.constant 27 : index
    %c0_216 = arith.constant 0 : index
    %c0_217 = arith.constant 0 : index
    %602 = vector.load %arg20[%c0_215, %c27, %c0_216, %c0_217] : memref<1x33x16x32xf32, #tpu.memory_space<vmem>>, vector<1x1x16x32xf32>
    %603 = vector.shape_cast %602 : vector<1x1x16x32xf32> to vector<16x32xf32>
    %604 = vector.shape_cast %601 : vector<16x32xf32> to vector<1x1x16x32xf32>
    tpu.vector_store %arg20[%c0_215, %c27, %c0_216, %c0_217], %604 {strides = array<i32>} : memref<1x33x16x32xf32, #tpu.memory_space<vmem>>, vector<1x1x16x32xf32>,
    %605 = vector.extract_strided_slice %14 {offsets = [0, 27], sizes = [16, 1], strides = [1, 1]} : vector<16x32xf32> to vector<16x1xf32>
    %606 = vector.extract_strided_slice %27 {offsets = [27, 0], sizes = [1, 32], strides = [1, 1]} : vector<32x32xf32> to vector<1x32xf32>
    %607 = vector.extract_strided_slice %33 {offsets = [27, 0], sizes = [1, 32], strides = [1, 1]} : vector<32x32xf32> to vector<1x32xf32>
    %608 = vector.broadcast %605 : vector<16x1xf32> to vector<16x32xf32>
    %609 = arith.mulf %608, %601 : vector<16x32xf32>
    %cst_218 = arith.constant dense<0.000000e+00> : vector<32xf32>
    %610 = vector.multi_reduction <add>, %609, %cst_218 [0] : vector<16x32xf32> to vector<32xf32>
    %611 = vector.shape_cast %610 : vector<32xf32> to vector<1x32xf32>
    %c27_219 = arith.constant 27 : index
    %c0_220 = arith.constant 0 : index
    %612 = vector.load %arg22[%c27_219, %c0_220] : memref<32x32xf32, #tpu.memory_space<vmem>>, vector<1x32xf32>
    tpu.vector_store %arg22[%c27_219, %c0_220], %611 {strides = array<i32>} : memref<32x32xf32, #tpu.memory_space<vmem>>, vector<1x32xf32>,
    %613 = vector.broadcast %605 : vector<16x1xf32> to vector<16x32xf32>
    %614 = vector.broadcast %606 : vector<1x32xf32> to vector<16x32xf32>
    %615 = arith.mulf %613, %614 : vector<16x32xf32>
    %cst_221 = arith.constant 1.000000e+00 : f32
    %616 = vector.broadcast %cst_221 : f32 to vector<16x32xf32>
    %617 = arith.subf %616, %615 : vector<16x32xf32>
    %618 = arith.mulf %601, %617 : vector<16x32xf32>
    %619 = vector.broadcast %605 : vector<16x1xf32> to vector<16x32xf32>
    %620 = vector.broadcast %607 : vector<1x32xf32> to vector<16x32xf32>
    %621 = arith.mulf %619, %620 : vector<16x32xf32>
    %622 = arith.addf %618, %621 : vector<16x32xf32>
    %c0_222 = arith.constant 0 : index
    %c28 = arith.constant 28 : index
    %c0_223 = arith.constant 0 : index
    %c0_224 = arith.constant 0 : index
    %623 = vector.load %arg20[%c0_222, %c28, %c0_223, %c0_224] : memref<1x33x16x32xf32, #tpu.memory_space<vmem>>, vector<1x1x16x32xf32>
    %624 = vector.shape_cast %623 : vector<1x1x16x32xf32> to vector<16x32xf32>
    %625 = vector.shape_cast %622 : vector<16x32xf32> to vector<1x1x16x32xf32>
    tpu.vector_store %arg20[%c0_222, %c28, %c0_223, %c0_224], %625 {strides = array<i32>} : memref<1x33x16x32xf32, #tpu.memory_space<vmem>>, vector<1x1x16x32xf32>,
    %626 = vector.extract_strided_slice %14 {offsets = [0, 28], sizes = [16, 1], strides = [1, 1]} : vector<16x32xf32> to vector<16x1xf32>
    %627 = vector.extract_strided_slice %27 {offsets = [28, 0], sizes = [1, 32], strides = [1, 1]} : vector<32x32xf32> to vector<1x32xf32>
    %628 = vector.extract_strided_slice %33 {offsets = [28, 0], sizes = [1, 32], strides = [1, 1]} : vector<32x32xf32> to vector<1x32xf32>
    %629 = vector.broadcast %626 : vector<16x1xf32> to vector<16x32xf32>
    %630 = arith.mulf %629, %622 : vector<16x32xf32>
    %cst_225 = arith.constant dense<0.000000e+00> : vector<32xf32>
    %631 = vector.multi_reduction <add>, %630, %cst_225 [0] : vector<16x32xf32> to vector<32xf32>
    %632 = vector.shape_cast %631 : vector<32xf32> to vector<1x32xf32>
    %c28_226 = arith.constant 28 : index
    %c0_227 = arith.constant 0 : index
    %633 = vector.load %arg22[%c28_226, %c0_227] : memref<32x32xf32, #tpu.memory_space<vmem>>, vector<1x32xf32>
    tpu.vector_store %arg22[%c28_226, %c0_227], %632 {strides = array<i32>} : memref<32x32xf32, #tpu.memory_space<vmem>>, vector<1x32xf32>,
    %634 = vector.broadcast %626 : vector<16x1xf32> to vector<16x32xf32>
    %635 = vector.broadcast %627 : vector<1x32xf32> to vector<16x32xf32>
    %636 = arith.mulf %634, %635 : vector<16x32xf32>
    %cst_228 = arith.constant 1.000000e+00 : f32
    %637 = vector.broadcast %cst_228 : f32 to vector<16x32xf32>
    %638 = arith.subf %637, %636 : vector<16x32xf32>
    %639 = arith.mulf %622, %638 : vector<16x32xf32>
    %640 = vector.broadcast %626 : vector<16x1xf32> to vector<16x32xf32>
    %641 = vector.broadcast %628 : vector<1x32xf32> to vector<16x32xf32>
    %642 = arith.mulf %640, %641 : vector<16x32xf32>
    %643 = arith.addf %639, %642 : vector<16x32xf32>
    %c0_229 = arith.constant 0 : index
    %c29 = arith.constant 29 : index
    %c0_230 = arith.constant 0 : index
    %c0_231 = arith.constant 0 : index
    %644 = vector.load %arg20[%c0_229, %c29, %c0_230, %c0_231] : memref<1x33x16x32xf32, #tpu.memory_space<vmem>>, vector<1x1x16x32xf32>
    %645 = vector.shape_cast %644 : vector<1x1x16x32xf32> to vector<16x32xf32>
    %646 = vector.shape_cast %643 : vector<16x32xf32> to vector<1x1x16x32xf32>
    tpu.vector_store %arg20[%c0_229, %c29, %c0_230, %c0_231], %646 {strides = array<i32>} : memref<1x33x16x32xf32, #tpu.memory_space<vmem>>, vector<1x1x16x32xf32>,
    %647 = vector.extract_strided_slice %14 {offsets = [0, 29], sizes = [16, 1], strides = [1, 1]} : vector<16x32xf32> to vector<16x1xf32>
    %648 = vector.extract_strided_slice %27 {offsets = [29, 0], sizes = [1, 32], strides = [1, 1]} : vector<32x32xf32> to vector<1x32xf32>
    %649 = vector.extract_strided_slice %33 {offsets = [29, 0], sizes = [1, 32], strides = [1, 1]} : vector<32x32xf32> to vector<1x32xf32>
    %650 = vector.broadcast %647 : vector<16x1xf32> to vector<16x32xf32>
    %651 = arith.mulf %650, %643 : vector<16x32xf32>
    %cst_232 = arith.constant dense<0.000000e+00> : vector<32xf32>
    %652 = vector.multi_reduction <add>, %651, %cst_232 [0] : vector<16x32xf32> to vector<32xf32>
    %653 = vector.shape_cast %652 : vector<32xf32> to vector<1x32xf32>
    %c29_233 = arith.constant 29 : index
    %c0_234 = arith.constant 0 : index
    %654 = vector.load %arg22[%c29_233, %c0_234] : memref<32x32xf32, #tpu.memory_space<vmem>>, vector<1x32xf32>
    tpu.vector_store %arg22[%c29_233, %c0_234], %653 {strides = array<i32>} : memref<32x32xf32, #tpu.memory_space<vmem>>, vector<1x32xf32>,
    %655 = vector.broadcast %647 : vector<16x1xf32> to vector<16x32xf32>
    %656 = vector.broadcast %648 : vector<1x32xf32> to vector<16x32xf32>
    %657 = arith.mulf %655, %656 : vector<16x32xf32>
    %cst_235 = arith.constant 1.000000e+00 : f32
    %658 = vector.broadcast %cst_235 : f32 to vector<16x32xf32>
    %659 = arith.subf %658, %657 : vector<16x32xf32>
    %660 = arith.mulf %643, %659 : vector<16x32xf32>
    %661 = vector.broadcast %647 : vector<16x1xf32> to vector<16x32xf32>
    %662 = vector.broadcast %649 : vector<1x32xf32> to vector<16x32xf32>
    %663 = arith.mulf %661, %662 : vector<16x32xf32>
    %664 = arith.addf %660, %663 : vector<16x32xf32>
    %c0_236 = arith.constant 0 : index
    %c30 = arith.constant 30 : index
    %c0_237 = arith.constant 0 : index
    %c0_238 = arith.constant 0 : index
    %665 = vector.load %arg20[%c0_236, %c30, %c0_237, %c0_238] : memref<1x33x16x32xf32, #tpu.memory_space<vmem>>, vector<1x1x16x32xf32>
    %666 = vector.shape_cast %665 : vector<1x1x16x32xf32> to vector<16x32xf32>
    %667 = vector.shape_cast %664 : vector<16x32xf32> to vector<1x1x16x32xf32>
    tpu.vector_store %arg20[%c0_236, %c30, %c0_237, %c0_238], %667 {strides = array<i32>} : memref<1x33x16x32xf32, #tpu.memory_space<vmem>>, vector<1x1x16x32xf32>,
    %668 = vector.extract_strided_slice %14 {offsets = [0, 30], sizes = [16, 1], strides = [1, 1]} : vector<16x32xf32> to vector<16x1xf32>
    %669 = vector.extract_strided_slice %27 {offsets = [30, 0], sizes = [1, 32], strides = [1, 1]} : vector<32x32xf32> to vector<1x32xf32>
    %670 = vector.extract_strided_slice %33 {offsets = [30, 0], sizes = [1, 32], strides = [1, 1]} : vector<32x32xf32> to vector<1x32xf32>
    %671 = vector.broadcast %668 : vector<16x1xf32> to vector<16x32xf32>
    %672 = arith.mulf %671, %664 : vector<16x32xf32>
    %cst_239 = arith.constant dense<0.000000e+00> : vector<32xf32>
    %673 = vector.multi_reduction <add>, %672, %cst_239 [0] : vector<16x32xf32> to vector<32xf32>
    %674 = vector.shape_cast %673 : vector<32xf32> to vector<1x32xf32>
    %c30_240 = arith.constant 30 : index
    %c0_241 = arith.constant 0 : index
    %675 = vector.load %arg22[%c30_240, %c0_241] : memref<32x32xf32, #tpu.memory_space<vmem>>, vector<1x32xf32>
    tpu.vector_store %arg22[%c30_240, %c0_241], %674 {strides = array<i32>} : memref<32x32xf32, #tpu.memory_space<vmem>>, vector<1x32xf32>,
    %676 = vector.broadcast %668 : vector<16x1xf32> to vector<16x32xf32>
    %677 = vector.broadcast %669 : vector<1x32xf32> to vector<16x32xf32>
    %678 = arith.mulf %676, %677 : vector<16x32xf32>
    %cst_242 = arith.constant 1.000000e+00 : f32
    %679 = vector.broadcast %cst_242 : f32 to vector<16x32xf32>
    %680 = arith.subf %679, %678 : vector<16x32xf32>
    %681 = arith.mulf %664, %680 : vector<16x32xf32>
    %682 = vector.broadcast %668 : vector<16x1xf32> to vector<16x32xf32>
    %683 = vector.broadcast %670 : vector<1x32xf32> to vector<16x32xf32>
    %684 = arith.mulf %682, %683 : vector<16x32xf32>
    %685 = arith.addf %681, %684 : vector<16x32xf32>
    %c0_243 = arith.constant 0 : index
    %c31 = arith.constant 31 : index
    %c0_244 = arith.constant 0 : index
    %c0_245 = arith.constant 0 : index
    %686 = vector.load %arg20[%c0_243, %c31, %c0_244, %c0_245] : memref<1x33x16x32xf32, #tpu.memory_space<vmem>>, vector<1x1x16x32xf32>
    %687 = vector.shape_cast %686 : vector<1x1x16x32xf32> to vector<16x32xf32>
    %688 = vector.shape_cast %685 : vector<16x32xf32> to vector<1x1x16x32xf32>
    tpu.vector_store %arg20[%c0_243, %c31, %c0_244, %c0_245], %688 {strides = array<i32>} : memref<1x33x16x32xf32, #tpu.memory_space<vmem>>, vector<1x1x16x32xf32>,
    %689 = vector.extract_strided_slice %14 {offsets = [0, 31], sizes = [16, 1], strides = [1, 1]} : vector<16x32xf32> to vector<16x1xf32>
    %690 = vector.extract_strided_slice %27 {offsets = [31, 0], sizes = [1, 32], strides = [1, 1]} : vector<32x32xf32> to vector<1x32xf32>
    %691 = vector.extract_strided_slice %33 {offsets = [31, 0], sizes = [1, 32], strides = [1, 1]} : vector<32x32xf32> to vector<1x32xf32>
    %692 = vector.broadcast %689 : vector<16x1xf32> to vector<16x32xf32>
    %693 = arith.mulf %692, %685 : vector<16x32xf32>
    %cst_246 = arith.constant dense<0.000000e+00> : vector<32xf32>
    %694 = vector.multi_reduction <add>, %693, %cst_246 [0] : vector<16x32xf32> to vector<32xf32>
    %695 = vector.shape_cast %694 : vector<32xf32> to vector<1x32xf32>
    %c31_247 = arith.constant 31 : index
    %c0_248 = arith.constant 0 : index
    %696 = vector.load %arg22[%c31_247, %c0_248] : memref<32x32xf32, #tpu.memory_space<vmem>>, vector<1x32xf32>
    tpu.vector_store %arg22[%c31_247, %c0_248], %695 {strides = array<i32>} : memref<32x32xf32, #tpu.memory_space<vmem>>, vector<1x32xf32>,
    %697 = vector.broadcast %689 : vector<16x1xf32> to vector<16x32xf32>
    %698 = vector.broadcast %690 : vector<1x32xf32> to vector<16x32xf32>
    %699 = arith.mulf %697, %698 : vector<16x32xf32>
    %cst_249 = arith.constant 1.000000e+00 : f32
    %700 = vector.broadcast %cst_249 : f32 to vector<16x32xf32>
    %701 = arith.subf %700, %699 : vector<16x32xf32>
    %702 = arith.mulf %685, %701 : vector<16x32xf32>
    %703 = vector.broadcast %689 : vector<16x1xf32> to vector<16x32xf32>
    %704 = vector.broadcast %691 : vector<1x32xf32> to vector<16x32xf32>
    %705 = arith.mulf %703, %704 : vector<16x32xf32>
    %706 = arith.addf %702, %705 : vector<16x32xf32>
    %c0_250 = arith.constant 0 : index
    %c32 = arith.constant 32 : index
    %c0_251 = arith.constant 0 : index
    %c0_252 = arith.constant 0 : index
    %707 = vector.load %arg20[%c0_250, %c32, %c0_251, %c0_252] : memref<1x33x16x32xf32, #tpu.memory_space<vmem>>, vector<1x1x16x32xf32>
    %708 = vector.shape_cast %707 : vector<1x1x16x32xf32> to vector<16x32xf32>
    %709 = vector.shape_cast %706 : vector<16x32xf32> to vector<1x1x16x32xf32>
    tpu.vector_store %arg20[%c0_250, %c32, %c0_251, %c0_252], %709 {strides = array<i32>} : memref<1x33x16x32xf32, #tpu.memory_space<vmem>>, vector<1x1x16x32xf32>,
    %c0_253 = arith.constant 0 : index
    %c0_254 = arith.constant 0 : index
    %710 = vector.load %arg22[%c0_253, %c0_254] : memref<32x32xf32, #tpu.memory_space<vmem>>, vector<32x32xf32>
    %c0_255 = arith.constant 0 : index
    %c0_256 = arith.constant 0 : index
    %711 = vector.load %arg10[%c0_255, %c0_256] : memref<32x32xf32, #tpu.memory_space<vmem>>, vector<32x32xf32>
    %cst_257 = arith.constant dense<0.000000e+00> : vector<32x32xf32>
    %712 = tpu.matmul %710, %711, %cst_257 {dimension_numbers = #tpu.dot_dimension_numbers<[1], [0], [0], [1], [0, 0, 1, 1], [], []>} : vector<32x32xf32>, vector<32x32xf32>, vector<32x32xf32> -> vector<32x32xf32>
    %c0_258 = arith.constant 0 : index
    %c0_259 = arith.constant 0 : index
    %713 = vector.load %arg11[%c0_258, %c0_259] : memref<32x32xf32, #tpu.memory_space<vmem>>, vector<32x32xf32>
    %cst_260 = arith.constant dense<0.000000e+00> : vector<32x32xf32>
    %714 = tpu.matmul %1, %713, %cst_260 {dimension_numbers = #tpu.dot_dimension_numbers<[1], [0], [0], [1], [0, 0, 1, 1], [], []>} : vector<32x32xf32>, vector<32x32xf32>, vector<32x32xf32> -> vector<32x32xf32>
    %715 = arith.addf %712, %714 : vector<32x32xf32>
    %c0_261 = arith.constant 0 : index
    %c0_262 = arith.constant 0 : index
    %716 = vector.load %arg12[%c0_261, %c0_262] : memref<1x32xf32, #tpu.memory_space<vmem>>, vector<1x32xf32>
    %717 = vector.broadcast %716 : vector<1x32xf32> to vector<32x32xf32>
    %718 = arith.addf %715, %717 : vector<32x32xf32>
    %719 = math.tanh %718 : vector<32x32xf32>
    %c0_263 = arith.constant 0 : index
    %c0_264 = arith.constant 0 : index
    %720 = vector.load %arg13[%c0_263, %c0_264] : memref<32x32xf32, #tpu.memory_space<vmem>>, vector<32x32xf32>
    %cst_265 = arith.constant dense<0.000000e+00> : vector<32x32xf32>
    %721 = tpu.matmul %720, %3, %cst_265 {dimension_numbers = #tpu.dot_dimension_numbers<[1], [1], [0], [0], [0, 0, 1, 0], [], []>} : vector<32x32xf32>, vector<32x32xf32>, vector<32x32xf32> -> vector<32x32xf32>
    %c0_266 = arith.constant 0 : index
    %c0_267 = arith.constant 0 : index
    %722 = vector.load %arg14[%c0_266, %c0_267] : memref<32x32xf32, #tpu.memory_space<vmem>>, vector<32x32xf32>
    %c0_268 = arith.constant 0 : index
    %c0_269 = arith.constant 0 : index
    %c0_270 = arith.constant 0 : index
    %723 = vector.load %arg3[%c0_268, %c0_269, %c0_270] : memref<1x32x32xf32, #tpu.memory_space<vmem>>, vector<1x32x32xf32>
    %724 = vector.shape_cast %723 : vector<1x32x32xf32> to vector<32x32xf32>
    %cst_271 = arith.constant dense<0.000000e+00> : vector<32x32xf32>
    %725 = tpu.matmul %722, %724, %cst_271 {dimension_numbers = #tpu.dot_dimension_numbers<[1], [1], [0], [0], [0, 0, 1, 0], [], []>} : vector<32x32xf32>, vector<32x32xf32>, vector<32x32xf32> -> vector<32x32xf32>
    %726 = arith.addf %721, %725 : vector<32x32xf32>
    %c0_272 = arith.constant 0 : index
    %c0_273 = arith.constant 0 : index
    %727 = vector.load %arg15[%c0_272, %c0_273] : memref<32x1xf32, #tpu.memory_space<vmem>>, vector<32x1xf32>
    %728 = vector.broadcast %727 : vector<32x1xf32> to vector<32x32xf32>
    %729 = arith.addf %726, %728 : vector<32x32xf32>
    %cst_274 = arith.constant 0.000000e+00 : f32
    %730 = vector.broadcast %cst_274 : f32 to vector<32x32xf32>
    %731 = arith.maximumf %729, %730 : vector<32x32xf32>
    %c0_275 = arith.constant 0 : index
    %c0_276 = arith.constant 0 : index
    %732 = vector.load %arg16[%c0_275, %c0_276] : memref<1x32xf32, #tpu.memory_space<vmem>>, vector<1x32xf32>
    %733 = vector.broadcast %732 : vector<1x32xf32> to vector<32x32xf32>
    %734 = arith.mulf %719, %733 : vector<32x32xf32>
    %cst_277 = arith.constant dense<0.000000e+00> : vector<32xf32>
    %735 = vector.multi_reduction <add>, %734, %cst_277 [1] : vector<32x32xf32> to vector<32xf32>
    %736 = vector.shape_cast %735 : vector<32xf32> to vector<32x1xf32>
    %c0_278 = arith.constant 0 : index
    %c0_279 = arith.constant 0 : index
    %737 = vector.load %arg17[%c0_278, %c0_279] : memref<1x32xf32, #tpu.memory_space<vmem>>, vector<1x32xf32>
    %738 = vector.broadcast %737 : vector<1x32xf32> to vector<32x32xf32>
    %739 = arith.mulf %731, %738 : vector<32x32xf32>
    %cst_280 = arith.constant dense<0.000000e+00> : vector<32xf32>
    %740 = vector.multi_reduction <add>, %739, %cst_280 [1] : vector<32x32xf32> to vector<32xf32>
    %741 = vector.shape_cast %740 : vector<32xf32> to vector<32x1xf32>
    %742 = arith.addf %736, %741 : vector<32x1xf32>
    %c0_281 = arith.constant 0 : index
    %c0_282 = arith.constant 0 : index
    %743 = vector.load %arg18[%c0_281, %c0_282] : memref<1x1xf32, #tpu.memory_space<vmem>>, vector<1x1xf32>
    %744 = vector.broadcast %743 : vector<1x1xf32> to vector<32x1xf32>
    %745 = arith.addf %742, %744 : vector<32x1xf32>
    %746 = arith.negf %745 : vector<32x1xf32>
    %747 = math.exp %746 : vector<32x1xf32>
    %cst_283 = arith.constant 1.000000e+00 : f32
    %748 = vector.broadcast %cst_283 : f32 to vector<32x1xf32>
    %749 = arith.addf %748, %747 : vector<32x1xf32>
    %750 = arith.divf %748, %749 : vector<32x1xf32>
    %c0_284 = arith.constant 0 : index
    %c0_285 = arith.constant 0 : index
    %c0_286 = arith.constant 0 : index
    %751 = vector.load %arg19[%c0_284, %c0_285, %c0_286] : memref<1x32x1xf32, #tpu.memory_space<vmem>>, vector<1x32x1xf32>
    %752 = vector.shape_cast %751 : vector<1x32x1xf32> to vector<32x1xf32>
    %753 = vector.shape_cast %750 : vector<32x1xf32> to vector<1x32x1xf32>
    tpu.vector_store %arg19[%c0_284, %c0_285, %c0_286], %753 {strides = array<i32>} : memref<1x32x1xf32, #tpu.memory_space<vmem>>, vector<1x32x1xf32>,
    return
  }
  func.func @transform_0(%arg0: i32) -> (i32, i32, i32) {
    %c0_i32 = arith.constant 0 : i32
    %c0_i32_0 = arith.constant 0 : i32
    %c0_i32_1 = arith.constant 0 : i32
    return %arg0, %c0_i32, %c0_i32_0 : i32, i32, i32
  }
  func.func @transform_1(%arg0: i32) -> (i32, i32, i32) {
    %c0_i32 = arith.constant 0 : i32
    %c0_i32_0 = arith.constant 0 : i32
    %c0_i32_1 = arith.constant 0 : i32
    return %arg0, %c0_i32, %c0_i32_0 : i32, i32, i32
  }
  func.func @transform_2(%arg0: i32) -> (i32, i32, i32) {
    %c0_i32 = arith.constant 0 : i32
    %c0_i32_0 = arith.constant 0 : i32
    %c0_i32_1 = arith.constant 0 : i32
    return %arg0, %c0_i32, %c0_i32_0 : i32, i32, i32
  }
  func.func @transform_3(%arg0: i32) -> (i32, i32) {
    %c0_i32 = arith.constant 0 : i32
    %c0_i32_0 = arith.constant 0 : i32
    %c0_i32_1 = arith.constant 0 : i32
    return %c0_i32, %c0_i32_0 : i32, i32
  }
  func.func @transform_4(%arg0: i32) -> (i32, i32) {
    %c0_i32 = arith.constant 0 : i32
    %c0_i32_0 = arith.constant 0 : i32
    %c0_i32_1 = arith.constant 0 : i32
    return %c0_i32, %c0_i32_0 : i32, i32
  }
  func.func @transform_5(%arg0: i32) -> (i32, i32) {
    %c0_i32 = arith.constant 0 : i32
    %c0_i32_0 = arith.constant 0 : i32
    %c0_i32_1 = arith.constant 0 : i32
    return %c0_i32, %c0_i32_0 : i32, i32
  }
  func.func @transform_6(%arg0: i32) -> (i32, i32) {
    %c0_i32 = arith.constant 0 : i32
    %c0_i32_0 = arith.constant 0 : i32
    %c0_i32_1 = arith.constant 0 : i32
    return %c0_i32, %c0_i32_0 : i32, i32
  }
  func.func @transform_7(%arg0: i32) -> (i32, i32) {
    %c0_i32 = arith.constant 0 : i32
    %c0_i32_0 = arith.constant 0 : i32
    %c0_i32_1 = arith.constant 0 : i32
    return %c0_i32, %c0_i32_0 : i32, i32
  }
  func.func @transform_8(%arg0: i32) -> (i32, i32) {
    %c0_i32 = arith.constant 0 : i32
    %c0_i32_0 = arith.constant 0 : i32
    %c0_i32_1 = arith.constant 0 : i32
    return %c0_i32, %c0_i32_0 : i32, i32
  }
  func.func @transform_9(%arg0: i32) -> (i32, i32) {
    %c0_i32 = arith.constant 0 : i32
    %c0_i32_0 = arith.constant 0 : i32
    %c0_i32_1 = arith.constant 0 : i32
    return %c0_i32, %c0_i32_0 : i32, i32
  }
  func.func @transform_10(%arg0: i32) -> (i32, i32) {
    %c0_i32 = arith.constant 0 : i32
    %c0_i32_0 = arith.constant 0 : i32
    %c0_i32_1 = arith.constant 0 : i32
    return %c0_i32, %c0_i32_0 : i32, i32
  }
  func.func @transform_11(%arg0: i32) -> (i32, i32) {
    %c0_i32 = arith.constant 0 : i32
    %c0_i32_0 = arith.constant 0 : i32
    %c0_i32_1 = arith.constant 0 : i32
    return %c0_i32, %c0_i32_0 : i32, i32
  }
  func.func @transform_12(%arg0: i32) -> (i32, i32) {
    %c0_i32 = arith.constant 0 : i32
    %c0_i32_0 = arith.constant 0 : i32
    %c0_i32_1 = arith.constant 0 : i32
    return %c0_i32, %c0_i32_0 : i32, i32
  }
  func.func @transform_13(%arg0: i32) -> (i32, i32) {
    %c0_i32 = arith.constant 0 : i32
    %c0_i32_0 = arith.constant 0 : i32
    %c0_i32_1 = arith.constant 0 : i32
    return %c0_i32, %c0_i32_0 : i32, i32
  }
  func.func @transform_14(%arg0: i32) -> (i32, i32) {
    %c0_i32 = arith.constant 0 : i32
    %c0_i32_0 = arith.constant 0 : i32
    %c0_i32_1 = arith.constant 0 : i32
    return %c0_i32, %c0_i32_0 : i32, i32
  }
  func.func @transform_15(%arg0: i32) -> (i32, i32) {
    %c0_i32 = arith.constant 0 : i32
    %c0_i32_0 = arith.constant 0 : i32
    %c0_i32_1 = arith.constant 0 : i32
    return %c0_i32, %c0_i32_0 : i32, i32
  }
  func.func @transform_16(%arg0: i32) -> (i32, i32) {
    %c0_i32 = arith.constant 0 : i32
    %c0_i32_0 = arith.constant 0 : i32
    %c0_i32_1 = arith.constant 0 : i32
    return %c0_i32, %c0_i32_0 : i32, i32
  }
  func.func @transform_17(%arg0: i32) -> (i32, i32) {
    %c0_i32 = arith.constant 0 : i32
    %c0_i32_0 = arith.constant 0 : i32
    %c0_i32_1 = arith.constant 0 : i32
    return %c0_i32, %c0_i32_0 : i32, i32
  }
  func.func @transform_18(%arg0: i32) -> (i32, i32, i32) {
    %c0_i32 = arith.constant 0 : i32
    %c0_i32_0 = arith.constant 0 : i32
    %c0_i32_1 = arith.constant 0 : i32
    return %arg0, %c0_i32, %c0_i32_0 : i32, i32, i32
  }
  func.func @transform_19(%arg0: i32) -> (i32, i32, i32, i32) {
    %c0_i32 = arith.constant 0 : i32
    %c0_i32_0 = arith.constant 0 : i32
    %c0_i32_1 = arith.constant 0 : i32
    %c0_i32_2 = arith.constant 0 : i32
    return %arg0, %c0_i32, %c0_i32_0, %c0_i32_1 : i32, i32, i32, i32
  }
  func.func @transform_20(%arg0: i32) -> (i32, i32, i32) {
    %c0_i32 = arith.constant 0 : i32
    %c0_i32_0 = arith.constant 0 : i32
    %c0_i32_1 = arith.constant 0 : i32
    return %arg0, %c0_i32, %c0_i32_0 : i32, i32, i32
  }
}

</mosaic_0001>

<llo_original>
// kernel: tpu_custom_call.1
$region0: #{tpu_custom_call.1}
  #allocation0 [shape = 'u32[]', space=smem, size = 0x4, offset = 0x4, fixed_abs, tag = 'smem constant byte address 0x4 - core index']
  #allocation1 [shape = 'u32[144,128]{1,0:T(1,128)}', space=vmem, size = 0x12000, scoped, tag = 'internal scratch']
  #allocation2 [shape = 'f32[32,32]{1,0:T(8,128)}', space=vmem, size = 0x4000, scoped, tag = 'scratch operand']
  #allocation3 [shape = 'f32[1,1]{1,0:T(1,128)S(1)}', space=vmem, size = 0x200, scoped, tag = 'scoped memory for tpu_custom_call.1']
  %s0 = inlined_call_operand.hbm [shape: f32[2,32,32], index: 0, kind: input, shape index: {}]
  %s1 = inlined_call_operand.hbm [shape: f32[2,32,32], index: 1, kind: input, shape index: {}]
  %s2 = inlined_call_operand.hbm [shape: f32[2,32,32], index: 2, kind: input, shape index: {}]
  %s3 = inlined_call_operand.hbm [shape: f32[16,32], index: 3, kind: input, shape index: {}]
  %s4 = inlined_call_operand.hbm [shape: f32[16,32], index: 4, kind: input, shape index: {}]
  %s5 = inlined_call_operand.vmem [shape: f32[32,32], index: 5, kind: input, shape index: {}]
  %s6 = inlined_call_operand.vmem [shape: f32[1,32], index: 6, kind: input, shape index: {}]
  %s7 = inlined_call_operand.hbm [shape: f32[32,32], index: 7, kind: input, shape index: {}]
  %s8 = inlined_call_operand.vmem [shape: f32[1,32], index: 8, kind: input, shape index: {}]
  %s9 = inlined_call_operand.hbm [shape: f32[32,32], index: 9, kind: input, shape index: {}]
  %s10 = inlined_call_operand.hbm [shape: f32[32,32], index: 10, kind: input, shape index: {}]
  %s11 = inlined_call_operand.vmem [shape: f32[1,32], index: 11, kind: input, shape index: {}]
  %s12 = inlined_call_operand.hbm [shape: f32[32,32], index: 12, kind: input, shape index: {}]
  %s13 = inlined_call_operand.hbm [shape: f32[32,32], index: 13, kind: input, shape index: {}]
  %s14 = inlined_call_operand.vmem [shape: f32[32,1], index: 14, kind: input, shape index: {}]
  %s15 = inlined_call_operand.vmem [shape: f32[1,32], index: 15, kind: input, shape index: {}]
  %s16 = inlined_call_operand.vmem [shape: f32[1,32], index: 16, kind: input, shape index: {}]
  %s17 = inlined_call_operand.<no memory space> [shape: f32[1,1], index: 17, kind: input, shape index: {}]
  %s18 = inlined_call_operand.vmem [shape: f32[2,32,1], index: 18, kind: output, shape index: {0}]
  %s19 = inlined_call_operand.vmem [shape: f32[2,33,16,32], index: 19, kind: output, shape index: {1}]
  %s20 = inlined_call_operand.hbm [shape: f32[2,16,32], index: 20, kind: output, shape index: {2}]
  %21 = xla_tuple %s18, %s19, %s20
  %s22 = sld [smem:[#allocation0]]
  $region161: #{tpu_custom_call.1} parent=0
    _
  %s24 = ssub.s32 1, %s22
  %s25 = scalar_select 0, %s24, %s22
  %v26 = vstv %s17
  %27 = vst [vmem:[#allocation3] sm:$0x1] %v26
  $region1: #{tpu_custom_call.1} parent=0
    #allocation4 [shape = 'u8[32768]{0}', space=vmem, size = 0x8000, scoped, tag = 'input window, operand 0']
    #allocation5 [shape = 's32[2]{0}', space=sflag, size = 0x8, scoped, tag = 'scoped memory for tpu_custom_call.1']
    #allocation6 [shape = 's32[2]{0}', space=sflag, size = 0x8, scoped, tag = 'scoped memory for tpu_custom_call.1']
    #allocation7 [shape = 'u8[32768]{0}', space=vmem, size = 0x8000, scoped, tag = 'input window, operand 1']
    #allocation8 [shape = 's32[2]{0}', space=sflag, size = 0x8, scoped, tag = 'scoped memory for tpu_custom_call.1']
    #allocation9 [shape = 'u8[32768]{0}', space=vmem, size = 0x8000, scoped, tag = 'input window, operand 2']
    #allocation10 [shape = 'u8[8192]{0}', space=vmem, size = 0x2000, scoped, tag = 'input window, operand 3, single buffered']
    #allocation11 [shape = 's32[1]{0}', space=sflag, size = 0x4, scoped, tag = 'scoped memory for tpu_custom_call.1']
    #allocation12 [shape = 'u8[8192]{0}', space=vmem, size = 0x2000, scoped, tag = 'input window, operand 4, single buffered']
    #allocation13 [shape = 'u8[16384]{0}', space=vmem, size = 0x4000, scoped, tag = 'input window, operand 7, single buffered']
    #allocation14 [shape = 's32[1]{0}', space=sflag, size = 0x4, scoped, tag = 'scoped memory for tpu_custom_call.1']
    #allocation15 [shape = 'u8[16384]{0}', space=vmem, size = 0x4000, scoped, tag = 'input window, operand 9, single buffered']
    #allocation16 [shape = 'u8[16384]{0}', space=vmem, size = 0x4000, scoped, tag = 'input window, operand 10, single buffered']
    #allocation17 [shape = 's32[1]{0}', space=sflag, size = 0x4, scoped, tag = 'scoped memory for tpu_custom_call.1']
    #allocation18 [shape = 'u8[16384]{0}', space=vmem, size = 0x4000, scoped, tag = 'input window, operand 12, single buffered']
    #allocation19 [shape = 'u8[16384]{0}', space=vmem, size = 0x4000, scoped, tag = 'input window, operand 13, single buffered']
    #allocation20 [shape = 's32[1]{0}', space=sflag, size = 0x4, scoped, tag = 'scoped memory for tpu_custom_call.1']
    #allocation21 [shape = 'u8[16384]{0}', space=vmem, size = 0x4000, scoped, tag = 'output window, operand 2']
    %28 = vsyncpa [#allocation5], 0
    %s29 = scalar_lea.sflag [#allocation5], 1
    %30 = vsyncpa %s29, 0
    %31 = vsyncpa [#allocation8], 0
    %s32 = scalar_lea.sflag [#allocation8], 1
    %33 = vsyncpa %s32, 0
    %34 = vsyncpa [#allocation11], 0
    %35 = vsyncpa [#allocation14], 0
    %36 = vsyncpa [#allocation17], 0
    %37 = vsyncpa [#allocation20], 0
    %38 = vsyncpa [#allocation6], 0
    %s39 = scalar_lea.sflag [#allocation6], 1
    %40 = vsyncpa %s39, 0
    loop: start=0, step=1, limit=4
    $region2: #{tpu_custom_call.1} parent=1 // loop_pre_header
      _
    $region3: #{tpu_custom_call.1} parent=1 // loop_header
      %s42 = sphi 0, %s46
      %p43 = scmp.ge.s32.totalorder %s42, 4
      %s52 = sphi 0, %s54
      %s55 = sphi 0, %s52
      %s56 = sphi 0, %s55
      %s72 = sphi 0, %s56
      %s78 = sphi 0, %s80
      %s81 = sphi 0, %s78
      %s82 = sphi 0, %s81
      %s98 = sphi 0, %s82
      %s104 = sphi 0, %s106
      %s107 = sphi 0, %s104
      %s108 = sphi 0, %s107
      %s124 = sphi 0, %s108
      %s128 = sphi 0, %s128
      %s130 = sphi 0, %s128
      %s131 = sphi 0, %s130
      %s145 = sphi 0, %s131
      %s149 = sphi 0, %s149
      %s151 = sphi 0, %s149
      %s152 = sphi 0, %s151
      %s166 = sphi 0, %s152
      %s170 = sphi 0, %s170
      %s172 = sphi 0, %s170
      %s173 = sphi 0, %s172
      %s187 = sphi 0, %s173
      %s191 = sphi 0, %s191
      %s193 = sphi 0, %s191
      %s194 = sphi 0, %s193
      %s208 = sphi 0, %s194
      %s212 = sphi 0, %s212
      %s214 = sphi 0, %s212
      %s215 = sphi 0, %s214
      %s229 = sphi 0, %s215
      %s233 = sphi 0, %s233
      %s235 = sphi 0, %s233
      %s236 = sphi 0, %s235
      %s250 = sphi 0, %s236
      %s254 = sphi 0, %s254
      %s256 = sphi 0, %s254
      %s257 = sphi 0, %s256
      %s271 = sphi 0, %s257
      %s275 = sphi 0, %s275
      %s277 = sphi 0, %s275
      %s278 = sphi 0, %s277
      %s292 = sphi 0, %s278
      %s296 = sphi 0, %s296
      %s298 = sphi 0, %s296
      %s299 = sphi 0, %s298
      %s313 = sphi 0, %s299
      %s317 = sphi 0, %s317
      %s319 = sphi 0, %s317
      %s320 = sphi 0, %s319
      %s334 = sphi 0, %s320
      %s338 = sphi 0, %s338
      %s340 = sphi 0, %s338
      %s341 = sphi 0, %s340
      %s355 = sphi 0, %s341
      %s359 = sphi 0, %s359
      %s361 = sphi 0, %s359
      %s362 = sphi 0, %s361
      %s376 = sphi 0, %s362
      %s380 = sphi 0, %s380
      %s382 = sphi 0, %s380
      %s383 = sphi 0, %s382
      %s397 = sphi 0, %s383
      %s401 = sphi 0, %s401
      %s403 = sphi 0, %s401
      %s404 = sphi 0, %s403
      %s418 = sphi 0, %s404
      %s422 = sphi 0, %s422
      %s424 = sphi 0, %s422
      %s425 = sphi 0, %s424
      %s439 = sphi 0, %s425
      %s445 = sphi 0, %s447
      %s448 = sphi 0, %s445
      %s449 = sphi 0, %s448
      %s465 = sphi 0, %s449
      %s471 = sphi 0, %s473
      %s474 = sphi 0, %s471
      %s475 = sphi 0, %s474
      %s491 = sphi 0, %s475
      %s497 = sphi 0, %s499
      %s500 = sphi 0, %s497
      %s501 = sphi 0, %s500
      %s517 = sphi 0, %s501
    $region4: #{tpu_custom_call.1} parent=1 // loop_header_branch
      %45 = sbr.rel (%p43) target = $region8
    $region5: #{tpu_custom_call.1} parent=1 // loop_body
      %s47 = ssub.s32 %s42, 1
      %s48 = ssub.s32 %s42, 2
      %s49 = sadd.s32 %s42, 1
      %s50 = ssub.s32 %s42, %s49
      %p51 = scmp.eq.s32.totalorder %s50, 0
      %s53 = sadd.s32 %s52, 1
      %s54 = scalar_select %p51, %s52, %s53
      %p57 = pneg %p51
      %p58 = scmp.eq.s32.totalorder %s42, 1
      %p59 = por %p57, %p58
      %p60 = scmp.ne.s32.totalorder %s52, %s55
      %p61 = scmp.eq.s32.totalorder %s42, 0
      %p62 = por %p60, %p61
      %p63 = scmp.ne.s32.totalorder %s52, %s55
      %p64 = scmp.eq.s32.totalorder %s47, 1
      %p65 = por %p63, %p64
      %p66 = scmp.ne.s32.totalorder %s55, %s56
      %p67 = scmp.eq.s32.totalorder %s47, 0
      %p68 = por %p66, %p67
      %p69 = scmp.ne.s32.totalorder %s55, %s56
      %p70 = scmp.eq.s32.totalorder %s48, 1
      %p71 = por %p69, %p70
      %p73 = scmp.ne.s32.totalorder %s56, %s72
      %p74 = scmp.eq.s32.totalorder %s48, 0
      %p75 = por %p73, %p74
      %s76 = ssub.s32 %s42, %s49
      %p77 = scmp.eq.s32.totalorder %s76, 0
      %s79 = sadd.s32 %s78, 1
      %s80 = scalar_select %p77, %s78, %s79
      %p83 = pneg %p77
      %p84 = scmp.eq.s32.totalorder %s42, 1
      %p85 = por %p83, %p84
      %p86 = scmp.ne.s32.totalorder %s78, %s81
      %p87 = scmp.eq.s32.totalorder %s42, 0
      %p88 = por %p86, %p87
      %p89 = scmp.ne.s32.totalorder %s78, %s81
      %p90 = scmp.eq.s32.totalorder %s47, 1
      %p91 = por %p89, %p90
      %p92 = scmp.ne.s32.totalorder %s81, %s82
      %p93 = scmp.eq.s32.totalorder %s47, 0
      %p94 = por %p92, %p93
      %p95 = scmp.ne.s32.totalorder %s81, %s82
      %p96 = scmp.eq.s32.totalorder %s48, 1
      %p97 = por %p95, %p96
      %p99 = scmp.ne.s32.totalorder %s82, %s98
      %p100 = scmp.eq.s32.totalorder %s48, 0
      %p101 = por %p99, %p100
      %s102 = ssub.s32 %s42, %s49
      %p103 = scmp.eq.s32.totalorder %s102, 0
      %s105 = sadd.s32 %s104, 1
      %s106 = scalar_select %p103, %s104, %s105
      %p109 = pneg %p103
      %p110 = scmp.eq.s32.totalorder %s42, 1
      %p111 = por %p109, %p110
      %p112 = scmp.ne.s32.totalorder %s104, %s107
      %p113 = scmp.eq.s32.totalorder %s42, 0
      %p114 = por %p112, %p113
      %p115 = scmp.ne.s32.totalorder %s104, %s107
      %p116 = scmp.eq.s32.totalorder %s47, 1
      %p117 = por %p115, %p116
      %p118 = scmp.ne.s32.totalorder %s107, %s108
      %p119 = scmp.eq.s32.totalorder %s47, 0
      %p120 = por %p118, %p119
      %p121 = scmp.ne.s32.totalorder %s107, %s108
      %p122 = scmp.eq.s32.totalorder %s48, 1
      %p123 = por %p121, %p122
      %p125 = scmp.ne.s32.totalorder %s108, %s124
      %p126 = scmp.eq.s32.totalorder %s48, 0
      %p127 = por %p125, %p126
      %s129 = sadd.s32 %s128, 1
      %p132 = scmp.eq.s32.totalorder %s42, 1
      %p133 = scmp.ne.s32.totalorder %s128, %s130
      %p134 = scmp.eq.s32.totalorder %s42, 0
      %p135 = por %p133, %p134
      %p136 = scmp.ne.s32.totalorder %s128, %s130
      %p137 = scmp.eq.s32.totalorder %s47, 1
      %p138 = por %p136, %p137
      %p139 = scmp.ne.s32.totalorder %s130, %s131
      %p140 = scmp.eq.s32.totalorder %s47, 0
      %p141 = por %p139, %p140
      %p142 = scmp.ne.s32.totalorder %s130, %s131
      %p143 = scmp.eq.s32.totalorder %s48, 1
      %p144 = por %p142, %p143
      %p146 = scmp.ne.s32.totalorder %s131, %s145
      %p147 = scmp.eq.s32.totalorder %s48, 0
      %p148 = por %p146, %p147
      %s150 = sadd.s32 %s149, 1
      %p153 = scmp.eq.s32.totalorder %s42, 1
      %p154 = scmp.ne.s32.totalorder %s149, %s151
      %p155 = scmp.eq.s32.totalorder %s42, 0
      %p156 = por %p154, %p155
      %p157 = scmp.ne.s32.totalorder %s149, %s151
      %p158 = scmp.eq.s32.totalorder %s47, 1
      %p159 = por %p157, %p158
      %p160 = scmp.ne.s32.totalorder %s151, %s152
      %p161 = scmp.eq.s32.totalorder %s47, 0
      %p162 = por %p160, %p161
      %p163 = scmp.ne.s32.totalorder %s151, %s152
      %p164 = scmp.eq.s32.totalorder %s48, 1
      %p165 = por %p163, %p164
      %p167 = scmp.ne.s32.totalorder %s152, %s166
      %p168 = scmp.eq.s32.totalorder %s48, 0
      %p169 = por %p167, %p168
      %s171 = sadd.s32 %s170, 1
      %p174 = scmp.eq.s32.totalorder %s42, 1
      %p175 = scmp.ne.s32.totalorder %s170, %s172
      %p176 = scmp.eq.s32.totalorder %s42, 0
      %p177 = por %p175, %p176
      %p178 = scmp.ne.s32.totalorder %s170, %s172
      %p179 = scmp.eq.s32.totalorder %s47, 1
      %p180 = por %p178, %p179
      %p181 = scmp.ne.s32.totalorder %s172, %s173
      %p182 = scmp.eq.s32.totalorder %s47, 0
      %p183 = por %p181, %p182
      %p184 = scmp.ne.s32.totalorder %s172, %s173
      %p185 = scmp.eq.s32.totalorder %s48, 1
      %p186 = por %p184, %p185
      %p188 = scmp.ne.s32.totalorder %s173, %s187
      %p189 = scmp.eq.s32.totalorder %s48, 0
      %p190 = por %p188, %p189
      %s192 = sadd.s32 %s191, 1
      %p195 = scmp.eq.s32.totalorder %s42, 1
      %p196 = scmp.ne.s32.totalorder %s191, %s193
      %p197 = scmp.eq.s32.totalorder %s42, 0
      %p198 = por %p196, %p197
      %p199 = scmp.ne.s32.totalorder %s191, %s193
      %p200 = scmp.eq.s32.totalorder %s47, 1
      %p201 = por %p199, %p200
      %p202 = scmp.ne.s32.totalorder %s193, %s194
      %p203 = scmp.eq.s32.totalorder %s47, 0
      %p204 = por %p202, %p203
      %p205 = scmp.ne.s32.totalorder %s193, %s194
      %p206 = scmp.eq.s32.totalorder %s48, 1
      %p207 = por %p205, %p206
      %p209 = scmp.ne.s32.totalorder %s194, %s208
      %p210 = scmp.eq.s32.totalorder %s48, 0
      %p211 = por %p209, %p210
      %s213 = sadd.s32 %s212, 1
      %p216 = scmp.eq.s32.totalorder %s42, 1
      %p217 = scmp.ne.s32.totalorder %s212, %s214
      %p218 = scmp.eq.s32.totalorder %s42, 0
      %p219 = por %p217, %p218
      %p220 = scmp.ne.s32.totalorder %s212, %s214
      %p221 = scmp.eq.s32.totalorder %s47, 1
      %p222 = por %p220, %p221
      %p223 = scmp.ne.s32.totalorder %s214, %s215
      %p224 = scmp.eq.s32.totalorder %s47, 0
      %p225 = por %p223, %p224
      %p226 = scmp.ne.s32.totalorder %s214, %s215
      %p227 = scmp.eq.s32.totalorder %s48, 1
      %p228 = por %p226, %p227
      %p230 = scmp.ne.s32.totalorder %s215, %s229
      %p231 = scmp.eq.s32.totalorder %s48, 0
      %p232 = por %p230, %p231
      %s234 = sadd.s32 %s233, 1
      %p237 = scmp.eq.s32.totalorder %s42, 1
      %p238 = scmp.ne.s32.totalorder %s233, %s235
      %p239 = scmp.eq.s32.totalorder %s42, 0
      %p240 = por %p238, %p239
      %p241 = scmp.ne.s32.totalorder %s233, %s235
      %p242 = scmp.eq.s32.totalorder %s47, 1
      %p243 = por %p241, %p242
      %p244 = scmp.ne.s32.totalorder %s235, %s236
      %p245 = scmp.eq.s32.totalorder %s47, 0
      %p246 = por %p244, %p245
      %p247 = scmp.ne.s32.totalorder %s235, %s236
      %p248 = scmp.eq.s32.totalorder %s48, 1
      %p249 = por %p247, %p248
      %p251 = scmp.ne.s32.totalorder %s236, %s250
      %p252 = scmp.eq.s32.totalorder %s48, 0
      %p253 = por %p251, %p252
      %s255 = sadd.s32 %s254, 1
      %p258 = scmp.eq.s32.totalorder %s42, 1
      %p259 = scmp.ne.s32.totalorder %s254, %s256
      %p260 = scmp.eq.s32.totalorder %s42, 0
      %p261 = por %p259, %p260
      %p262 = scmp.ne.s32.totalorder %s254, %s256
      %p263 = scmp.eq.s32.totalorder %s47, 1
      %p264 = por %p262, %p263
      %p265 = scmp.ne.s32.totalorder %s256, %s257
      %p266 = scmp.eq.s32.totalorder %s47, 0
      %p267 = por %p265, %p266
      %p268 = scmp.ne.s32.totalorder %s256, %s257
      %p269 = scmp.eq.s32.totalorder %s48, 1
      %p270 = por %p268, %p269
      %p272 = scmp.ne.s32.totalorder %s257, %s271
      %p273 = scmp.eq.s32.totalorder %s48, 0
      %p274 = por %p272, %p273
      %s276 = sadd.s32 %s275, 1
      %p279 = scmp.eq.s32.totalorder %s42, 1
      %p280 = scmp.ne.s32.totalorder %s275, %s277
      %p281 = scmp.eq.s32.totalorder %s42, 0
      %p282 = por %p280, %p281
      %p283 = scmp.ne.s32.totalorder %s275, %s277
      %p284 = scmp.eq.s32.totalorder %s47, 1
      %p285 = por %p283, %p284
      %p286 = scmp.ne.s32.totalorder %s277, %s278
      %p287 = scmp.eq.s32.totalorder %s47, 0
      %p288 = por %p286, %p287
      %p289 = scmp.ne.s32.totalorder %s277, %s278
      %p290 = scmp.eq.s32.totalorder %s48, 1
      %p291 = por %p289, %p290
      %p293 = scmp.ne.s32.totalorder %s278, %s292
      %p294 = scmp.eq.s32.totalorder %s48, 0
      %p295 = por %p293, %p294
      %s297 = sadd.s32 %s296, 1
      %p300 = scmp.eq.s32.totalorder %s42, 1
      %p301 = scmp.ne.s32.totalorder %s296, %s298
      %p302 = scmp.eq.s32.totalorder %s42, 0
      %p303 = por %p301, %p302
      %p304 = scmp.ne.s32.totalorder %s296, %s298
      %p305 = scmp.eq.s32.totalorder %s47, 1
      %p306 = por %p304, %p305
      %p307 = scmp.ne.s32.totalorder %s298, %s299
      %p308 = scmp.eq.s32.totalorder %s47, 0
      %p309 = por %p307, %p308
      %p310 = scmp.ne.s32.totalorder %s298, %s299
      %p311 = scmp.eq.s32.totalorder %s48, 1
      %p312 = por %p310, %p311
      %p314 = scmp.ne.s32.totalorder %s299, %s313
      %p315 = scmp.eq.s32.totalorder %s48, 0
      %p316 = por %p314, %p315
      %s318 = sadd.s32 %s317, 1
      %p321 = scmp.eq.s32.totalorder %s42, 1
      %p322 = scmp.ne.s32.totalorder %s317, %s319
      %p323 = scmp.eq.s32.totalorder %s42, 0
      %p324 = por %p322, %p323
      %p325 = scmp.ne.s32.totalorder %s317, %s319
      %p326 = scmp.eq.s32.totalorder %s47, 1
      %p327 = por %p325, %p326
      %p328 = scmp.ne.s32.totalorder %s319, %s320
      %p329 = scmp.eq.s32.totalorder %s47, 0
      %p330 = por %p328, %p329
      %p331 = scmp.ne.s32.totalorder %s319, %s320
      %p332 = scmp.eq.s32.totalorder %s48, 1
      %p333 = por %p331, %p332
      %p335 = scmp.ne.s32.totalorder %s320, %s334
      %p336 = scmp.eq.s32.totalorder %s48, 0
      %p337 = por %p335, %p336
      %s339 = sadd.s32 %s338, 1
      %p342 = scmp.eq.s32.totalorder %s42, 1
      %p343 = scmp.ne.s32.totalorder %s338, %s340
      %p344 = scmp.eq.s32.totalorder %s42, 0
      %p345 = por %p343, %p344
      %p346 = scmp.ne.s32.totalorder %s338, %s340
      %p347 = scmp.eq.s32.totalorder %s47, 1
      %p348 = por %p346, %p347
      %p349 = scmp.ne.s32.totalorder %s340, %s341
      %p350 = scmp.eq.s32.totalorder %s47, 0
      %p351 = por %p349, %p350
      %p352 = scmp.ne.s32.totalorder %s340, %s341
      %p353 = scmp.eq.s32.totalorder %s48, 1
      %p354 = por %p352, %p353
      %p356 = scmp.ne.s32.totalorder %s341, %s355
      %p357 = scmp.eq.s32.totalorder %s48, 0
      %p358 = por %p356, %p357
      %s360 = sadd.s32 %s359, 1
      %p363 = scmp.eq.s32.totalorder %s42, 1
      %p364 = scmp.ne.s32.totalorder %s359, %s361
      %p365 = scmp.eq.s32.totalorder %s42, 0
      %p366 = por %p364, %p365
      %p367 = scmp.ne.s32.totalorder %s359, %s361
      %p368 = scmp.eq.s32.totalorder %s47, 1
      %p369 = por %p367, %p368
      %p370 = scmp.ne.s32.totalorder %s361, %s362
      %p371 = scmp.eq.s32.totalorder %s47, 0
      %p372 = por %p370, %p371
      %p373 = scmp.ne.s32.totalorder %s361, %s362
      %p374 = scmp.eq.s32.totalorder %s48, 1
      %p375 = por %p373, %p374
      %p377 = scmp.ne.s32.totalorder %s362, %s376
      %p378 = scmp.eq.s32.totalorder %s48, 0
      %p379 = por %p377, %p378
      %s381 = sadd.s32 %s380, 1
      %p384 = scmp.eq.s32.totalorder %s42, 1
      %p385 = scmp.ne.s32.totalorder %s380, %s382
      %p386 = scmp.eq.s32.totalorder %s42, 0
      %p387 = por %p385, %p386
      %p388 = scmp.ne.s32.totalorder %s380, %s382
      %p389 = scmp.eq.s32.totalorder %s47, 1
      %p390 = por %p388, %p389
      %p391 = scmp.ne.s32.totalorder %s382, %s383
      %p392 = scmp.eq.s32.totalorder %s47, 0
      %p393 = por %p391, %p392
      %p394 = scmp.ne.s32.totalorder %s382, %s383
      %p395 = scmp.eq.s32.totalorder %s48, 1
      %p396 = por %p394, %p395
      %p398 = scmp.ne.s32.totalorder %s383, %s397
      %p399 = scmp.eq.s32.totalorder %s48, 0
      %p400 = por %p398, %p399
      %s402 = sadd.s32 %s401, 1
      %p405 = scmp.eq.s32.totalorder %s42, 1
      %p406 = scmp.ne.s32.totalorder %s401, %s403
      %p407 = scmp.eq.s32.totalorder %s42, 0
      %p408 = por %p406, %p407
      %p409 = scmp.ne.s32.totalorder %s401, %s403
      %p410 = scmp.eq.s32.totalorder %s47, 1
      %p411 = por %p409, %p410
      %p412 = scmp.ne.s32.totalorder %s403, %s404
      %p413 = scmp.eq.s32.totalorder %s47, 0
      %p414 = por %p412, %p413
      %p415 = scmp.ne.s32.totalorder %s403, %s404
      %p416 = scmp.eq.s32.totalorder %s48, 1
      %p417 = por %p415, %p416
      %p419 = scmp.ne.s32.totalorder %s404, %s418
      %p420 = scmp.eq.s32.totalorder %s48, 0
      %p421 = por %p419, %p420
      %s423 = sadd.s32 %s422, 1
      %p426 = scmp.eq.s32.totalorder %s42, 1
      %p427 = scmp.ne.s32.totalorder %s422, %s424
      %p428 = scmp.eq.s32.totalorder %s42, 0
      %p429 = por %p427, %p428
      %p430 = scmp.ne.s32.totalorder %s422, %s424
      %p431 = scmp.eq.s32.totalorder %s47, 1
      %p432 = por %p430, %p431
      %p433 = scmp.ne.s32.totalorder %s424, %s425
      %p434 = scmp.eq.s32.totalorder %s47, 0
      %p435 = por %p433, %p434
      %p436 = scmp.ne.s32.totalorder %s424, %s425
      %p437 = scmp.eq.s32.totalorder %s48, 1
      %p438 = por %p436, %p437
      %p440 = scmp.ne.s32.totalorder %s425, %s439
      %p441 = scmp.eq.s32.totalorder %s48, 0
      %p442 = por %p440, %p441
      %s443 = ssub.s32 %s42, %s49
      %p444 = scmp.eq.s32.totalorder %s443, 0
      %s446 = sadd.s32 %s445, 1
      %s447 = scalar_select %p444, %s445, %s446
      %p450 = pneg %p444
      %p451 = scmp.eq.s32.totalorder %s42, 1
      %p452 = por %p450, %p451
      %p453 = scmp.ne.s32.totalorder %s445, %s448
      %p454 = scmp.eq.s32.totalorder %s42, 0
      %p455 = por %p453, %p454
      %p456 = scmp.ne.s32.totalorder %s445, %s448
      %p457 = scmp.eq.s32.totalorder %s47, 1
      %p458 = por %p456, %p457
      %p459 = scmp.ne.s32.totalorder %s448, %s449
      %p460 = scmp.eq.s32.totalorder %s47, 0
      %p461 = por %p459, %p460
      %p462 = scmp.ne.s32.totalorder %s448, %s449
      %p463 = scmp.eq.s32.totalorder %s48, 1
      %p464 = por %p462, %p463
      %p466 = scmp.ne.s32.totalorder %s449, %s465
      %p467 = scmp.eq.s32.totalorder %s48, 0
      %p468 = por %p466, %p467
      %s469 = ssub.s32 %s42, %s49
      %p470 = scmp.eq.s32.totalorder %s469, 0
      %s472 = sadd.s32 %s471, 1
      %s473 = scalar_select %p470, %s471, %s472
      %p476 = pneg %p470
      %p477 = scmp.eq.s32.totalorder %s42, 1
      %p478 = por %p476, %p477
      %p479 = scmp.ne.s32.totalorder %s471, %s474
      %p480 = scmp.eq.s32.totalorder %s42, 0
      %p481 = por %p479, %p480
      %p482 = scmp.ne.s32.totalorder %s471, %s474
      %p483 = scmp.eq.s32.totalorder %s47, 1
      %p484 = por %p482, %p483
      %p485 = scmp.ne.s32.totalorder %s474, %s475
      %p486 = scmp.eq.s32.totalorder %s47, 0
      %p487 = por %p485, %p486
      %p488 = scmp.ne.s32.totalorder %s474, %s475
      %p489 = scmp.eq.s32.totalorder %s48, 1
      %p490 = por %p488, %p489
      %p492 = scmp.ne.s32.totalorder %s475, %s491
      %p493 = scmp.eq.s32.totalorder %s48, 0
      %p494 = por %p492, %p493
      %s495 = ssub.s32 %s42, %s49
      %p496 = scmp.eq.s32.totalorder %s495, 0
      %s498 = sadd.s32 %s497, 1
      %s499 = scalar_select %p496, %s497, %s498
      %p502 = pneg %p496
      %p503 = scmp.eq.s32.totalorder %s42, 1
      %p504 = por %p502, %p503
      %p505 = scmp.ne.s32.totalorder %s497, %s500
      %p506 = scmp.eq.s32.totalorder %s42, 0
      %p507 = por %p505, %p506
      %p508 = scmp.ne.s32.totalorder %s497, %s500
      %p509 = scmp.eq.s32.totalorder %s47, 1
      %p510 = por %p508, %p509
      %p511 = scmp.ne.s32.totalorder %s500, %s501
      %p512 = scmp.eq.s32.totalorder %s47, 0
      %p513 = por %p511, %p512
      %p514 = scmp.ne.s32.totalorder %s500, %s501
      %p515 = scmp.eq.s32.totalorder %s48, 1
      %p516 = por %p514, %p515
      %p518 = scmp.ne.s32.totalorder %s501, %s517
      %p519 = scmp.eq.s32.totalorder %s48, 0
      %p520 = por %p518, %p519
      %p521 = scmp.le.s32.totalorder 1, %s42
      %p522 = scmp.lt.s32.totalorder %s42, 3
      %p523 = pnand %p521, %p522
      %p524 = pneg %p523
      // Predicated region
      $region9: #{tpu_custom_call.1} parent=5 // pred_check
        _
      $region10: #{tpu_custom_call.1} parent=5 // pred_check_branch
        %526 = sbr.rel (%p523) target = $region12
      $region11: #{tpu_custom_call.1} parent=5 // pred_region
        %s527 = ssub.s32 %s42, 1
        // Predicated region
        $region13: #{tpu_custom_call.1} parent=11 // pred_check
          %p528 = pneg %p141
        $region14: #{tpu_custom_call.1} parent=11 // pred_check_branch
          %530 = sbr.rel (%p528) target = $region16
        $region15: #{tpu_custom_call.1} parent=11 // pred_region
          %s532 = ssub.s32 256, 256
          %533 = vsyncadd [#allocation11], %s532
          %s534 = sshll.u32 [#allocation10], 4
          %s535 = int_to_ptr.vmem [resolvable:$true] %s534
          %540 = dma.hbm_to_vmem [thread:$0]  %s3, 256, %s535, [#allocation11], 128, 128, 8
        $region16: #{tpu_custom_call.1} parent=11 // pred_fallthru
          _
        // Predicated region
        $region17: #{tpu_custom_call.1} parent=11 // pred_check
          %p541 = pneg %p162
        $region18: #{tpu_custom_call.1} parent=11 // pred_check_branch
          %543 = sbr.rel (%p541) target = $region20
        $region19: #{tpu_custom_call.1} parent=11 // pred_region
          %s545 = ssub.s32 256, 256
          %546 = vsyncadd [#allocation11], %s545
          %s547 = sshll.u32 [#allocation12], 4
          %s548 = int_to_ptr.vmem [resolvable:$true] %s547
          %553 = dma.hbm_to_vmem [thread:$0]  %s4, 256, %s548, [#allocation11], 128, 128, 8
        $region20: #{tpu_custom_call.1} parent=11 // pred_fallthru
          _
        // Predicated region
        $region21: #{tpu_custom_call.1} parent=11 // pred_check
          %p554 = pneg %p183
        $region22: #{tpu_custom_call.1} parent=11 // pred_check_branch
          %556 = sbr.rel (%p554) target = $region24
        $region23: #{tpu_custom_call.1} parent=11 // pred_region
          _
        $region24: #{tpu_custom_call.1} parent=11 // pred_fallthru
          _
        // Predicated region
        $region25: #{tpu_custom_call.1} parent=11 // pred_check
          %p557 = pneg %p204
        $region26: #{tpu_custom_call.1} parent=11 // pred_check_branch
          %559 = sbr.rel (%p557) target = $region28
        $region27: #{tpu_custom_call.1} parent=11 // pred_region
          _
        $region28: #{tpu_custom_call.1} parent=11 // pred_fallthru
          _
        // Predicated region
        $region29: #{tpu_custom_call.1} parent=11 // pred_check
          %p560 = pneg %p225
        $region30: #{tpu_custom_call.1} parent=11 // pred_check_branch
          %562 = sbr.rel (%p560) target = $region32
        $region31: #{tpu_custom_call.1} parent=11 // pred_region
          %s564 = ssub.s32 512, 512
          %565 = vsyncadd [#allocation14], %s564
          %s566 = sshll.u32 [#allocation13], 4
          %s567 = int_to_ptr.vmem [resolvable:$true] %s566
          %572 = dma.hbm_to_vmem [thread:$0]  %s7, 512, %s567, [#allocation14], 128, 128, 8
        $region32: #{tpu_custom_call.1} parent=11 // pred_fallthru
          _
        // Predicated region
        $region33: #{tpu_custom_call.1} parent=11 // pred_check
          %p573 = pneg %p246
        $region34: #{tpu_custom_call.1} parent=11 // pred_check_branch
          %575 = sbr.rel (%p573) target = $region36
        $region35: #{tpu_custom_call.1} parent=11 // pred_region
          _
        $region36: #{tpu_custom_call.1} parent=11 // pred_fallthru
          _
        // Predicated region
        $region37: #{tpu_custom_call.1} parent=11 // pred_check
          %p576 = pneg %p267
        $region38: #{tpu_custom_call.1} parent=11 // pred_check_branch
          %578 = sbr.rel (%p576) target = $region40
        $region39: #{tpu_custom_call.1} parent=11 // pred_region
          %s580 = ssub.s32 512, 512
          %581 = vsyncadd [#allocation14], %s580
          %s582 = sshll.u32 [#allocation15], 4
          %s583 = int_to_ptr.vmem [resolvable:$true] %s582
          %588 = dma.hbm_to_vmem [thread:$0]  %s9, 512, %s583, [#allocation14], 128, 128, 8
        $region40: #{tpu_custom_call.1} parent=11 // pred_fallthru
          _
        // Predicated region
        $region41: #{tpu_custom_call.1} parent=11 // pred_check
          %p589 = pneg %p288
        $region42: #{tpu_custom_call.1} parent=11 // pred_check_branch
          %591 = sbr.rel (%p589) target = $region44
        $region43: #{tpu_custom_call.1} parent=11 // pred_region
          %s593 = ssub.s32 512, 512
          %594 = vsyncadd [#allocation17], %s593
          %s595 = sshll.u32 [#allocation16], 4
          %s596 = int_to_ptr.vmem [resolvable:$true] %s595
          %601 = dma.hbm_to_vmem [thread:$0]  %s10, 512, %s596, [#allocation17], 128, 128, 8
        $region44: #{tpu_custom_call.1} parent=11 // pred_fallthru
          _
        // Predicated region
        $region45: #{tpu_custom_call.1} parent=11 // pred_check
          %p602 = pneg %p309
        $region46: #{tpu_custom_call.1} parent=11 // pred_check_branch
          %604 = sbr.rel (%p602) target = $region48
        $region47: #{tpu_custom_call.1} parent=11 // pred_region
          _
        $region48: #{tpu_custom_call.1} parent=11 // pred_fallthru
          _
        // Predicated region
        $region49: #{tpu_custom_call.1} parent=11 // pred_check
          %p605 = pneg %p330
        $region50: #{tpu_custom_call.1} parent=11 // pred_check_branch
          %607 = sbr.rel (%p605) target = $region52
        $region51: #{tpu_custom_call.1} parent=11 // pred_region
          %s609 = ssub.s32 512, 512
          %610 = vsyncadd [#allocation17], %s609
          %s611 = sshll.u32 [#allocation18], 4
          %s612 = int_to_ptr.vmem [resolvable:$true] %s611
          %617 = dma.hbm_to_vmem [thread:$0]  %s12, 512, %s612, [#allocation17], 128, 128, 8
        $region52: #{tpu_custom_call.1} parent=11 // pred_fallthru
          _
        // Predicated region
        $region53: #{tpu_custom_call.1} parent=11 // pred_check
          %p618 = pneg %p351
        $region54: #{tpu_custom_call.1} parent=11 // pred_check_branch
          %620 = sbr.rel (%p618) target = $region56
        $region55: #{tpu_custom_call.1} parent=11 // pred_region
          %s622 = ssub.s32 512, 512
          %623 = vsyncadd [#allocation20], %s622
          %s624 = sshll.u32 [#allocation19], 4
          %s625 = int_to_ptr.vmem [resolvable:$true] %s624
          %630 = dma.hbm_to_vmem [thread:$0]  %s13, 512, %s625, [#allocation20], 128, 128, 8
        $region56: #{tpu_custom_call.1} parent=11 // pred_fallthru
          _
        // Predicated region
        $region57: #{tpu_custom_call.1} parent=11 // pred_check
          %p631 = pneg %p372
        $region58: #{tpu_custom_call.1} parent=11 // pred_check_branch
          %633 = sbr.rel (%p631) target = $region60
        $region59: #{tpu_custom_call.1} parent=11 // pred_region
          _
        $region60: #{tpu_custom_call.1} parent=11 // pred_fallthru
          _
        // Predicated region
        $region61: #{tpu_custom_call.1} parent=11 // pred_check
          %p634 = pneg %p393
        $region62: #{tpu_custom_call.1} parent=11 // pred_check_branch
          %636 = sbr.rel (%p634) target = $region64
        $region63: #{tpu_custom_call.1} parent=11 // pred_region
          _
        $region64: #{tpu_custom_call.1} parent=11 // pred_fallthru
          _
        // Predicated region
        $region65: #{tpu_custom_call.1} parent=11 // pred_check
          %p637 = pneg %p414
        $region66: #{tpu_custom_call.1} parent=11 // pred_check_branch
          %639 = sbr.rel (%p637) target = $region68
        $region67: #{tpu_custom_call.1} parent=11 // pred_region
          _
        $region68: #{tpu_custom_call.1} parent=11 // pred_fallthru
          _
        // Predicated region
        $region69: #{tpu_custom_call.1} parent=11 // pred_check
          %p640 = pneg %p435
        $region70: #{tpu_custom_call.1} parent=11 // pred_check_branch
          %642 = sbr.rel (%p640) target = $region72
        $region71: #{tpu_custom_call.1} parent=11 // pred_region
          _
        $region72: #{tpu_custom_call.1} parent=11 // pred_fallthru
          _
      $region12: #{tpu_custom_call.1} parent=5 // pred_fallthru
        _
      %p643 = scmp.lt.s32.totalorder %s42, 2
      // Predicated region
      $region73: #{tpu_custom_call.1} parent=5 // pred_check
        %p644 = pneg %p643
      $region74: #{tpu_custom_call.1} parent=5 // pred_check_branch
        %646 = sbr.rel (%p644) target = $region76
      $region75: #{tpu_custom_call.1} parent=5 // pred_region
        // Predicated region
        $region77: #{tpu_custom_call.1} parent=75 // pred_check
          %p647 = pneg %p62
        $region78: #{tpu_custom_call.1} parent=75 // pred_check_branch
          %649 = sbr.rel (%p647) target = $region80
        $region79: #{tpu_custom_call.1} parent=75 // pred_region
          %s650 = sand.u32 %s52, 1
          %s651 = scalar_lea.sflag [#allocation5], %s650
          %s652 = sand.u32 %s52, 1
          %s653 = smul.addr %s652, 32
          %s654 = scalar_lea.vmem [#allocation4], %s653
          %s656 = ssub.s32 512, 512
          %657 = vsyncadd %s651, %s656
          %s658 = smul.addr %s42, 4
          %s659 = smul.addr %s658, 128
          %s660 = scalar_lea.hbm %s0, %s659
          %s661 = sshll.u32 %s654, 4
          %s662 = int_to_ptr.vmem [resolvable:$true] %s661
          %667 = dma.hbm_to_vmem [thread:$0]  %s660, 512, %s662, %s651, 128, 128, 8
        $region80: #{tpu_custom_call.1} parent=75 // pred_fallthru
          _
        // Predicated region
        $region81: #{tpu_custom_call.1} parent=75 // pred_check
          %p668 = pneg %p88
        $region82: #{tpu_custom_call.1} parent=75 // pred_check_branch
          %670 = sbr.rel (%p668) target = $region84
        $region83: #{tpu_custom_call.1} parent=75 // pred_region
          %s671 = sand.u32 %s42, 1
          %s672 = scalar_lea.sflag [#allocation8], %s671
          %s673 = sand.u32 %s78, 1
          %s674 = smul.addr %s673, 32
          %s675 = scalar_lea.vmem [#allocation7], %s674
          %s677 = ssub.s32 512, 512
          %678 = vsyncadd %s672, %s677
          %s679 = smul.addr %s42, 4
          %s680 = smul.addr %s679, 128
          %s681 = scalar_lea.hbm %s1, %s680
          %s682 = sshll.u32 %s675, 4
          %s683 = int_to_ptr.vmem [resolvable:$true] %s682
          %688 = dma.hbm_to_vmem [thread:$0]  %s681, 512, %s683, %s672, 128, 128, 8
        $region84: #{tpu_custom_call.1} parent=75 // pred_fallthru
          _
        // Predicated region
        $region85: #{tpu_custom_call.1} parent=75 // pred_check
          %p689 = pneg %p114
        $region86: #{tpu_custom_call.1} parent=75 // pred_check_branch
          %691 = sbr.rel (%p689) target = $region88
        $region87: #{tpu_custom_call.1} parent=75 // pred_region
          %s692 = sand.u32 %s42, 1
          %s693 = scalar_lea.sflag [#allocation8], %s692
          %s694 = sand.u32 %s104, 1
          %s695 = smul.addr %s694, 32
          %s696 = scalar_lea.vmem [#allocation9], %s695
          %s698 = ssub.s32 512, 512
          %699 = vsyncadd %s693, %s698
          %s700 = smul.addr %s42, 4
          %s701 = smul.addr %s700, 128
          %s702 = scalar_lea.hbm %s2, %s701
          %s703 = sshll.u32 %s696, 4
          %s704 = int_to_ptr.vmem [resolvable:$true] %s703
          %709 = dma.hbm_to_vmem [thread:$0]  %s702, 512, %s704, %s693, 128, 128, 8
        $region88: #{tpu_custom_call.1} parent=75 // pred_fallthru
          _
      $region76: #{tpu_custom_call.1} parent=5 // pred_fallthru
        _
      %p710 = scmp.le.s32.totalorder 1, %s42
      %p711 = scmp.lt.s32.totalorder %s42, 3
      %p712 = pnand %p710, %p711
      %p713 = pneg %p712
      // Predicated region
      $region89: #{tpu_custom_call.1} parent=5 // pred_check
        _
      $region90: #{tpu_custom_call.1} parent=5 // pred_check_branch
        %715 = sbr.rel (%p712) target = $region92
      $region91: #{tpu_custom_call.1} parent=5 // pred_region
        %s716 = ssub.s32 %s42, 1
        %s717 = sand.u32 %s55, 1
        %s718 = scalar_lea.sflag [#allocation5], %s717
        %s719 = sand.u32 %s55, 1
        %s720 = smul.addr %s719, 32
        %s721 = scalar_lea.vmem [#allocation4], %s720
        // Predicated region
        $region93: #{tpu_custom_call.1} parent=91 // pred_check
          %p722 = pneg %p68
        $region94: #{tpu_custom_call.1} parent=91 // pred_check_branch
          %724 = sbr.rel (%p722) target = $region96
        $region95: #{tpu_custom_call.1} parent=91 // pred_region
          %725 = dma.done %s718, 512
        $region96: #{tpu_custom_call.1} parent=91 // pred_fallthru
          _
        %s726 = sand.u32 %s47, 1
        %s727 = scalar_lea.sflag [#allocation8], %s726
        %s728 = sand.u32 %s81, 1
        %s729 = smul.addr %s728, 32
        %s730 = scalar_lea.vmem [#allocation7], %s729
        // Predicated region
        $region97: #{tpu_custom_call.1} parent=91 // pred_check
          %p731 = pneg %p94
        $region98: #{tpu_custom_call.1} parent=91 // pred_check_branch
          %733 = sbr.rel (%p731) target = $region100
        $region99: #{tpu_custom_call.1} parent=91 // pred_region
          %734 = dma.done %s727, 512
        $region100: #{tpu_custom_call.1} parent=91 // pred_fallthru
          _
        %s735 = sand.u32 %s47, 1
        %s736 = scalar_lea.sflag [#allocation8], %s735
        %s737 = sand.u32 %s107, 1
        %s738 = smul.addr %s737, 32
        %s739 = scalar_lea.vmem [#allocation9], %s738
        // Predicated region
        $region101: #{tpu_custom_call.1} parent=91 // pred_check
          %p740 = pneg %p120
        $region102: #{tpu_custom_call.1} parent=91 // pred_check_branch
          %742 = sbr.rel (%p740) target = $region104
        $region103: #{tpu_custom_call.1} parent=91 // pred_region
          %743 = dma.done %s736, 512
        $region104: #{tpu_custom_call.1} parent=91 // pred_fallthru
          _
        // Predicated region
        $region105: #{tpu_custom_call.1} parent=91 // pred_check
          %p744 = pneg %p141
        $region106: #{tpu_custom_call.1} parent=91 // pred_check_branch
          %746 = sbr.rel (%p744) target = $region108
        $region107: #{tpu_custom_call.1} parent=91 // pred_region
          %747 = dma.done [#allocation11], 256
        $region108: #{tpu_custom_call.1} parent=91 // pred_fallthru
          _
        // Predicated region
        $region109: #{tpu_custom_call.1} parent=91 // pred_check
          %p748 = pneg %p162
        $region110: #{tpu_custom_call.1} parent=91 // pred_check_branch
          %750 = sbr.rel (%p748) target = $region112
        $region111: #{tpu_custom_call.1} parent=91 // pred_region
          %751 = dma.done [#allocation11], 256
        $region112: #{tpu_custom_call.1} parent=91 // pred_fallthru
          _
        // Predicated region
        $region113: #{tpu_custom_call.1} parent=91 // pred_check
          %p752 = pneg %p225
        $region114: #{tpu_custom_call.1} parent=91 // pred_check_branch
          %754 = sbr.rel (%p752) target = $region116
        $region115: #{tpu_custom_call.1} parent=91 // pred_region
          %755 = dma.done [#allocation14], 512
        $region116: #{tpu_custom_call.1} parent=91 // pred_fallthru
          _
        // Predicated region
        $region117: #{tpu_custom_call.1} parent=91 // pred_check
          %p756 = pneg %p267
        $region118: #{tpu_custom_call.1} parent=91 // pred_check_branch
          %758 = sbr.rel (%p756) target = $region120
        $region119: #{tpu_custom_call.1} parent=91 // pred_region
          %759 = dma.done [#allocation14], 512
        $region120: #{tpu_custom_call.1} parent=91 // pred_fallthru
          _
        // Predicated region
        $region121: #{tpu_custom_call.1} parent=91 // pred_check
          %p760 = pneg %p288
        $region122: #{tpu_custom_call.1} parent=91 // pred_check_branch
          %762 = sbr.rel (%p760) target = $region124
        $region123: #{tpu_custom_call.1} parent=91 // pred_region
          %763 = dma.done [#allocation17], 512
        $region124: #{tpu_custom_call.1} parent=91 // pred_fallthru
          _
        // Predicated region
        $region125: #{tpu_custom_call.1} parent=91 // pred_check
          %p764 = pneg %p330
        $region126: #{tpu_custom_call.1} parent=91 // pred_check_branch
          %766 = sbr.rel (%p764) target = $region128
        $region127: #{tpu_custom_call.1} parent=91 // pred_region
          %767 = dma.done [#allocation17], 512
        $region128: #{tpu_custom_call.1} parent=91 // pred_fallthru
          _
        // Predicated region
        $region129: #{tpu_custom_call.1} parent=91 // pred_check
          %p768 = pneg %p351
        $region130: #{tpu_custom_call.1} parent=91 // pred_check_branch
          %770 = sbr.rel (%p768) target = $region132
        $region131: #{tpu_custom_call.1} parent=91 // pred_region
          %771 = dma.done [#allocation20], 512
        $region132: #{tpu_custom_call.1} parent=91 // pred_fallthru
          _
        %s772 = sand.u32 %s55, 1
        %s773 = scalar_lea.sflag [#allocation5], %s772
        %s774 = sand.u32 %s55, 1
        %s775 = smul.addr %s774, 32
        %s776 = scalar_lea.vmem [#allocation4], %s775
        %p777 = pneg %p68
        %p778 = pneg %p65
        %s779 = sand.u32 %s47, 1
        %s780 = scalar_lea.sflag [#allocation8], %s779
        %s781 = sand.u32 %s81, 1
        %s782 = smul.addr %s781, 32
        %s783 = scalar_lea.vmem [#allocation7], %s782
        %p784 = pneg %p94
        %p785 = pneg %p91
        %s786 = sand.u32 %s47, 1
        %s787 = scalar_lea.sflag [#allocation8], %s786
        %s788 = sand.u32 %s107, 1
        %s789 = smul.addr %s788, 32
        %s790 = scalar_lea.vmem [#allocation9], %s789
        %p791 = pneg %p120
        %p792 = pneg %p117
        %p793 = pneg %p141
        %p794 = pneg %p138
        %p795 = pneg %p162
        %p796 = pneg %p159
        %p797 = pneg %p183
        %p798 = pneg %p180
        %p799 = pneg %p204
        %p800 = pneg %p201
        %p801 = pneg %p225
        %p802 = pneg %p222
        %p803 = pneg %p246
        %p804 = pneg %p243
        %p805 = pneg %p267
        %p806 = pneg %p264
        %p807 = pneg %p288
        %p808 = pneg %p285
        %p809 = pneg %p309
        %p810 = pneg %p306
        %p811 = pneg %p330
        %p812 = pneg %p327
        %p813 = pneg %p351
        %p814 = pneg %p348
        %p815 = pneg %p372
        %p816 = pneg %p369
        %p817 = pneg %p393
        %p818 = pneg %p390
        %p819 = pneg %p414
        %p820 = pneg %p411
        %p821 = pneg %p435
        %p822 = pneg %p432
        %p823 = pneg %p461
        %p824 = pneg %p458
        %p825 = scmp.lt.s32.totalorder %s47, 1
        %s826 = scalar_select %p825, %s47, 1
        %s827 = smul.addr %s826, 4
        %s828 = smul.addr %s827, 8
        %s829 = scalar_lea.vmem %s18, %s828
        %p830 = pneg %p487
        %p831 = pneg %p484
        %p832 = scmp.lt.s32.totalorder %s47, 1
        %s833 = scalar_select %p832, %s47, 1
        %s834 = smul.addr %s833, 66
        %s835 = smul.addr %s834, 8
        %s836 = scalar_lea.vmem %s19, %s835
        %p837 = pneg %p513
        %p838 = pneg %p510
        %s839 = sand.u32 %s500, 1
        %s840 = scalar_lea.sflag [#allocation6], %s839
        %s841 = sand.u32 %s500, 1
        %s842 = smul.addr %s841, 16
        %s843 = scalar_lea.vmem [#allocation21], %s842
        %p844 = scmp.lt.s32.totalorder %s47, 1
        %s845 = scalar_select %p844, %s47, 1
        %s846 = smul.addr %s845, 4
        %s847 = smul.addr %s846, 8
        %s848 = scalar_lea.vmem %s18, %s847
        %p849 = scmp.lt.s32.totalorder %s47, 1
        %s850 = scalar_select %p849, %s47, 1
        %s851 = smul.addr %s850, 66
        %s852 = smul.addr %s851, 8
        %s853 = scalar_lea.vmem %s19, %s852
        %v854 = vld [vmem:[%s721] sm:$0xff]
        %v855 = vld [vmem:[%s721 + $0x8] sm:$0xff]
        %v856 = vld [vmem:[%s721 + $0x10] sm:$0xff]
        %v857 = vld [vmem:[%s721 + $0x18] sm:$0xff]
        %v858 = vld [vmem:[%s730] sm:$0xff]
        %v859 = vld [vmem:[%s730 + $0x8] sm:$0xff]
        %v860 = vld [vmem:[%s730 + $0x10] sm:$0xff]
        %v861 = vld [vmem:[%s730 + $0x18] sm:$0xff]
        %v862 = vld [vmem:[#allocation10] sm:$0xff]
        %v863 = vld [vmem:[#allocation10 + $0x8] sm:$0xff]
        %vm864 = vcmask 261120
        %v866 = vsel %vm864, %v862, 0
        %v869 = vsel %vm864, %v863, 0
        %v872 = vsel %vm864, %v854, 0
        %v875 = vsel %vm864, %v855, 0
        %v878 = vsel %vm864, %v856, 0
        %v881 = vsel %vm864, %v857, 0
        %883 = vmatprep.subr.mxu0 0.0
        %884 = vmatpush1.xpose.msra.mxu0 0.0
        %885 = vmatprep.subr.mxu0 0.0
        %886 = vmatpush1.xpose.msra.mxu0 0.0
        %887 = vmatprep.subr.mxu0 0.0
        %888 = vmatpush1.xpose.msra.mxu0 0.0
        %889 = vmatprep.subr.mxu0 0.0
        %890 = vmatpush1.xpose.msra.mxu0 0.0
        %891 = vmatprep.subr.mxu0 0.0
        %892 = vmatpush1.xpose.msra.mxu0 0.0
        %893 = vmatprep.subr.mxu0 0.0
        %894 = vmatpush1.xpose.msra.mxu0 0.0
        %895 = vmatprep.subr.mxu0 0.0
        %896 = vmatpush1.xpose.msra.mxu0 0.0
        %897 = vmatprep.subr.mxu0 0.0
        %898 = vmatpush1.xpose.msra.mxu0 0.0
        %899 = vmatprep.subr.mxu0 0.0
        %900 = vmatpush1.xpose.msra.mxu0 0.0
        %901 = vmatprep.subr.mxu0 0.0
        %902 = vmatpush1.xpose.msra.mxu0 0.0
        %903 = vmatprep.subr.mxu0 0.0
        %904 = vmatpush1.xpose.msra.mxu0 0.0
        %905 = vmatprep.subr.mxu0 0.0
        %906 = vmatpush1.xpose.msra.mxu0 0.0
        %907 = vmatprep.subr.mxu0 0.0
        %908 = vmatpush1.xpose.msra.mxu0 %v881
        %909 = vmatprep.subr.mxu0 0.0
        %910 = vmatpush1.xpose.msra.mxu0 %v878
        %911 = vmatprep.subr.mxu0 0.0
        %912 = vmatpush1.xpose.msra.mxu0 %v875
        %913 = vmatprep.subr.mxu0 0.0
        %914 = vmatpush1.xpose.msra.mxu0 %v872
        %915 = vmatprep.subr.mxu0 0.0
        %916 = vmatpush2.xpose.msra.mxu0 0.0
        %917 = vmatprep.subr.mxu0 0.0
        %918 = vmatpush2.xpose.msra.mxu0 0.0
        %919 = vmatprep.subr.mxu0 0.0
        %920 = vmatpush2.xpose.msra.mxu0 0.0
        %921 = vmatprep.subr.mxu0 0.0
        %922 = vmatpush2.xpose.msra.mxu0 0.0
        %923 = vmatprep.subr.mxu0 0.0
        %924 = vmatpush2.xpose.msra.mxu0 0.0
        %925 = vmatprep.subr.mxu0 0.0
        %926 = vmatpush2.xpose.msra.mxu0 0.0
        %927 = vmatprep.subr.mxu0 0.0
        %928 = vmatpush2.xpose.msra.mxu0 0.0
        %929 = vmatprep.subr.mxu0 0.0
        %930 = vmatpush2.xpose.msra.mxu0 0.0
        %931 = vmatprep.subr.mxu0 0.0
        %932 = vmatpush2.xpose.msra.mxu0 0.0
        %933 = vmatprep.subr.mxu0 0.0
        %934 = vmatpush2.xpose.msra.mxu0 0.0
        %935 = vmatprep.subr.mxu0 0.0
        %936 = vmatpush2.xpose.msra.mxu0 0.0
        %937 = vmatprep.subr.mxu0 0.0
        %938 = vmatpush2.xpose.msra.mxu0 0.0
        %939 = vmatprep.subr.mxu0 0.0
        %940 = vmatpush2.xpose.msra.mxu0 0.0
        %941 = vmatprep.subr.mxu0 0.0
        %942 = vmatpush2.xpose.msra.mxu0 0.0
        %943 = vmatprep.subr.mxu0 0.0
        %944 = vmatpush2.xpose.msra.mxu0 0.0
        %945 = vmatprep.subr.mxu0 0.0
        %946 = vmatpush2.xpose.msra.mxu0 0.0
        %947 = vmatprep.mubr.f32.mxu0 0.0
        %948 = vmatmul.mubr.f32.gmra.mxu0 %v866
        %v949 = vpop.f32.mrf.mxu0
        %v950 = vadd.f32 0.0, %v949
        %v951 = vpop.f32.mrf.mxu0
        %952 = vmatprep.mubr.f32.mxu0 0.0
        %953 = vmatmul.mubr.f32.gmra.mxu0 %v869
        %v954 = vpop.f32.mrf.mxu0
        %v955 = vadd.f32 0.0, %v954
        %v956 = vpop.f32.mrf.mxu0
        %957 = vdwg.mxu0
        %v958 = vsel %vm864, %v950, -inf
        %v959 = vsel %vm864, %v955, -inf
        %v960 = vmax.f32 %v958, %v959
        %v961 = vrot.slane %v960, 4
        %v962 = vmax.f32 %v960, %v961
        %v963 = vrot.slane %v962, 2
        %v964 = vmax.f32 %v962, %v963
        %v965 = vrot.slane %v964, 1
        %v966 = vmax.f32 %v964, %v965
        %v967 = vsub.f32 %v950, %v966
        %v968 = vsub.f32 %v955, %v966
        %v969 = vmul.f32 %v967, 1.442695
        %v970 = vpow.pop %v969
        %v971 = vmul.f32 %v968, 1.442695
        %v972 = vpow.pop %v971
        %v973 = vsel %vm864, %v970, 0.0
        %v974 = vsel %vm864, %v972, 0.0
        %v975 = vadd.f32 %v973, %v974
        %v976 = vrot.slane %v975, 4
        %v977 = vadd.f32 %v975, %v976
        %v978 = vrot.slane %v977, 2
        %v979 = vadd.f32 %v977, %v978
        %v980 = vrot.slane %v979, 1
        %v981 = vadd.f32 %v979, %v980
        %v982 = vrcp.pop %v981
        %v983 = vmul.f32 %v970, %v982
        %v984 = vmul.f32 %v972, %v982
        %985 = vst.msk [vmem:[%s843] sm:$0xff] %vm864, %v983
        %986 = vst.msk [vmem:[%s843 + $0x8] sm:$0xff] %vm864, %v984
        %v987 = vld [vmem:[%s5] sm:$0xff]
        %v988 = vld [vmem:[%s5 + $0x8] sm:$0xff]
        %v989 = vld [vmem:[%s5 + $0x10] sm:$0xff]
        %v990 = vld [vmem:[%s5 + $0x18] sm:$0xff]
        %v991 = vld [vmem:[%s6] sm:$0x1]
        %v993 = vlaneseq
        %v994 = vshrl.u32 %v993, 7
        %v995 = vsub.s32 0, %v994
        %v996 = vrot.slane %v991, %v995
        %v999 = vsel %vm864, %v858, 0
        %v1002 = vsel %vm864, %v859, 0
        %v1005 = vsel %vm864, %v860, 0
        %v1008 = vsel %vm864, %v861, 0
        %1010 = vmatprep.subr.mxu0 0.0
        %1011 = vmatpush1.msra.mxu0 0.0
        %1012 = vmatprep.subr.mxu0 0.0
        %1013 = vmatpush1.msra.mxu0 0.0
        %1014 = vmatprep.subr.mxu0 0.0
        %1015 = vmatpush1.msra.mxu0 0.0
        %1016 = vmatprep.subr.mxu0 0.0
        %1017 = vmatpush1.msra.mxu0 0.0
        %1018 = vmatprep.subr.mxu0 0.0
        %1019 = vmatpush1.msra.mxu0 0.0
        %1020 = vmatprep.subr.mxu0 0.0
        %1021 = vmatpush1.msra.mxu0 0.0
        %1022 = vmatprep.subr.mxu0 0.0
        %1023 = vmatpush1.msra.mxu0 0.0
        %1024 = vmatprep.subr.mxu0 0.0
        %1025 = vmatpush1.msra.mxu0 0.0
        %1026 = vmatprep.subr.mxu0 0.0
        %1027 = vmatpush1.msra.mxu0 0.0
        %1028 = vmatprep.subr.mxu0 0.0
        %1029 = vmatpush1.msra.mxu0 0.0
        %1030 = vmatprep.subr.mxu0 0.0
        %1031 = vmatpush1.msra.mxu0 0.0
        %1032 = vmatprep.subr.mxu0 0.0
        %1033 = vmatpush1.msra.mxu0 0.0
        %1034 = vmatprep.subr.mxu0 0.0
        %1035 = vmatpush1.msra.mxu0 %v990
        %1036 = vmatprep.subr.mxu0 0.0
        %1037 = vmatpush1.msra.mxu0 %v989
        %1038 = vmatprep.subr.mxu0 0.0
        %1039 = vmatpush1.msra.mxu0 %v988
        %1040 = vmatprep.subr.mxu0 0.0
        %1041 = vmatpush1.msra.mxu0 %v987
        %1042 = vmatprep.subr.mxu0 0.0
        %1043 = vmatpush2.msra.mxu0 0.0
        %1044 = vmatprep.subr.mxu0 0.0
        %1045 = vmatpush2.msra.mxu0 0.0
        %1046 = vmatprep.subr.mxu0 0.0
        %1047 = vmatpush2.msra.mxu0 0.0
        %1048 = vmatprep.subr.mxu0 0.0
        %1049 = vmatpush2.msra.mxu0 0.0
        %1050 = vmatprep.subr.mxu0 0.0
        %1051 = vmatpush2.msra.mxu0 0.0
        %1052 = vmatprep.subr.mxu0 0.0
        %1053 = vmatpush2.msra.mxu0 0.0
        %1054 = vmatprep.subr.mxu0 0.0
        %1055 = vmatpush2.msra.mxu0 0.0
        %1056 = vmatprep.subr.mxu0 0.0
        %1057 = vmatpush2.msra.mxu0 0.0
        %1058 = vmatprep.subr.mxu0 0.0
        %1059 = vmatpush2.msra.mxu0 0.0
        %1060 = vmatprep.subr.mxu0 0.0
        %1061 = vmatpush2.msra.mxu0 0.0
        %1062 = vmatprep.subr.mxu0 0.0
        %1063 = vmatpush2.msra.mxu0 0.0
        %1064 = vmatprep.subr.mxu0 0.0
        %1065 = vmatpush2.msra.mxu0 0.0
        %1066 = vmatprep.subr.mxu0 0.0
        %1067 = vmatpush2.msra.mxu0 0.0
        %1068 = vmatprep.subr.mxu0 0.0
        %1069 = vmatpush2.msra.mxu0 0.0
        %1070 = vmatprep.subr.mxu0 0.0
        %1071 = vmatpush2.msra.mxu0 0.0
        %1072 = vmatprep.subr.mxu0 0.0
        %1073 = vmatpush2.msra.mxu0 0.0
        %1074 = vmatprep.mubr.f32.mxu0 0.0
        %1075 = vmatmul.mubr.f32.gmra.mxu0 %v999
        %v1076 = vpop.f32.mrf.mxu0
        %v1077 = vadd.f32 %v996, %v1076
        %v1078 = vpop.f32.mrf.mxu0
        %1079 = vmatprep.mubr.f32.mxu0 0.0
        %1080 = vmatmul.mubr.f32.gmra.mxu0 %v1002
        %v1081 = vpop.f32.mrf.mxu0
        %v1082 = vadd.f32 %v996, %v1081
        %v1083 = vpop.f32.mrf.mxu0
        %1084 = vmatprep.mubr.f32.mxu0 0.0
        %1085 = vmatmul.mubr.f32.gmra.mxu0 %v1005
        %v1086 = vpop.f32.mrf.mxu0
        %v1087 = vadd.f32 %v996, %v1086
        %v1088 = vpop.f32.mrf.mxu0
        %1089 = vmatprep.mubr.f32.mxu0 0.0
        %1090 = vmatmul.mubr.f32.gmra.mxu0 %v1008
        %v1091 = vpop.f32.mrf.mxu0
        %v1092 = vadd.f32 %v996, %v1091
        %v1093 = vpop.f32.mrf.mxu0
        %1094 = vdwg.mxu0
        %v1095 = vxor.u32 %v1077, 2147483648
        %v1096 = vxor.u32 %v1082, 2147483648
        %v1097 = vxor.u32 %v1087, 2147483648
        %v1098 = vxor.u32 %v1092, 2147483648
        %v1099 = vmul.f32 %v1095, 1.442695
        %v1100 = vpow.pop %v1099
        %v1101 = vmul.f32 %v1096, 1.442695
        %v1102 = vpow.pop %v1101
        %v1103 = vmul.f32 %v1097, 1.442695
        %v1104 = vpow.pop %v1103
        %v1105 = vmul.f32 %v1098, 1.442695
        %v1106 = vpow.pop %v1105
        %v1107 = vadd.f32 %v1100, 1.0
        %v1108 = vadd.f32 %v1102, 1.0
        %v1109 = vadd.f32 %v1104, 1.0
        %v1110 = vadd.f32 %v1106, 1.0
        %v1111 = vrcp.pop %v1107
        %v1112 = vmul.f32 1.0, %v1111
        %v1113 = vrcp.pop %v1108
        %v1114 = vmul.f32 1.0, %v1113
        %v1115 = vrcp.pop %v1109
        %v1116 = vmul.f32 1.0, %v1115
        %v1117 = vrcp.pop %v1110
        %v1118 = vmul.f32 1.0, %v1117
        %v1119 = vld [vmem:[#allocation13] sm:$0xff]
        %v1120 = vld [vmem:[#allocation13 + $0x8] sm:$0xff]
        %v1121 = vld [vmem:[#allocation13 + $0x10] sm:$0xff]
        %v1122 = vld [vmem:[#allocation13 + $0x18] sm:$0xff]
        %v1123 = vld [vmem:[%s8] sm:$0x1]
        %v1125 = vlaneseq
        %v1126 = vshrl.u32 %v1125, 7
        %v1127 = vsub.s32 0, %v1126
        %v1128 = vrot.slane %v1123, %v1127
        %1130 = vmatprep.subr.mxu0 0.0
        %1131 = vmatpush1.msra.mxu0 0.0
        %1132 = vmatprep.subr.mxu0 0.0
        %1133 = vmatpush1.msra.mxu0 0.0
        %1134 = vmatprep.subr.mxu0 0.0
        %1135 = vmatpush1.msra.mxu0 0.0
        %1136 = vmatprep.subr.mxu0 0.0
        %1137 = vmatpush1.msra.mxu0 0.0
        %1138 = vmatprep.subr.mxu0 0.0
        %1139 = vmatpush1.msra.mxu0 0.0
        %1140 = vmatprep.subr.mxu0 0.0
        %1141 = vmatpush1.msra.mxu0 0.0
        %1142 = vmatprep.subr.mxu0 0.0
        %1143 = vmatpush1.msra.mxu0 0.0
        %1144 = vmatprep.subr.mxu0 0.0
        %1145 = vmatpush1.msra.mxu0 0.0
        %1146 = vmatprep.subr.mxu0 0.0
        %1147 = vmatpush1.msra.mxu0 0.0
        %1148 = vmatprep.subr.mxu0 0.0
        %1149 = vmatpush1.msra.mxu0 0.0
        %1150 = vmatprep.subr.mxu0 0.0
        %1151 = vmatpush1.msra.mxu0 0.0
        %1152 = vmatprep.subr.mxu0 0.0
        %1153 = vmatpush1.msra.mxu0 0.0
        %1154 = vmatprep.subr.mxu0 0.0
        %1155 = vmatpush1.msra.mxu0 %v1122
        %1156 = vmatprep.subr.mxu0 0.0
        %1157 = vmatpush1.msra.mxu0 %v1121
        %1158 = vmatprep.subr.mxu0 0.0
        %1159 = vmatpush1.msra.mxu0 %v1120
        %1160 = vmatprep.subr.mxu0 0.0
        %1161 = vmatpush1.msra.mxu0 %v1119
        %1162 = vmatprep.subr.mxu0 0.0
        %1163 = vmatpush2.msra.mxu0 0.0
        %1164 = vmatprep.subr.mxu0 0.0
        %1165 = vmatpush2.msra.mxu0 0.0
        %1166 = vmatprep.subr.mxu0 0.0
        %1167 = vmatpush2.msra.mxu0 0.0
        %1168 = vmatprep.subr.mxu0 0.0
        %1169 = vmatpush2.msra.mxu0 0.0
        %1170 = vmatprep.subr.mxu0 0.0
        %1171 = vmatpush2.msra.mxu0 0.0
        %1172 = vmatprep.subr.mxu0 0.0
        %1173 = vmatpush2.msra.mxu0 0.0
        %1174 = vmatprep.subr.mxu0 0.0
        %1175 = vmatpush2.msra.mxu0 0.0
        %1176 = vmatprep.subr.mxu0 0.0
        %1177 = vmatpush2.msra.mxu0 0.0
        %1178 = vmatprep.subr.mxu0 0.0
        %1179 = vmatpush2.msra.mxu0 0.0
        %1180 = vmatprep.subr.mxu0 0.0
        %1181 = vmatpush2.msra.mxu0 0.0
        %1182 = vmatprep.subr.mxu0 0.0
        %1183 = vmatpush2.msra.mxu0 0.0
        %1184 = vmatprep.subr.mxu0 0.0
        %1185 = vmatpush2.msra.mxu0 0.0
        %1186 = vmatprep.subr.mxu0 0.0
        %1187 = vmatpush2.msra.mxu0 0.0
        %1188 = vmatprep.subr.mxu0 0.0
        %1189 = vmatpush2.msra.mxu0 0.0
        %1190 = vmatprep.subr.mxu0 0.0
        %1191 = vmatpush2.msra.mxu0 0.0
        %1192 = vmatprep.subr.mxu0 0.0
        %1193 = vmatpush2.msra.mxu0 0.0
        %1194 = vmatprep.mubr.f32.mxu0 0.0
        %1195 = vmatmul.mubr.f32.gmra.mxu0 %v999
        %v1196 = vpop.f32.mrf.mxu0
        %v1197 = vadd.f32 %v1128, %v1196
        %v1198 = vpop.f32.mrf.mxu0
        %1199 = vmatprep.mubr.f32.mxu0 0.0
        %1200 = vmatmul.mubr.f32.gmra.mxu0 %v1002
        %v1201 = vpop.f32.mrf.mxu0
        %v1202 = vadd.f32 %v1128, %v1201
        %v1203 = vpop.f32.mrf.mxu0
        %1204 = vmatprep.mubr.f32.mxu0 0.0
        %1205 = vmatmul.mubr.f32.gmra.mxu0 %v1005
        %v1206 = vpop.f32.mrf.mxu0
        %v1207 = vadd.f32 %v1128, %v1206
        %v1208 = vpop.f32.mrf.mxu0
        %1209 = vmatprep.mubr.f32.mxu0 0.0
        %1210 = vmatmul.mubr.f32.gmra.mxu0 %v1008
        %v1211 = vpop.f32.mrf.mxu0
        %v1212 = vadd.f32 %v1128, %v1211
        %v1213 = vpop.f32.mrf.mxu0
        %1214 = vdwg.mxu0
        %v1215 = vtanh.pop %v1197
        %v1216 = vtanh.pop %v1202
        %v1217 = vtanh.pop %v1207
        %v1218 = vtanh.pop %v1212
        %v1219 = vld [vmem:[#allocation12] sm:$0xff]
        %v1220 = vld [vmem:[#allocation12 + $0x8] sm:$0xff]
        %1221 = vst.msk [vmem:[%s853] sm:$0xff] %vm864, %v1219
        %1222 = vst.msk [vmem:[%s853 + $0x8] sm:$0xff] %vm864, %v1220
        %1224 = vset.pattern.permute.xlu0 0
        %1225 = vperm.xlu0 %1224, %v983
        %v1226 = vpop.permute.xlu0 %1225
        %1229 = vset.pattern.permute.xlu0 0
        %1230 = vperm.xlu0 %1229, %v984
        %v1231 = vpop.permute.xlu0 %1230
        %v1233 = vmul.f32 %v1226, %v1219
        %v1234 = vmul.f32 %v1231, %v1220
        %v1235 = vsel %vm864, %v1233, 0.0
        %v1236 = vsel %vm864, %v1234, 0.0
        %v1237 = vadd.f32 %v1235, %v1236
        %v1238 = vrot.slane %v1237, 4
        %v1239 = vadd.f32 %v1237, %v1238
        %v1240 = vrot.slane %v1239, 2
        %v1241 = vadd.f32 %v1239, %v1240
        %v1242 = vrot.slane %v1241, 1
        %v1243 = vadd.f32 %v1241, %v1242
        %vm1244 = vcmask 253952
        %1245 = vst.msk [vmem:[#allocation2] sm:$0x1] %vm1244, %v1243
        %v1246 = vlaneseq
        %v1247 = vshrl.u32 %v1246, 7
        %v1248 = vsub.s32 0, %v1247
        %v1249 = vrot.slane %v1112, %v1248
        %v1250 = vmul.f32 %v1226, %v1249
        %v1251 = vmul.f32 %v1231, %v1249
        %v1252 = vsub.f32 1.0, %v1250
        %v1253 = vsub.f32 1.0, %v1251
        %v1254 = vmul.f32 %v1219, %v1252
        %v1255 = vmul.f32 %v1220, %v1253
        %v1256 = vlaneseq
        %v1257 = vshrl.u32 %v1256, 7
        %v1258 = vsub.s32 0, %v1257
        %v1259 = vrot.slane %v1215, %v1258
        %v1260 = vmul.f32 %v1226, %v1259
        %v1261 = vmul.f32 %v1231, %v1259
        %v1262 = vadd.f32 %v1254, %v1260
        %v1263 = vadd.f32 %v1255, %v1261
        %s1264 = scalar_lea.vmem %s853, 16
        %1265 = vst.msk [vmem:[%s1264] sm:$0xff] %vm864, %v1262
        %1266 = vst.msk [vmem:[%s1264 + $0x8] sm:$0xff] %vm864, %v1263
        %1267 = vset.pattern.permute.xlu0 1
        %1268 = vperm.xlu0 %1267, %v983
        %v1269 = vpop.permute.xlu0 %1268
        %1271 = vset.pattern.permute.xlu0 1
        %1272 = vperm.xlu0 %1271, %v984
        %v1273 = vpop.permute.xlu0 %1272
        %v1275 = vmul.f32 %v1269, %v1262
        %v1276 = vmul.f32 %v1273, %v1263
        %v1277 = vsel %vm864, %v1275, 0.0
        %v1278 = vsel %vm864, %v1276, 0.0
        %v1279 = vadd.f32 %v1277, %v1278
        %v1280 = vrot.slane %v1279, 4
        %v1281 = vadd.f32 %v1279, %v1280
        %v1282 = vrot.slane %v1281, 2
        %v1283 = vadd.f32 %v1281, %v1282
        %v1284 = vrot.slane %v1283, 1
        %v1285 = vadd.f32 %v1283, %v1284
        %1286 = vst.msk [vmem:[#allocation2 + $0x1] sm:$0x1] %vm1244, %v1285
        %v1287 = vlaneseq
        %v1288 = vshrl.u32 %v1287, 7
        %v1289 = vsub.s32 1, %v1288
        %v1290 = vrot.slane %v1112, %v1289
        %v1291 = vmul.f32 %v1269, %v1290
        %v1292 = vmul.f32 %v1273, %v1290
        %v1293 = vsub.f32 1.0, %v1291
        %v1294 = vsub.f32 1.0, %v1292
        %v1295 = vmul.f32 %v1262, %v1293
        %v1296 = vmul.f32 %v1263, %v1294
        %v1297 = vlaneseq
        %v1298 = vshrl.u32 %v1297, 7
        %v1299 = vsub.s32 1, %v1298
        %v1300 = vrot.slane %v1215, %v1299
        %v1301 = vmul.f32 %v1269, %v1300
        %v1302 = vmul.f32 %v1273, %v1300
        %v1303 = vadd.f32 %v1295, %v1301
        %v1304 = vadd.f32 %v1296, %v1302
        %s1305 = scalar_lea.vmem %s853, 32
        %1306 = vst.msk [vmem:[%s1305] sm:$0xff] %vm864, %v1303
        %1307 = vst.msk [vmem:[%s1305 + $0x8] sm:$0xff] %vm864, %v1304
        %1308 = vset.pattern.permute.xlu0 2
        %1309 = vperm.xlu0 %1308, %v983
        %v1310 = vpop.permute.xlu0 %1309
        %1312 = vset.pattern.permute.xlu0 2
        %1313 = vperm.xlu0 %1312, %v984
        %v1314 = vpop.permute.xlu0 %1313
        %v1316 = vmul.f32 %v1310, %v1303
        %v1317 = vmul.f32 %v1314, %v1304
        %v1318 = vsel %vm864, %v1316, 0.0
        %v1319 = vsel %vm864, %v1317, 0.0
        %v1320 = vadd.f32 %v1318, %v1319
        %v1321 = vrot.slane %v1320, 4
        %v1322 = vadd.f32 %v1320, %v1321
        %v1323 = vrot.slane %v1322, 2
        %v1324 = vadd.f32 %v1322, %v1323
        %v1325 = vrot.slane %v1324, 1
        %v1326 = vadd.f32 %v1324, %v1325
        %1327 = vst.msk [vmem:[#allocation2 + $0x2] sm:$0x1] %vm1244, %v1326
        %v1328 = vlaneseq
        %v1329 = vshrl.u32 %v1328, 7
        %v1330 = vsub.s32 2, %v1329
        %v1331 = vrot.slane %v1112, %v1330
        %v1332 = vmul.f32 %v1310, %v1331
        %v1333 = vmul.f32 %v1314, %v1331
        %v1334 = vsub.f32 1.0, %v1332
        %v1335 = vsub.f32 1.0, %v1333
        %v1336 = vmul.f32 %v1303, %v1334
        %v1337 = vmul.f32 %v1304, %v1335
        %v1338 = vlaneseq
        %v1339 = vshrl.u32 %v1338, 7
        %v1340 = vsub.s32 2, %v1339
        %v1341 = vrot.slane %v1215, %v1340
        %v1342 = vmul.f32 %v1310, %v1341
        %v1343 = vmul.f32 %v1314, %v1341
        %v1344 = vadd.f32 %v1336, %v1342
        %v1345 = vadd.f32 %v1337, %v1343
        %s1346 = scalar_lea.vmem %s853, 48
        %1347 = vst.msk [vmem:[%s1346] sm:$0xff] %vm864, %v1344
        %1348 = vst.msk [vmem:[%s1346 + $0x8] sm:$0xff] %vm864, %v1345
        %1349 = vset.pattern.permute.xlu0 3
        %1350 = vperm.xlu0 %1349, %v983
        %v1351 = vpop.permute.xlu0 %1350
        %1353 = vset.pattern.permute.xlu0 3
        %1354 = vperm.xlu0 %1353, %v984
        %v1355 = vpop.permute.xlu0 %1354
        %v1357 = vmul.f32 %v1351, %v1344
        %v1358 = vmul.f32 %v1355, %v1345
        %v1359 = vsel %vm864, %v1357, 0.0
        %v1360 = vsel %vm864, %v1358, 0.0
        %v1361 = vadd.f32 %v1359, %v1360
        %v1362 = vrot.slane %v1361, 4
        %v1363 = vadd.f32 %v1361, %v1362
        %v1364 = vrot.slane %v1363, 2
        %v1365 = vadd.f32 %v1363, %v1364
        %v1366 = vrot.slane %v1365, 1
        %v1367 = vadd.f32 %v1365, %v1366
        %1368 = vst.msk [vmem:[#allocation2 + $0x3] sm:$0x1] %vm1244, %v1367
        %v1369 = vlaneseq
        %v1370 = vshrl.u32 %v1369, 7
        %v1371 = vsub.s32 3, %v1370
        %v1372 = vrot.slane %v1112, %v1371
        %v1373 = vmul.f32 %v1351, %v1372
        %v1374 = vmul.f32 %v1355, %v1372
        %v1375 = vsub.f32 1.0, %v1373
        %v1376 = vsub.f32 1.0, %v1374
        %v1377 = vmul.f32 %v1344, %v1375
        %v1378 = vmul.f32 %v1345, %v1376
        %v1379 = vlaneseq
        %v1380 = vshrl.u32 %v1379, 7
        %v1381 = vsub.s32 3, %v1380
        %v1382 = vrot.slane %v1215, %v1381
        %v1383 = vmul.f32 %v1351, %v1382
        %v1384 = vmul.f32 %v1355, %v1382
        %v1385 = vadd.f32 %v1377, %v1383
        %v1386 = vadd.f32 %v1378, %v1384
        %s1387 = scalar_lea.vmem %s853, 64
        %1388 = vst.msk [vmem:[%s1387] sm:$0xff] %vm864, %v1385
        %1389 = vst.msk [vmem:[%s1387 + $0x8] sm:$0xff] %vm864, %v1386
        %1390 = vset.pattern.permute.xlu0 4
        %1391 = vperm.xlu0 %1390, %v983
        %v1392 = vpop.permute.xlu0 %1391
        %1394 = vset.pattern.permute.xlu0 4
        %1395 = vperm.xlu0 %1394, %v984
        %v1396 = vpop.permute.xlu0 %1395
        %v1398 = vmul.f32 %v1392, %v1385
        %v1399 = vmul.f32 %v1396, %v1386
        %v1400 = vsel %vm864, %v1398, 0.0
        %v1401 = vsel %vm864, %v1399, 0.0
        %v1402 = vadd.f32 %v1400, %v1401
        %v1403 = vrot.slane %v1402, 4
        %v1404 = vadd.f32 %v1402, %v1403
        %v1405 = vrot.slane %v1404, 2
        %v1406 = vadd.f32 %v1404, %v1405
        %v1407 = vrot.slane %v1406, 1
        %v1408 = vadd.f32 %v1406, %v1407
        %1409 = vst.msk [vmem:[#allocation2 + $0x4] sm:$0x1] %vm1244, %v1408
        %v1410 = vlaneseq
        %v1411 = vshrl.u32 %v1410, 7
        %v1412 = vsub.s32 4, %v1411
        %v1413 = vrot.slane %v1112, %v1412
        %v1414 = vmul.f32 %v1392, %v1413
        %v1415 = vmul.f32 %v1396, %v1413
        %v1416 = vsub.f32 1.0, %v1414
        %v1417 = vsub.f32 1.0, %v1415
        %v1418 = vmul.f32 %v1385, %v1416
        %v1419 = vmul.f32 %v1386, %v1417
        %v1420 = vlaneseq
        %v1421 = vshrl.u32 %v1420, 7
        %v1422 = vsub.s32 4, %v1421
        %v1423 = vrot.slane %v1215, %v1422
        %v1424 = vmul.f32 %v1392, %v1423
        %v1425 = vmul.f32 %v1396, %v1423
        %v1426 = vadd.f32 %v1418, %v1424
        %v1427 = vadd.f32 %v1419, %v1425
        %s1428 = scalar_lea.vmem %s853, 80
        %1429 = vst.msk [vmem:[%s1428] sm:$0xff] %vm864, %v1426
        %1430 = vst.msk [vmem:[%s1428 + $0x8] sm:$0xff] %vm864, %v1427
        %1431 = vset.pattern.permute.xlu0 5
        %1432 = vperm.xlu0 %1431, %v983
        %v1433 = vpop.permute.xlu0 %1432
        %1435 = vset.pattern.permute.xlu0 5
        %1436 = vperm.xlu0 %1435, %v984
        %v1437 = vpop.permute.xlu0 %1436
        %v1439 = vmul.f32 %v1433, %v1426
        %v1440 = vmul.f32 %v1437, %v1427
        %v1441 = vsel %vm864, %v1439, 0.0
        %v1442 = vsel %vm864, %v1440, 0.0
        %v1443 = vadd.f32 %v1441, %v1442
        %v1444 = vrot.slane %v1443, 4
        %v1445 = vadd.f32 %v1443, %v1444
        %v1446 = vrot.slane %v1445, 2
        %v1447 = vadd.f32 %v1445, %v1446
        %v1448 = vrot.slane %v1447, 1
        %v1449 = vadd.f32 %v1447, %v1448
        %1450 = vst.msk [vmem:[#allocation2 + $0x5] sm:$0x1] %vm1244, %v1449
        %v1451 = vlaneseq
        %v1452 = vshrl.u32 %v1451, 7
        %v1453 = vsub.s32 5, %v1452
        %v1454 = vrot.slane %v1112, %v1453
        %v1455 = vmul.f32 %v1433, %v1454
        %v1456 = vmul.f32 %v1437, %v1454
        %v1457 = vsub.f32 1.0, %v1455
        %v1458 = vsub.f32 1.0, %v1456
        %v1459 = vmul.f32 %v1426, %v1457
        %v1460 = vmul.f32 %v1427, %v1458
        %v1461 = vlaneseq
        %v1462 = vshrl.u32 %v1461, 7
        %v1463 = vsub.s32 5, %v1462
        %v1464 = vrot.slane %v1215, %v1463
        %v1465 = vmul.f32 %v1433, %v1464
        %v1466 = vmul.f32 %v1437, %v1464
        %v1467 = vadd.f32 %v1459, %v1465
        %v1468 = vadd.f32 %v1460, %v1466
        %s1469 = scalar_lea.vmem %s853, 96
        %1470 = vst.msk [vmem:[%s1469] sm:$0xff] %vm864, %v1467
        %1471 = vst.msk [vmem:[%s1469 + $0x8] sm:$0xff] %vm864, %v1468
        %1472 = vset.pattern.permute.xlu0 6
        %1473 = vperm.xlu0 %1472, %v983
        %v1474 = vpop.permute.xlu0 %1473
        %1476 = vset.pattern.permute.xlu0 6
        %1477 = vperm.xlu0 %1476, %v984
        %v1478 = vpop.permute.xlu0 %1477
        %v1480 = vmul.f32 %v1474, %v1467
        %v1481 = vmul.f32 %v1478, %v1468
        %v1482 = vsel %vm864, %v1480, 0.0
        %v1483 = vsel %vm864, %v1481, 0.0
        %v1484 = vadd.f32 %v1482, %v1483
        %v1485 = vrot.slane %v1484, 4
        %v1486 = vadd.f32 %v1484, %v1485
        %v1487 = vrot.slane %v1486, 2
        %v1488 = vadd.f32 %v1486, %v1487
        %v1489 = vrot.slane %v1488, 1
        %v1490 = vadd.f32 %v1488, %v1489
        %1491 = vst.msk [vmem:[#allocation2 + $0x6] sm:$0x1] %vm1244, %v1490
        %v1492 = vlaneseq
        %v1493 = vshrl.u32 %v1492, 7
        %v1494 = vsub.s32 6, %v1493
        %v1495 = vrot.slane %v1112, %v1494
        %v1496 = vmul.f32 %v1474, %v1495
        %v1497 = vmul.f32 %v1478, %v1495
        %v1498 = vsub.f32 1.0, %v1496
        %v1499 = vsub.f32 1.0, %v1497
        %v1500 = vmul.f32 %v1467, %v1498
        %v1501 = vmul.f32 %v1468, %v1499
        %v1502 = vlaneseq
        %v1503 = vshrl.u32 %v1502, 7
        %v1504 = vsub.s32 6, %v1503
        %v1505 = vrot.slane %v1215, %v1504
        %v1506 = vmul.f32 %v1474, %v1505
        %v1507 = vmul.f32 %v1478, %v1505
        %v1508 = vadd.f32 %v1500, %v1506
        %v1509 = vadd.f32 %v1501, %v1507
        %s1510 = scalar_lea.vmem %s853, 112
        %1511 = vst.msk [vmem:[%s1510] sm:$0xff] %vm864, %v1508
        %1512 = vst.msk [vmem:[%s1510 + $0x8] sm:$0xff] %vm864, %v1509
        %1513 = vset.pattern.permute.xlu0 7
        %1514 = vperm.xlu0 %1513, %v983
        %v1515 = vpop.permute.xlu0 %1514
        %1517 = vset.pattern.permute.xlu0 7
        %1518 = vperm.xlu0 %1517, %v984
        %v1519 = vpop.permute.xlu0 %1518
        %v1521 = vmul.f32 %v1515, %v1508
        %v1522 = vmul.f32 %v1519, %v1509
        %v1523 = vsel %vm864, %v1521, 0.0
        %v1524 = vsel %vm864, %v1522, 0.0
        %v1525 = vadd.f32 %v1523, %v1524
        %v1526 = vrot.slane %v1525, 4
        %v1527 = vadd.f32 %v1525, %v1526
        %v1528 = vrot.slane %v1527, 2
        %v1529 = vadd.f32 %v1527, %v1528
        %v1530 = vrot.slane %v1529, 1
        %v1531 = vadd.f32 %v1529, %v1530
        %1532 = vst.msk [vmem:[#allocation2 + $0x7] sm:$0x1] %vm1244, %v1531
        %v1533 = vlaneseq
        %v1534 = vshrl.u32 %v1533, 7
        %v1535 = vsub.s32 7, %v1534
        %v1536 = vrot.slane %v1112, %v1535
        %v1537 = vmul.f32 %v1515, %v1536
        %v1538 = vmul.f32 %v1519, %v1536
        %v1539 = vsub.f32 1.0, %v1537
        %v1540 = vsub.f32 1.0, %v1538
        %v1541 = vmul.f32 %v1508, %v1539
        %v1542 = vmul.f32 %v1509, %v1540
        %v1543 = vlaneseq
        %v1544 = vshrl.u32 %v1543, 7
        %v1545 = vsub.s32 7, %v1544
        %v1546 = vrot.slane %v1215, %v1545
        %v1547 = vmul.f32 %v1515, %v1546
        %v1548 = vmul.f32 %v1519, %v1546
        %v1549 = vadd.f32 %v1541, %v1547
        %v1550 = vadd.f32 %v1542, %v1548
        %s1551 = scalar_lea.vmem %s853, 128
        %1552 = vst.msk [vmem:[%s1551] sm:$0xff] %vm864, %v1549
        %1553 = vst.msk [vmem:[%s1551 + $0x8] sm:$0xff] %vm864, %v1550
        %1554 = vset.pattern.permute.xlu0 8
        %1555 = vperm.xlu0 %1554, %v983
        %v1556 = vpop.permute.xlu0 %1555
        %1558 = vset.pattern.permute.xlu0 8
        %1559 = vperm.xlu0 %1558, %v984
        %v1560 = vpop.permute.xlu0 %1559
        %v1562 = vmul.f32 %v1556, %v1549
        %v1563 = vmul.f32 %v1560, %v1550
        %v1564 = vsel %vm864, %v1562, 0.0
        %v1565 = vsel %vm864, %v1563, 0.0
        %v1566 = vadd.f32 %v1564, %v1565
        %v1567 = vrot.slane %v1566, 4
        %v1568 = vadd.f32 %v1566, %v1567
        %v1569 = vrot.slane %v1568, 2
        %v1570 = vadd.f32 %v1568, %v1569
        %v1571 = vrot.slane %v1570, 1
        %v1572 = vadd.f32 %v1570, %v1571
        %1573 = vst.msk [vmem:[#allocation2 + $0x8] sm:$0x1] %vm1244, %v1572
        %v1574 = vlaneseq
        %v1575 = vshrl.u32 %v1574, 7
        %v1576 = vsub.s32 0, %v1575
        %v1577 = vrot.slane %v1114, %v1576
        %v1578 = vmul.f32 %v1556, %v1577
        %v1579 = vmul.f32 %v1560, %v1577
        %v1580 = vsub.f32 1.0, %v1578
        %v1581 = vsub.f32 1.0, %v1579
        %v1582 = vmul.f32 %v1549, %v1580
        %v1583 = vmul.f32 %v1550, %v1581
        %v1584 = vlaneseq
        %v1585 = vshrl.u32 %v1584, 7
        %v1586 = vsub.s32 0, %v1585
        %v1587 = vrot.slane %v1216, %v1586
        %v1588 = vmul.f32 %v1556, %v1587
        %v1589 = vmul.f32 %v1560, %v1587
        %v1590 = vadd.f32 %v1582, %v1588
        %v1591 = vadd.f32 %v1583, %v1589
        %s1592 = scalar_lea.vmem %s853, 144
        %1593 = vst.msk [vmem:[%s1592] sm:$0xff] %vm864, %v1590
        %1594 = vst.msk [vmem:[%s1592 + $0x8] sm:$0xff] %vm864, %v1591
        %1595 = vset.pattern.permute.xlu0 9
        %1596 = vperm.xlu0 %1595, %v983
        %v1597 = vpop.permute.xlu0 %1596
        %1599 = vset.pattern.permute.xlu0 9
        %1600 = vperm.xlu0 %1599, %v984
        %v1601 = vpop.permute.xlu0 %1600
        %v1603 = vmul.f32 %v1597, %v1590
        %v1604 = vmul.f32 %v1601, %v1591
        %v1605 = vsel %vm864, %v1603, 0.0
        %v1606 = vsel %vm864, %v1604, 0.0
        %v1607 = vadd.f32 %v1605, %v1606
        %v1608 = vrot.slane %v1607, 4
        %v1609 = vadd.f32 %v1607, %v1608
        %v1610 = vrot.slane %v1609, 2
        %v1611 = vadd.f32 %v1609, %v1610
        %v1612 = vrot.slane %v1611, 1
        %v1613 = vadd.f32 %v1611, %v1612
        %1614 = vst.msk [vmem:[#allocation2 + $0x9] sm:$0x1] %vm1244, %v1613
        %v1615 = vlaneseq
        %v1616 = vshrl.u32 %v1615, 7
        %v1617 = vsub.s32 1, %v1616
        %v1618 = vrot.slane %v1114, %v1617
        %v1619 = vmul.f32 %v1597, %v1618
        %v1620 = vmul.f32 %v1601, %v1618
        %v1621 = vsub.f32 1.0, %v1619
        %v1622 = vsub.f32 1.0, %v1620
        %v1623 = vmul.f32 %v1590, %v1621
        %v1624 = vmul.f32 %v1591, %v1622
        %v1625 = vlaneseq
        %v1626 = vshrl.u32 %v1625, 7
        %v1627 = vsub.s32 1, %v1626
        %v1628 = vrot.slane %v1216, %v1627
        %v1629 = vmul.f32 %v1597, %v1628
        %v1630 = vmul.f32 %v1601, %v1628
        %v1631 = vadd.f32 %v1623, %v1629
        %v1632 = vadd.f32 %v1624, %v1630
        %s1633 = scalar_lea.vmem %s853, 160
        %1634 = vst.msk [vmem:[%s1633] sm:$0xff] %vm864, %v1631
        %1635 = vst.msk [vmem:[%s1633 + $0x8] sm:$0xff] %vm864, %v1632
        %1636 = vset.pattern.permute.xlu0 10
        %1637 = vperm.xlu0 %1636, %v983
        %v1638 = vpop.permute.xlu0 %1637
        %1640 = vset.pattern.permute.xlu0 10
        %1641 = vperm.xlu0 %1640, %v984
        %v1642 = vpop.permute.xlu0 %1641
        %v1644 = vmul.f32 %v1638, %v1631
        %v1645 = vmul.f32 %v1642, %v1632
        %v1646 = vsel %vm864, %v1644, 0.0
        %v1647 = vsel %vm864, %v1645, 0.0
        %v1648 = vadd.f32 %v1646, %v1647
        %v1649 = vrot.slane %v1648, 4
        %v1650 = vadd.f32 %v1648, %v1649
        %v1651 = vrot.slane %v1650, 2
        %v1652 = vadd.f32 %v1650, %v1651
        %v1653 = vrot.slane %v1652, 1
        %v1654 = vadd.f32 %v1652, %v1653
        %1655 = vst.msk [vmem:[#allocation2 + $0xa] sm:$0x1] %vm1244, %v1654
        %v1656 = vlaneseq
        %v1657 = vshrl.u32 %v1656, 7
        %v1658 = vsub.s32 2, %v1657
        %v1659 = vrot.slane %v1114, %v1658
        %v1660 = vmul.f32 %v1638, %v1659
        %v1661 = vmul.f32 %v1642, %v1659
        %v1662 = vsub.f32 1.0, %v1660
        %v1663 = vsub.f32 1.0, %v1661
        %v1664 = vmul.f32 %v1631, %v1662
        %v1665 = vmul.f32 %v1632, %v1663
        %v1666 = vlaneseq
        %v1667 = vshrl.u32 %v1666, 7
        %v1668 = vsub.s32 2, %v1667
        %v1669 = vrot.slane %v1216, %v1668
        %v1670 = vmul.f32 %v1638, %v1669
        %v1671 = vmul.f32 %v1642, %v1669
        %v1672 = vadd.f32 %v1664, %v1670
        %v1673 = vadd.f32 %v1665, %v1671
        %s1674 = scalar_lea.vmem %s853, 176
        %1675 = vst.msk [vmem:[%s1674] sm:$0xff] %vm864, %v1672
        %1676 = vst.msk [vmem:[%s1674 + $0x8] sm:$0xff] %vm864, %v1673
        %1677 = vset.pattern.permute.xlu0 11
        %1678 = vperm.xlu0 %1677, %v983
        %v1679 = vpop.permute.xlu0 %1678
        %1681 = vset.pattern.permute.xlu0 11
        %1682 = vperm.xlu0 %1681, %v984
        %v1683 = vpop.permute.xlu0 %1682
        %v1685 = vmul.f32 %v1679, %v1672
        %v1686 = vmul.f32 %v1683, %v1673
        %v1687 = vsel %vm864, %v1685, 0.0
        %v1688 = vsel %vm864, %v1686, 0.0
        %v1689 = vadd.f32 %v1687, %v1688
        %v1690 = vrot.slane %v1689, 4
        %v1691 = vadd.f32 %v1689, %v1690
        %v1692 = vrot.slane %v1691, 2
        %v1693 = vadd.f32 %v1691, %v1692
        %v1694 = vrot.slane %v1693, 1
        %v1695 = vadd.f32 %v1693, %v1694
        %1696 = vst.msk [vmem:[#allocation2 + $0xb] sm:$0x1] %vm1244, %v1695
        %v1697 = vlaneseq
        %v1698 = vshrl.u32 %v1697, 7
        %v1699 = vsub.s32 3, %v1698
        %v1700 = vrot.slane %v1114, %v1699
        %v1701 = vmul.f32 %v1679, %v1700
        %v1702 = vmul.f32 %v1683, %v1700
        %v1703 = vsub.f32 1.0, %v1701
        %v1704 = vsub.f32 1.0, %v1702
        %v1705 = vmul.f32 %v1672, %v1703
        %v1706 = vmul.f32 %v1673, %v1704
        %v1707 = vlaneseq
        %v1708 = vshrl.u32 %v1707, 7
        %v1709 = vsub.s32 3, %v1708
        %v1710 = vrot.slane %v1216, %v1709
        %v1711 = vmul.f32 %v1679, %v1710
        %v1712 = vmul.f32 %v1683, %v1710
        %v1713 = vadd.f32 %v1705, %v1711
        %v1714 = vadd.f32 %v1706, %v1712
        %s1715 = scalar_lea.vmem %s853, 192
        %1716 = vst.msk [vmem:[%s1715] sm:$0xff] %vm864, %v1713
        %1717 = vst.msk [vmem:[%s1715 + $0x8] sm:$0xff] %vm864, %v1714
        %1718 = vset.pattern.permute.xlu0 12
        %1719 = vperm.xlu0 %1718, %v983
        %v1720 = vpop.permute.xlu0 %1719
        %1722 = vset.pattern.permute.xlu0 12
        %1723 = vperm.xlu0 %1722, %v984
        %v1724 = vpop.permute.xlu0 %1723
        %v1726 = vmul.f32 %v1720, %v1713
        %v1727 = vmul.f32 %v1724, %v1714
        %v1728 = vsel %vm864, %v1726, 0.0
        %v1729 = vsel %vm864, %v1727, 0.0
        %v1730 = vadd.f32 %v1728, %v1729
        %v1731 = vrot.slane %v1730, 4
        %v1732 = vadd.f32 %v1730, %v1731
        %v1733 = vrot.slane %v1732, 2
        %v1734 = vadd.f32 %v1732, %v1733
        %v1735 = vrot.slane %v1734, 1
        %v1736 = vadd.f32 %v1734, %v1735
        %1737 = vst.msk [vmem:[#allocation2 + $0xc] sm:$0x1] %vm1244, %v1736
        %v1738 = vlaneseq
        %v1739 = vshrl.u32 %v1738, 7
        %v1740 = vsub.s32 4, %v1739
        %v1741 = vrot.slane %v1114, %v1740
        %v1742 = vmul.f32 %v1720, %v1741
        %v1743 = vmul.f32 %v1724, %v1741
        %v1744 = vsub.f32 1.0, %v1742
        %v1745 = vsub.f32 1.0, %v1743
        %v1746 = vmul.f32 %v1713, %v1744
        %v1747 = vmul.f32 %v1714, %v1745
        %v1748 = vlaneseq
        %v1749 = vshrl.u32 %v1748, 7
        %v1750 = vsub.s32 4, %v1749
        %v1751 = vrot.slane %v1216, %v1750
        %v1752 = vmul.f32 %v1720, %v1751
        %v1753 = vmul.f32 %v1724, %v1751
        %v1754 = vadd.f32 %v1746, %v1752
        %v1755 = vadd.f32 %v1747, %v1753
        %s1756 = scalar_lea.vmem %s853, 208
        %1757 = vst.msk [vmem:[%s1756] sm:$0xff] %vm864, %v1754
        %1758 = vst.msk [vmem:[%s1756 + $0x8] sm:$0xff] %vm864, %v1755
        %1759 = vset.pattern.permute.xlu0 13
        %1760 = vperm.xlu0 %1759, %v983
        %v1761 = vpop.permute.xlu0 %1760
        %1763 = vset.pattern.permute.xlu0 13
        %1764 = vperm.xlu0 %1763, %v984
        %v1765 = vpop.permute.xlu0 %1764
        %v1767 = vmul.f32 %v1761, %v1754
        %v1768 = vmul.f32 %v1765, %v1755
        %v1769 = vsel %vm864, %v1767, 0.0
        %v1770 = vsel %vm864, %v1768, 0.0
        %v1771 = vadd.f32 %v1769, %v1770
        %v1772 = vrot.slane %v1771, 4
        %v1773 = vadd.f32 %v1771, %v1772
        %v1774 = vrot.slane %v1773, 2
        %v1775 = vadd.f32 %v1773, %v1774
        %v1776 = vrot.slane %v1775, 1
        %v1777 = vadd.f32 %v1775, %v1776
        %1778 = vst.msk [vmem:[#allocation2 + $0xd] sm:$0x1] %vm1244, %v1777
        %v1779 = vlaneseq
        %v1780 = vshrl.u32 %v1779, 7
        %v1781 = vsub.s32 5, %v1780
        %v1782 = vrot.slane %v1114, %v1781
        %v1783 = vmul.f32 %v1761, %v1782
        %v1784 = vmul.f32 %v1765, %v1782
        %v1785 = vsub.f32 1.0, %v1783
        %v1786 = vsub.f32 1.0, %v1784
        %v1787 = vmul.f32 %v1754, %v1785
        %v1788 = vmul.f32 %v1755, %v1786
        %v1789 = vlaneseq
        %v1790 = vshrl.u32 %v1789, 7
        %v1791 = vsub.s32 5, %v1790
        %v1792 = vrot.slane %v1216, %v1791
        %v1793 = vmul.f32 %v1761, %v1792
        %v1794 = vmul.f32 %v1765, %v1792
        %v1795 = vadd.f32 %v1787, %v1793
        %v1796 = vadd.f32 %v1788, %v1794
        %s1797 = scalar_lea.vmem %s853, 224
        %1798 = vst.msk [vmem:[%s1797] sm:$0xff] %vm864, %v1795
        %1799 = vst.msk [vmem:[%s1797 + $0x8] sm:$0xff] %vm864, %v1796
        %1800 = vset.pattern.permute.xlu0 14
        %1801 = vperm.xlu0 %1800, %v983
        %v1802 = vpop.permute.xlu0 %1801
        %1804 = vset.pattern.permute.xlu0 14
        %1805 = vperm.xlu0 %1804, %v984
        %v1806 = vpop.permute.xlu0 %1805
        %v1808 = vmul.f32 %v1802, %v1795
        %v1809 = vmul.f32 %v1806, %v1796
        %v1810 = vsel %vm864, %v1808, 0.0
        %v1811 = vsel %vm864, %v1809, 0.0
        %v1812 = vadd.f32 %v1810, %v1811
        %v1813 = vrot.slane %v1812, 4
        %v1814 = vadd.f32 %v1812, %v1813
        %v1815 = vrot.slane %v1814, 2
        %v1816 = vadd.f32 %v1814, %v1815
        %v1817 = vrot.slane %v1816, 1
        %v1818 = vadd.f32 %v1816, %v1817
        %1819 = vst.msk [vmem:[#allocation2 + $0xe] sm:$0x1] %vm1244, %v1818
        %v1820 = vlaneseq
        %v1821 = vshrl.u32 %v1820, 7
        %v1822 = vsub.s32 6, %v1821
        %v1823 = vrot.slane %v1114, %v1822
        %v1824 = vmul.f32 %v1802, %v1823
        %v1825 = vmul.f32 %v1806, %v1823
        %v1826 = vsub.f32 1.0, %v1824
        %v1827 = vsub.f32 1.0, %v1825
        %v1828 = vmul.f32 %v1795, %v1826
        %v1829 = vmul.f32 %v1796, %v1827
        %v1830 = vlaneseq
        %v1831 = vshrl.u32 %v1830, 7
        %v1832 = vsub.s32 6, %v1831
        %v1833 = vrot.slane %v1216, %v1832
        %v1834 = vmul.f32 %v1802, %v1833
        %v1835 = vmul.f32 %v1806, %v1833
        %v1836 = vadd.f32 %v1828, %v1834
        %v1837 = vadd.f32 %v1829, %v1835
        %s1838 = scalar_lea.vmem %s853, 240
        %1839 = vst.msk [vmem:[%s1838] sm:$0xff] %vm864, %v1836
        %1840 = vst.msk [vmem:[%s1838 + $0x8] sm:$0xff] %vm864, %v1837
        %1841 = vset.pattern.permute.xlu0 15
        %1842 = vperm.xlu0 %1841, %v983
        %v1843 = vpop.permute.xlu0 %1842
        %1845 = vset.pattern.permute.xlu0 15
        %1846 = vperm.xlu0 %1845, %v984
        %v1847 = vpop.permute.xlu0 %1846
        %v1849 = vmul.f32 %v1843, %v1836
        %v1850 = vmul.f32 %v1847, %v1837
        %v1851 = vsel %vm864, %v1849, 0.0
        %v1852 = vsel %vm864, %v1850, 0.0
        %v1853 = vadd.f32 %v1851, %v1852
        %v1854 = vrot.slane %v1853, 4
        %v1855 = vadd.f32 %v1853, %v1854
        %v1856 = vrot.slane %v1855, 2
        %v1857 = vadd.f32 %v1855, %v1856
        %v1858 = vrot.slane %v1857, 1
        %v1859 = vadd.f32 %v1857, %v1858
        %1860 = vst.msk [vmem:[#allocation2 + $0xf] sm:$0x1] %vm1244, %v1859
        %v1861 = vlaneseq
        %v1862 = vshrl.u32 %v1861, 7
        %v1863 = vsub.s32 7, %v1862
        %v1864 = vrot.slane %v1114, %v1863
        %v1865 = vmul.f32 %v1843, %v1864
        %v1866 = vmul.f32 %v1847, %v1864
        %v1867 = vsub.f32 1.0, %v1865
        %v1868 = vsub.f32 1.0, %v1866
        %v1869 = vmul.f32 %v1836, %v1867
        %v1870 = vmul.f32 %v1837, %v1868
        %v1871 = vlaneseq
        %v1872 = vshrl.u32 %v1871, 7
        %v1873 = vsub.s32 7, %v1872
        %v1874 = vrot.slane %v1216, %v1873
        %v1875 = vmul.f32 %v1843, %v1874
        %v1876 = vmul.f32 %v1847, %v1874
        %v1877 = vadd.f32 %v1869, %v1875
        %v1878 = vadd.f32 %v1870, %v1876
        %s1879 = scalar_lea.vmem %s853, 256
        %1880 = vst.msk [vmem:[%s1879] sm:$0xff] %vm864, %v1877
        %1881 = vst.msk [vmem:[%s1879 + $0x8] sm:$0xff] %vm864, %v1878
        %1882 = vset.pattern.permute.xlu0 16
        %1883 = vperm.xlu0 %1882, %v983
        %v1884 = vpop.permute.xlu0 %1883
        %1886 = vset.pattern.permute.xlu0 16
        %1887 = vperm.xlu0 %1886, %v984
        %v1888 = vpop.permute.xlu0 %1887
        %v1890 = vmul.f32 %v1884, %v1877
        %v1891 = vmul.f32 %v1888, %v1878
        %v1892 = vsel %vm864, %v1890, 0.0
        %v1893 = vsel %vm864, %v1891, 0.0
        %v1894 = vadd.f32 %v1892, %v1893
        %v1895 = vrot.slane %v1894, 4
        %v1896 = vadd.f32 %v1894, %v1895
        %v1897 = vrot.slane %v1896, 2
        %v1898 = vadd.f32 %v1896, %v1897
        %v1899 = vrot.slane %v1898, 1
        %v1900 = vadd.f32 %v1898, %v1899
        %1901 = vst.msk [vmem:[#allocation2 + $0x10] sm:$0x1] %vm1244, %v1900
        %v1902 = vlaneseq
        %v1903 = vshrl.u32 %v1902, 7
        %v1904 = vsub.s32 0, %v1903
        %v1905 = vrot.slane %v1116, %v1904
        %v1906 = vmul.f32 %v1884, %v1905
        %v1907 = vmul.f32 %v1888, %v1905
        %v1908 = vsub.f32 1.0, %v1906
        %v1909 = vsub.f32 1.0, %v1907
        %v1910 = vmul.f32 %v1877, %v1908
        %v1911 = vmul.f32 %v1878, %v1909
        %v1912 = vlaneseq
        %v1913 = vshrl.u32 %v1912, 7
        %v1914 = vsub.s32 0, %v1913
        %v1915 = vrot.slane %v1217, %v1914
        %v1916 = vmul.f32 %v1884, %v1915
        %v1917 = vmul.f32 %v1888, %v1915
        %v1918 = vadd.f32 %v1910, %v1916
        %v1919 = vadd.f32 %v1911, %v1917
        %s1920 = scalar_lea.vmem %s853, 272
        %1921 = vst.msk [vmem:[%s1920] sm:$0xff] %vm864, %v1918
        %1922 = vst.msk [vmem:[%s1920 + $0x8] sm:$0xff] %vm864, %v1919
        %1923 = vset.pattern.permute.xlu0 17
        %1924 = vperm.xlu0 %1923, %v983
        %v1925 = vpop.permute.xlu0 %1924
        %1927 = vset.pattern.permute.xlu0 17
        %1928 = vperm.xlu0 %1927, %v984
        %v1929 = vpop.permute.xlu0 %1928
        %v1931 = vmul.f32 %v1925, %v1918
        %v1932 = vmul.f32 %v1929, %v1919
        %v1933 = vsel %vm864, %v1931, 0.0
        %v1934 = vsel %vm864, %v1932, 0.0
        %v1935 = vadd.f32 %v1933, %v1934
        %v1936 = vrot.slane %v1935, 4
        %v1937 = vadd.f32 %v1935, %v1936
        %v1938 = vrot.slane %v1937, 2
        %v1939 = vadd.f32 %v1937, %v1938
        %v1940 = vrot.slane %v1939, 1
        %v1941 = vadd.f32 %v1939, %v1940
        %1942 = vst.msk [vmem:[#allocation2 + $0x11] sm:$0x1] %vm1244, %v1941
        %v1943 = vlaneseq
        %v1944 = vshrl.u32 %v1943, 7
        %v1945 = vsub.s32 1, %v1944
        %v1946 = vrot.slane %v1116, %v1945
        %v1947 = vmul.f32 %v1925, %v1946
        %v1948 = vmul.f32 %v1929, %v1946
        %v1949 = vsub.f32 1.0, %v1947
        %v1950 = vsub.f32 1.0, %v1948
        %v1951 = vmul.f32 %v1918, %v1949
        %v1952 = vmul.f32 %v1919, %v1950
        %v1953 = vlaneseq
        %v1954 = vshrl.u32 %v1953, 7
        %v1955 = vsub.s32 1, %v1954
        %v1956 = vrot.slane %v1217, %v1955
        %v1957 = vmul.f32 %v1925, %v1956
        %v1958 = vmul.f32 %v1929, %v1956
        %v1959 = vadd.f32 %v1951, %v1957
        %v1960 = vadd.f32 %v1952, %v1958
        %s1961 = scalar_lea.vmem %s853, 288
        %1962 = vst.msk [vmem:[%s1961] sm:$0xff] %vm864, %v1959
        %1963 = vst.msk [vmem:[%s1961 + $0x8] sm:$0xff] %vm864, %v1960
        %1964 = vset.pattern.permute.xlu0 18
        %1965 = vperm.xlu0 %1964, %v983
        %v1966 = vpop.permute.xlu0 %1965
        %1968 = vset.pattern.permute.xlu0 18
        %1969 = vperm.xlu0 %1968, %v984
        %v1970 = vpop.permute.xlu0 %1969
        %v1972 = vmul.f32 %v1966, %v1959
        %v1973 = vmul.f32 %v1970, %v1960
        %v1974 = vsel %vm864, %v1972, 0.0
        %v1975 = vsel %vm864, %v1973, 0.0
        %v1976 = vadd.f32 %v1974, %v1975
        %v1977 = vrot.slane %v1976, 4
        %v1978 = vadd.f32 %v1976, %v1977
        %v1979 = vrot.slane %v1978, 2
        %v1980 = vadd.f32 %v1978, %v1979
        %v1981 = vrot.slane %v1980, 1
        %v1982 = vadd.f32 %v1980, %v1981
        %1983 = vst.msk [vmem:[#allocation2 + $0x12] sm:$0x1] %vm1244, %v1982
        %v1984 = vlaneseq
        %v1985 = vshrl.u32 %v1984, 7
        %v1986 = vsub.s32 2, %v1985
        %v1987 = vrot.slane %v1116, %v1986
        %v1988 = vmul.f32 %v1966, %v1987
        %v1989 = vmul.f32 %v1970, %v1987
        %v1990 = vsub.f32 1.0, %v1988
        %v1991 = vsub.f32 1.0, %v1989
        %v1992 = vmul.f32 %v1959, %v1990
        %v1993 = vmul.f32 %v1960, %v1991
        %v1994 = vlaneseq
        %v1995 = vshrl.u32 %v1994, 7
        %v1996 = vsub.s32 2, %v1995
        %v1997 = vrot.slane %v1217, %v1996
        %v1998 = vmul.f32 %v1966, %v1997
        %v1999 = vmul.f32 %v1970, %v1997
        %v2000 = vadd.f32 %v1992, %v1998
        %v2001 = vadd.f32 %v1993, %v1999
        %s2002 = scalar_lea.vmem %s853, 304
        %2003 = vst.msk [vmem:[%s2002] sm:$0xff] %vm864, %v2000
        %2004 = vst.msk [vmem:[%s2002 + $0x8] sm:$0xff] %vm864, %v2001
        %2005 = vset.pattern.permute.xlu0 19
        %2006 = vperm.xlu0 %2005, %v983
        %v2007 = vpop.permute.xlu0 %2006
        %2009 = vset.pattern.permute.xlu0 19
        %2010 = vperm.xlu0 %2009, %v984
        %v2011 = vpop.permute.xlu0 %2010
        %v2013 = vmul.f32 %v2007, %v2000
        %v2014 = vmul.f32 %v2011, %v2001
        %v2015 = vsel %vm864, %v2013, 0.0
        %v2016 = vsel %vm864, %v2014, 0.0
        %v2017 = vadd.f32 %v2015, %v2016
        %v2018 = vrot.slane %v2017, 4
        %v2019 = vadd.f32 %v2017, %v2018
        %v2020 = vrot.slane %v2019, 2
        %v2021 = vadd.f32 %v2019, %v2020
        %v2022 = vrot.slane %v2021, 1
        %v2023 = vadd.f32 %v2021, %v2022
        %2024 = vst.msk [vmem:[#allocation2 + $0x13] sm:$0x1] %vm1244, %v2023
        %v2025 = vlaneseq
        %v2026 = vshrl.u32 %v2025, 7
        %v2027 = vsub.s32 3, %v2026
        %v2028 = vrot.slane %v1116, %v2027
        %v2029 = vmul.f32 %v2007, %v2028
        %v2030 = vmul.f32 %v2011, %v2028
        %v2031 = vsub.f32 1.0, %v2029
        %v2032 = vsub.f32 1.0, %v2030
        %v2033 = vmul.f32 %v2000, %v2031
        %v2034 = vmul.f32 %v2001, %v2032
        %v2035 = vlaneseq
        %v2036 = vshrl.u32 %v2035, 7
        %v2037 = vsub.s32 3, %v2036
        %v2038 = vrot.slane %v1217, %v2037
        %v2039 = vmul.f32 %v2007, %v2038
        %v2040 = vmul.f32 %v2011, %v2038
        %v2041 = vadd.f32 %v2033, %v2039
        %v2042 = vadd.f32 %v2034, %v2040
        %s2043 = scalar_lea.vmem %s853, 320
        %2044 = vst.msk [vmem:[%s2043] sm:$0xff] %vm864, %v2041
        %2045 = vst.msk [vmem:[%s2043 + $0x8] sm:$0xff] %vm864, %v2042
        %2046 = vset.pattern.permute.xlu0 20
        %2047 = vperm.xlu0 %2046, %v983
        %v2048 = vpop.permute.xlu0 %2047
        %2050 = vset.pattern.permute.xlu0 20
        %2051 = vperm.xlu0 %2050, %v984
        %v2052 = vpop.permute.xlu0 %2051
        %v2054 = vmul.f32 %v2048, %v2041
        %v2055 = vmul.f32 %v2052, %v2042
        %v2056 = vsel %vm864, %v2054, 0.0
        %v2057 = vsel %vm864, %v2055, 0.0
        %v2058 = vadd.f32 %v2056, %v2057
        %v2059 = vrot.slane %v2058, 4
        %v2060 = vadd.f32 %v2058, %v2059
        %v2061 = vrot.slane %v2060, 2
        %v2062 = vadd.f32 %v2060, %v2061
        %v2063 = vrot.slane %v2062, 1
        %v2064 = vadd.f32 %v2062, %v2063
        %2065 = vst.msk [vmem:[#allocation2 + $0x14] sm:$0x1] %vm1244, %v2064
        %v2066 = vlaneseq
        %v2067 = vshrl.u32 %v2066, 7
        %v2068 = vsub.s32 4, %v2067
        %v2069 = vrot.slane %v1116, %v2068
        %v2070 = vmul.f32 %v2048, %v2069
        %v2071 = vmul.f32 %v2052, %v2069
        %v2072 = vsub.f32 1.0, %v2070
        %v2073 = vsub.f32 1.0, %v2071
        %v2074 = vmul.f32 %v2041, %v2072
        %v2075 = vmul.f32 %v2042, %v2073
        %v2076 = vlaneseq
        %v2077 = vshrl.u32 %v2076, 7
        %v2078 = vsub.s32 4, %v2077
        %v2079 = vrot.slane %v1217, %v2078
        %v2080 = vmul.f32 %v2048, %v2079
        %v2081 = vmul.f32 %v2052, %v2079
        %v2082 = vadd.f32 %v2074, %v2080
        %v2083 = vadd.f32 %v2075, %v2081
        %s2084 = scalar_lea.vmem %s853, 336
        %2085 = vst.msk [vmem:[%s2084] sm:$0xff] %vm864, %v2082
        %2086 = vst.msk [vmem:[%s2084 + $0x8] sm:$0xff] %vm864, %v2083
        %2087 = vset.pattern.permute.xlu0 21
        %2088 = vperm.xlu0 %2087, %v983
        %v2089 = vpop.permute.xlu0 %2088
        %2091 = vset.pattern.permute.xlu0 21
        %2092 = vperm.xlu0 %2091, %v984
        %v2093 = vpop.permute.xlu0 %2092
        %v2095 = vmul.f32 %v2089, %v2082
        %v2096 = vmul.f32 %v2093, %v2083
        %v2097 = vsel %vm864, %v2095, 0.0
        %v2098 = vsel %vm864, %v2096, 0.0
        %v2099 = vadd.f32 %v2097, %v2098
        %v2100 = vrot.slane %v2099, 4
        %v2101 = vadd.f32 %v2099, %v2100
        %v2102 = vrot.slane %v2101, 2
        %v2103 = vadd.f32 %v2101, %v2102
        %v2104 = vrot.slane %v2103, 1
        %v2105 = vadd.f32 %v2103, %v2104
        %2106 = vst.msk [vmem:[#allocation2 + $0x15] sm:$0x1] %vm1244, %v2105
        %v2107 = vlaneseq
        %v2108 = vshrl.u32 %v2107, 7
        %v2109 = vsub.s32 5, %v2108
        %v2110 = vrot.slane %v1116, %v2109
        %v2111 = vmul.f32 %v2089, %v2110
        %v2112 = vmul.f32 %v2093, %v2110
        %v2113 = vsub.f32 1.0, %v2111
        %v2114 = vsub.f32 1.0, %v2112
        %v2115 = vmul.f32 %v2082, %v2113
        %v2116 = vmul.f32 %v2083, %v2114
        %v2117 = vlaneseq
        %v2118 = vshrl.u32 %v2117, 7
        %v2119 = vsub.s32 5, %v2118
        %v2120 = vrot.slane %v1217, %v2119
        %v2121 = vmul.f32 %v2089, %v2120
        %v2122 = vmul.f32 %v2093, %v2120
        %v2123 = vadd.f32 %v2115, %v2121
        %v2124 = vadd.f32 %v2116, %v2122
        %s2125 = scalar_lea.vmem %s853, 352
        %2126 = vst.msk [vmem:[%s2125] sm:$0xff] %vm864, %v2123
        %2127 = vst.msk [vmem:[%s2125 + $0x8] sm:$0xff] %vm864, %v2124
        %2128 = vset.pattern.permute.xlu0 22
        %2129 = vperm.xlu0 %2128, %v983
        %v2130 = vpop.permute.xlu0 %2129
        %2132 = vset.pattern.permute.xlu0 22
        %2133 = vperm.xlu0 %2132, %v984
        %v2134 = vpop.permute.xlu0 %2133
        %v2136 = vmul.f32 %v2130, %v2123
        %v2137 = vmul.f32 %v2134, %v2124
        %v2138 = vsel %vm864, %v2136, 0.0
        %v2139 = vsel %vm864, %v2137, 0.0
        %v2140 = vadd.f32 %v2138, %v2139
        %v2141 = vrot.slane %v2140, 4
        %v2142 = vadd.f32 %v2140, %v2141
        %v2143 = vrot.slane %v2142, 2
        %v2144 = vadd.f32 %v2142, %v2143
        %v2145 = vrot.slane %v2144, 1
        %v2146 = vadd.f32 %v2144, %v2145
        %2147 = vst.msk [vmem:[#allocation2 + $0x16] sm:$0x1] %vm1244, %v2146
        %v2148 = vlaneseq
        %v2149 = vshrl.u32 %v2148, 7
        %v2150 = vsub.s32 6, %v2149
        %v2151 = vrot.slane %v1116, %v2150
        %v2152 = vmul.f32 %v2130, %v2151
        %v2153 = vmul.f32 %v2134, %v2151
        %v2154 = vsub.f32 1.0, %v2152
        %v2155 = vsub.f32 1.0, %v2153
        %v2156 = vmul.f32 %v2123, %v2154
        %v2157 = vmul.f32 %v2124, %v2155
        %v2158 = vlaneseq
        %v2159 = vshrl.u32 %v2158, 7
        %v2160 = vsub.s32 6, %v2159
        %v2161 = vrot.slane %v1217, %v2160
        %v2162 = vmul.f32 %v2130, %v2161
        %v2163 = vmul.f32 %v2134, %v2161
        %v2164 = vadd.f32 %v2156, %v2162
        %v2165 = vadd.f32 %v2157, %v2163
        %s2166 = scalar_lea.vmem %s853, 368
        %2167 = vst.msk [vmem:[%s2166] sm:$0xff] %vm864, %v2164
        %2168 = vst.msk [vmem:[%s2166 + $0x8] sm:$0xff] %vm864, %v2165
        %2169 = vset.pattern.permute.xlu0 23
        %2170 = vperm.xlu0 %2169, %v983
        %v2171 = vpop.permute.xlu0 %2170
        %2173 = vset.pattern.permute.xlu0 23
        %2174 = vperm.xlu0 %2173, %v984
        %v2175 = vpop.permute.xlu0 %2174
        %v2177 = vmul.f32 %v2171, %v2164
        %v2178 = vmul.f32 %v2175, %v2165
        %v2179 = vsel %vm864, %v2177, 0.0
        %v2180 = vsel %vm864, %v2178, 0.0
        %v2181 = vadd.f32 %v2179, %v2180
        %v2182 = vrot.slane %v2181, 4
        %v2183 = vadd.f32 %v2181, %v2182
        %v2184 = vrot.slane %v2183, 2
        %v2185 = vadd.f32 %v2183, %v2184
        %v2186 = vrot.slane %v2185, 1
        %v2187 = vadd.f32 %v2185, %v2186
        %2188 = vst.msk [vmem:[#allocation2 + $0x17] sm:$0x1] %vm1244, %v2187
        %v2189 = vlaneseq
        %v2190 = vshrl.u32 %v2189, 7
        %v2191 = vsub.s32 7, %v2190
        %v2192 = vrot.slane %v1116, %v2191
        %v2193 = vmul.f32 %v2171, %v2192
        %v2194 = vmul.f32 %v2175, %v2192
        %v2195 = vsub.f32 1.0, %v2193
        %v2196 = vsub.f32 1.0, %v2194
        %v2197 = vmul.f32 %v2164, %v2195
        %v2198 = vmul.f32 %v2165, %v2196
        %v2199 = vlaneseq
        %v2200 = vshrl.u32 %v2199, 7
        %v2201 = vsub.s32 7, %v2200
        %v2202 = vrot.slane %v1217, %v2201
        %v2203 = vmul.f32 %v2171, %v2202
        %v2204 = vmul.f32 %v2175, %v2202
        %v2205 = vadd.f32 %v2197, %v2203
        %v2206 = vadd.f32 %v2198, %v2204
        %s2207 = scalar_lea.vmem %s853, 384
        %2208 = vst.msk [vmem:[%s2207] sm:$0xff] %vm864, %v2205
        %2209 = vst.msk [vmem:[%s2207 + $0x8] sm:$0xff] %vm864, %v2206
        %2210 = vset.pattern.permute.xlu0 24
        %2211 = vperm.xlu0 %2210, %v983
        %v2212 = vpop.permute.xlu0 %2211
        %2214 = vset.pattern.permute.xlu0 24
        %2215 = vperm.xlu0 %2214, %v984
        %v2216 = vpop.permute.xlu0 %2215
        %v2218 = vmul.f32 %v2212, %v2205
        %v2219 = vmul.f32 %v2216, %v2206
        %v2220 = vsel %vm864, %v2218, 0.0
        %v2221 = vsel %vm864, %v2219, 0.0
        %v2222 = vadd.f32 %v2220, %v2221
        %v2223 = vrot.slane %v2222, 4
        %v2224 = vadd.f32 %v2222, %v2223
        %v2225 = vrot.slane %v2224, 2
        %v2226 = vadd.f32 %v2224, %v2225
        %v2227 = vrot.slane %v2226, 1
        %v2228 = vadd.f32 %v2226, %v2227
        %2229 = vst.msk [vmem:[#allocation2 + $0x18] sm:$0x1] %vm1244, %v2228
        %v2230 = vlaneseq
        %v2231 = vshrl.u32 %v2230, 7
        %v2232 = vsub.s32 0, %v2231
        %v2233 = vrot.slane %v1118, %v2232
        %v2234 = vmul.f32 %v2212, %v2233
        %v2235 = vmul.f32 %v2216, %v2233
        %v2236 = vsub.f32 1.0, %v2234
        %v2237 = vsub.f32 1.0, %v2235
        %v2238 = vmul.f32 %v2205, %v2236
        %v2239 = vmul.f32 %v2206, %v2237
        %v2240 = vlaneseq
        %v2241 = vshrl.u32 %v2240, 7
        %v2242 = vsub.s32 0, %v2241
        %v2243 = vrot.slane %v1218, %v2242
        %v2244 = vmul.f32 %v2212, %v2243
        %v2245 = vmul.f32 %v2216, %v2243
        %v2246 = vadd.f32 %v2238, %v2244
        %v2247 = vadd.f32 %v2239, %v2245
        %s2248 = scalar_lea.vmem %s853, 400
        %2249 = vst.msk [vmem:[%s2248] sm:$0xff] %vm864, %v2246
        %2250 = vst.msk [vmem:[%s2248 + $0x8] sm:$0xff] %vm864, %v2247
        %2251 = vset.pattern.permute.xlu0 25
        %2252 = vperm.xlu0 %2251, %v983
        %v2253 = vpop.permute.xlu0 %2252
        %2255 = vset.pattern.permute.xlu0 25
        %2256 = vperm.xlu0 %2255, %v984
        %v2257 = vpop.permute.xlu0 %2256
        %v2259 = vmul.f32 %v2253, %v2246
        %v2260 = vmul.f32 %v2257, %v2247
        %v2261 = vsel %vm864, %v2259, 0.0
        %v2262 = vsel %vm864, %v2260, 0.0
        %v2263 = vadd.f32 %v2261, %v2262
        %v2264 = vrot.slane %v2263, 4
        %v2265 = vadd.f32 %v2263, %v2264
        %v2266 = vrot.slane %v2265, 2
        %v2267 = vadd.f32 %v2265, %v2266
        %v2268 = vrot.slane %v2267, 1
        %v2269 = vadd.f32 %v2267, %v2268
        %2270 = vst.msk [vmem:[#allocation2 + $0x19] sm:$0x1] %vm1244, %v2269
        %v2271 = vlaneseq
        %v2272 = vshrl.u32 %v2271, 7
        %v2273 = vsub.s32 1, %v2272
        %v2274 = vrot.slane %v1118, %v2273
        %v2275 = vmul.f32 %v2253, %v2274
        %v2276 = vmul.f32 %v2257, %v2274
        %v2277 = vsub.f32 1.0, %v2275
        %v2278 = vsub.f32 1.0, %v2276
        %v2279 = vmul.f32 %v2246, %v2277
        %v2280 = vmul.f32 %v2247, %v2278
        %v2281 = vlaneseq
        %v2282 = vshrl.u32 %v2281, 7
        %v2283 = vsub.s32 1, %v2282
        %v2284 = vrot.slane %v1218, %v2283
        %v2285 = vmul.f32 %v2253, %v2284
        %v2286 = vmul.f32 %v2257, %v2284
        %v2287 = vadd.f32 %v2279, %v2285
        %v2288 = vadd.f32 %v2280, %v2286
        %s2289 = scalar_lea.vmem %s853, 416
        %2290 = vst.msk [vmem:[%s2289] sm:$0xff] %vm864, %v2287
        %2291 = vst.msk [vmem:[%s2289 + $0x8] sm:$0xff] %vm864, %v2288
        %2292 = vset.pattern.permute.xlu0 26
        %2293 = vperm.xlu0 %2292, %v983
        %v2294 = vpop.permute.xlu0 %2293
        %2296 = vset.pattern.permute.xlu0 26
        %2297 = vperm.xlu0 %2296, %v984
        %v2298 = vpop.permute.xlu0 %2297
        %v2300 = vmul.f32 %v2294, %v2287
        %v2301 = vmul.f32 %v2298, %v2288
        %v2302 = vsel %vm864, %v2300, 0.0
        %v2303 = vsel %vm864, %v2301, 0.0
        %v2304 = vadd.f32 %v2302, %v2303
        %v2305 = vrot.slane %v2304, 4
        %v2306 = vadd.f32 %v2304, %v2305
        %v2307 = vrot.slane %v2306, 2
        %v2308 = vadd.f32 %v2306, %v2307
        %v2309 = vrot.slane %v2308, 1
        %v2310 = vadd.f32 %v2308, %v2309
        %2311 = vst.msk [vmem:[#allocation2 + $0x1a] sm:$0x1] %vm1244, %v2310
        %v2312 = vlaneseq
        %v2313 = vshrl.u32 %v2312, 7
        %v2314 = vsub.s32 2, %v2313
        %v2315 = vrot.slane %v1118, %v2314
        %v2316 = vmul.f32 %v2294, %v2315
        %v2317 = vmul.f32 %v2298, %v2315
        %v2318 = vsub.f32 1.0, %v2316
        %v2319 = vsub.f32 1.0, %v2317
        %v2320 = vmul.f32 %v2287, %v2318
        %v2321 = vmul.f32 %v2288, %v2319
        %v2322 = vlaneseq
        %v2323 = vshrl.u32 %v2322, 7
        %v2324 = vsub.s32 2, %v2323
        %v2325 = vrot.slane %v1218, %v2324
        %v2326 = vmul.f32 %v2294, %v2325
        %v2327 = vmul.f32 %v2298, %v2325
        %v2328 = vadd.f32 %v2320, %v2326
        %v2329 = vadd.f32 %v2321, %v2327
        %s2330 = scalar_lea.vmem %s853, 432
        %2331 = vst.msk [vmem:[%s2330] sm:$0xff] %vm864, %v2328
        %2332 = vst.msk [vmem:[%s2330 + $0x8] sm:$0xff] %vm864, %v2329
        %2333 = vset.pattern.permute.xlu0 27
        %2334 = vperm.xlu0 %2333, %v983
        %v2335 = vpop.permute.xlu0 %2334
        %2337 = vset.pattern.permute.xlu0 27
        %2338 = vperm.xlu0 %2337, %v984
        %v2339 = vpop.permute.xlu0 %2338
        %v2341 = vmul.f32 %v2335, %v2328
        %v2342 = vmul.f32 %v2339, %v2329
        %v2343 = vsel %vm864, %v2341, 0.0
        %v2344 = vsel %vm864, %v2342, 0.0
        %v2345 = vadd.f32 %v2343, %v2344
        %v2346 = vrot.slane %v2345, 4
        %v2347 = vadd.f32 %v2345, %v2346
        %v2348 = vrot.slane %v2347, 2
        %v2349 = vadd.f32 %v2347, %v2348
        %v2350 = vrot.slane %v2349, 1
        %v2351 = vadd.f32 %v2349, %v2350
        %2352 = vst.msk [vmem:[#allocation2 + $0x1b] sm:$0x1] %vm1244, %v2351
        %v2353 = vlaneseq
        %v2354 = vshrl.u32 %v2353, 7
        %v2355 = vsub.s32 3, %v2354
        %v2356 = vrot.slane %v1118, %v2355
        %v2357 = vmul.f32 %v2335, %v2356
        %v2358 = vmul.f32 %v2339, %v2356
        %v2359 = vsub.f32 1.0, %v2357
        %v2360 = vsub.f32 1.0, %v2358
        %v2361 = vmul.f32 %v2328, %v2359
        %v2362 = vmul.f32 %v2329, %v2360
        %v2363 = vlaneseq
        %v2364 = vshrl.u32 %v2363, 7
        %v2365 = vsub.s32 3, %v2364
        %v2366 = vrot.slane %v1218, %v2365
        %v2367 = vmul.f32 %v2335, %v2366
        %v2368 = vmul.f32 %v2339, %v2366
        %v2369 = vadd.f32 %v2361, %v2367
        %v2370 = vadd.f32 %v2362, %v2368
        %s2371 = scalar_lea.vmem %s853, 448
        %2372 = vst.msk [vmem:[%s2371] sm:$0xff] %vm864, %v2369
        %2373 = vst.msk [vmem:[%s2371 + $0x8] sm:$0xff] %vm864, %v2370
        %2374 = vset.pattern.permute.xlu0 28
        %2375 = vperm.xlu0 %2374, %v983
        %v2376 = vpop.permute.xlu0 %2375
        %2378 = vset.pattern.permute.xlu0 28
        %2379 = vperm.xlu0 %2378, %v984
        %v2380 = vpop.permute.xlu0 %2379
        %v2382 = vmul.f32 %v2376, %v2369
        %v2383 = vmul.f32 %v2380, %v2370
        %v2384 = vsel %vm864, %v2382, 0.0
        %v2385 = vsel %vm864, %v2383, 0.0
        %v2386 = vadd.f32 %v2384, %v2385
        %v2387 = vrot.slane %v2386, 4
        %v2388 = vadd.f32 %v2386, %v2387
        %v2389 = vrot.slane %v2388, 2
        %v2390 = vadd.f32 %v2388, %v2389
        %v2391 = vrot.slane %v2390, 1
        %v2392 = vadd.f32 %v2390, %v2391
        %2393 = vst.msk [vmem:[#allocation2 + $0x1c] sm:$0x1] %vm1244, %v2392
        %v2394 = vlaneseq
        %v2395 = vshrl.u32 %v2394, 7
        %v2396 = vsub.s32 4, %v2395
        %v2397 = vrot.slane %v1118, %v2396
        %v2398 = vmul.f32 %v2376, %v2397
        %v2399 = vmul.f32 %v2380, %v2397
        %v2400 = vsub.f32 1.0, %v2398
        %v2401 = vsub.f32 1.0, %v2399
        %v2402 = vmul.f32 %v2369, %v2400
        %v2403 = vmul.f32 %v2370, %v2401
        %v2404 = vlaneseq
        %v2405 = vshrl.u32 %v2404, 7
        %v2406 = vsub.s32 4, %v2405
        %v2407 = vrot.slane %v1218, %v2406
        %v2408 = vmul.f32 %v2376, %v2407
        %v2409 = vmul.f32 %v2380, %v2407
        %v2410 = vadd.f32 %v2402, %v2408
        %v2411 = vadd.f32 %v2403, %v2409
        %s2412 = scalar_lea.vmem %s853, 464
        %2413 = vst.msk [vmem:[%s2412] sm:$0xff] %vm864, %v2410
        %2414 = vst.msk [vmem:[%s2412 + $0x8] sm:$0xff] %vm864, %v2411
        %2415 = vset.pattern.permute.xlu0 29
        %2416 = vperm.xlu0 %2415, %v983
        %v2417 = vpop.permute.xlu0 %2416
        %2419 = vset.pattern.permute.xlu0 29
        %2420 = vperm.xlu0 %2419, %v984
        %v2421 = vpop.permute.xlu0 %2420
        %v2423 = vmul.f32 %v2417, %v2410
        %v2424 = vmul.f32 %v2421, %v2411
        %v2425 = vsel %vm864, %v2423, 0.0
        %v2426 = vsel %vm864, %v2424, 0.0
        %v2427 = vadd.f32 %v2425, %v2426
        %v2428 = vrot.slane %v2427, 4
        %v2429 = vadd.f32 %v2427, %v2428
        %v2430 = vrot.slane %v2429, 2
        %v2431 = vadd.f32 %v2429, %v2430
        %v2432 = vrot.slane %v2431, 1
        %v2433 = vadd.f32 %v2431, %v2432
        %2434 = vst.msk [vmem:[#allocation2 + $0x1d] sm:$0x1] %vm1244, %v2433
        %v2435 = vlaneseq
        %v2436 = vshrl.u32 %v2435, 7
        %v2437 = vsub.s32 5, %v2436
        %v2438 = vrot.slane %v1118, %v2437
        %v2439 = vmul.f32 %v2417, %v2438
        %v2440 = vmul.f32 %v2421, %v2438
        %v2441 = vsub.f32 1.0, %v2439
        %v2442 = vsub.f32 1.0, %v2440
        %v2443 = vmul.f32 %v2410, %v2441
        %v2444 = vmul.f32 %v2411, %v2442
        %v2445 = vlaneseq
        %v2446 = vshrl.u32 %v2445, 7
        %v2447 = vsub.s32 5, %v2446
        %v2448 = vrot.slane %v1218, %v2447
        %v2449 = vmul.f32 %v2417, %v2448
        %v2450 = vmul.f32 %v2421, %v2448
        %v2451 = vadd.f32 %v2443, %v2449
        %v2452 = vadd.f32 %v2444, %v2450
        %s2453 = scalar_lea.vmem %s853, 480
        %2454 = vst.msk [vmem:[%s2453] sm:$0xff] %vm864, %v2451
        %2455 = vst.msk [vmem:[%s2453 + $0x8] sm:$0xff] %vm864, %v2452
        %2456 = vset.pattern.permute.xlu0 30
        %2457 = vperm.xlu0 %2456, %v983
        %v2458 = vpop.permute.xlu0 %2457
        %2460 = vset.pattern.permute.xlu0 30
        %2461 = vperm.xlu0 %2460, %v984
        %v2462 = vpop.permute.xlu0 %2461
        %v2464 = vmul.f32 %v2458, %v2451
        %v2465 = vmul.f32 %v2462, %v2452
        %v2466 = vsel %vm864, %v2464, 0.0
        %v2467 = vsel %vm864, %v2465, 0.0
        %v2468 = vadd.f32 %v2466, %v2467
        %v2469 = vrot.slane %v2468, 4
        %v2470 = vadd.f32 %v2468, %v2469
        %v2471 = vrot.slane %v2470, 2
        %v2472 = vadd.f32 %v2470, %v2471
        %v2473 = vrot.slane %v2472, 1
        %v2474 = vadd.f32 %v2472, %v2473
        %2475 = vst.msk [vmem:[#allocation2 + $0x1e] sm:$0x1] %vm1244, %v2474
        %v2476 = vlaneseq
        %v2477 = vshrl.u32 %v2476, 7
        %v2478 = vsub.s32 6, %v2477
        %v2479 = vrot.slane %v1118, %v2478
        %v2480 = vmul.f32 %v2458, %v2479
        %v2481 = vmul.f32 %v2462, %v2479
        %v2482 = vsub.f32 1.0, %v2480
        %v2483 = vsub.f32 1.0, %v2481
        %v2484 = vmul.f32 %v2451, %v2482
        %v2485 = vmul.f32 %v2452, %v2483
        %v2486 = vlaneseq
        %v2487 = vshrl.u32 %v2486, 7
        %v2488 = vsub.s32 6, %v2487
        %v2489 = vrot.slane %v1218, %v2488
        %v2490 = vmul.f32 %v2458, %v2489
        %v2491 = vmul.f32 %v2462, %v2489
        %v2492 = vadd.f32 %v2484, %v2490
        %v2493 = vadd.f32 %v2485, %v2491
        %s2494 = scalar_lea.vmem %s853, 496
        %2495 = vst.msk [vmem:[%s2494] sm:$0xff] %vm864, %v2492
        %2496 = vst.msk [vmem:[%s2494 + $0x8] sm:$0xff] %vm864, %v2493
        %2497 = vset.pattern.permute.xlu0 31
        %2498 = vperm.xlu0 %2497, %v983
        %v2499 = vpop.permute.xlu0 %2498
        %2501 = vset.pattern.permute.xlu0 31
        %2502 = vperm.xlu0 %2501, %v984
        %v2503 = vpop.permute.xlu0 %2502
        %v2505 = vmul.f32 %v2499, %v2492
        %v2506 = vmul.f32 %v2503, %v2493
        %v2507 = vsel %vm864, %v2505, 0.0
        %v2508 = vsel %vm864, %v2506, 0.0
        %v2509 = vadd.f32 %v2507, %v2508
        %v2510 = vrot.slane %v2509, 4
        %v2511 = vadd.f32 %v2509, %v2510
        %v2512 = vrot.slane %v2511, 2
        %v2513 = vadd.f32 %v2511, %v2512
        %v2514 = vrot.slane %v2513, 1
        %v2515 = vadd.f32 %v2513, %v2514
        %2516 = vst.msk [vmem:[#allocation2 + $0x1f] sm:$0x1] %vm1244, %v2515
        %v2517 = vlaneseq
        %v2518 = vshrl.u32 %v2517, 7
        %v2519 = vsub.s32 7, %v2518
        %v2520 = vrot.slane %v1118, %v2519
        %v2521 = vmul.f32 %v2499, %v2520
        %v2522 = vmul.f32 %v2503, %v2520
        %v2523 = vsub.f32 1.0, %v2521
        %v2524 = vsub.f32 1.0, %v2522
        %v2525 = vmul.f32 %v2492, %v2523
        %v2526 = vmul.f32 %v2493, %v2524
        %v2527 = vlaneseq
        %v2528 = vshrl.u32 %v2527, 7
        %v2529 = vsub.s32 7, %v2528
        %v2530 = vrot.slane %v1218, %v2529
        %v2531 = vmul.f32 %v2499, %v2530
        %v2532 = vmul.f32 %v2503, %v2530
        %v2533 = vadd.f32 %v2525, %v2531
        %v2534 = vadd.f32 %v2526, %v2532
        %s2535 = scalar_lea.vmem %s853, 512
        %2536 = vst.msk [vmem:[%s2535] sm:$0xff] %vm864, %v2533
        %2537 = vst.msk [vmem:[%s2535 + $0x8] sm:$0xff] %vm864, %v2534
        %v2538 = vld [vmem:[#allocation2] sm:$0xff]
        %v2539 = vld [vmem:[#allocation2 + $0x8] sm:$0xff]
        %v2540 = vld [vmem:[#allocation2 + $0x10] sm:$0xff]
        %v2541 = vld [vmem:[#allocation2 + $0x18] sm:$0xff]
        %v2542 = vld [vmem:[#allocation15] sm:$0xff]
        %v2543 = vld [vmem:[#allocation15 + $0x8] sm:$0xff]
        %v2544 = vld [vmem:[#allocation15 + $0x10] sm:$0xff]
        %v2545 = vld [vmem:[#allocation15 + $0x18] sm:$0xff]
        %v2546 = vld [vmem:[#allocation16] sm:$0xff]
        %v2547 = vld [vmem:[#allocation16 + $0x8] sm:$0xff]
        %v2548 = vld [vmem:[#allocation16 + $0x10] sm:$0xff]
        %v2549 = vld [vmem:[#allocation16 + $0x18] sm:$0xff]
        %2550 = vmatprep.subr.mxu0 0.0
        %2551 = vmatpush1.msra.mxu0 0.0
        %2552 = vmatprep.subr.mxu0 0.0
        %2553 = vmatpush1.msra.mxu0 0.0
        %2554 = vmatprep.subr.mxu0 0.0
        %2555 = vmatpush1.msra.mxu0 0.0
        %2556 = vmatprep.subr.mxu0 0.0
        %2557 = vmatpush1.msra.mxu0 0.0
        %2558 = vmatprep.subr.mxu0 0.0
        %2559 = vmatpush1.msra.mxu0 0.0
        %2560 = vmatprep.subr.mxu0 0.0
        %2561 = vmatpush1.msra.mxu0 0.0
        %2562 = vmatprep.subr.mxu0 0.0
        %2563 = vmatpush1.msra.mxu0 0.0
        %2564 = vmatprep.subr.mxu0 0.0
        %2565 = vmatpush1.msra.mxu0 0.0
        %2566 = vmatprep.subr.mxu0 0.0
        %2567 = vmatpush1.msra.mxu0 0.0
        %2568 = vmatprep.subr.mxu0 0.0
        %2569 = vmatpush1.msra.mxu0 0.0
        %2570 = vmatprep.subr.mxu0 0.0
        %2571 = vmatpush1.msra.mxu0 0.0
        %2572 = vmatprep.subr.mxu0 0.0
        %2573 = vmatpush1.msra.mxu0 0.0
        %2574 = vmatprep.subr.mxu0 0.0
        %2575 = vmatpush1.msra.mxu0 %v2549
        %2576 = vmatprep.subr.mxu0 0.0
        %2577 = vmatpush1.msra.mxu0 %v2548
        %2578 = vmatprep.subr.mxu0 0.0
        %2579 = vmatpush1.msra.mxu0 %v2547
        %2580 = vmatprep.subr.mxu0 0.0
        %2581 = vmatpush1.msra.mxu0 %v2546
        %2582 = vmatprep.subr.mxu0 0.0
        %2583 = vmatpush2.msra.mxu0 0.0
        %2584 = vmatprep.subr.mxu0 0.0
        %2585 = vmatpush2.msra.mxu0 0.0
        %2586 = vmatprep.subr.mxu0 0.0
        %2587 = vmatpush2.msra.mxu0 0.0
        %2588 = vmatprep.subr.mxu0 0.0
        %2589 = vmatpush2.msra.mxu0 0.0
        %2590 = vmatprep.subr.mxu0 0.0
        %2591 = vmatpush2.msra.mxu0 0.0
        %2592 = vmatprep.subr.mxu0 0.0
        %2593 = vmatpush2.msra.mxu0 0.0
        %2594 = vmatprep.subr.mxu0 0.0
        %2595 = vmatpush2.msra.mxu0 0.0
        %2596 = vmatprep.subr.mxu0 0.0
        %2597 = vmatpush2.msra.mxu0 0.0
        %2598 = vmatprep.subr.mxu0 0.0
        %2599 = vmatpush2.msra.mxu0 0.0
        %2600 = vmatprep.subr.mxu0 0.0
        %2601 = vmatpush2.msra.mxu0 0.0
        %2602 = vmatprep.subr.mxu0 0.0
        %2603 = vmatpush2.msra.mxu0 0.0
        %2604 = vmatprep.subr.mxu0 0.0
        %2605 = vmatpush2.msra.mxu0 0.0
        %2606 = vmatprep.subr.mxu0 0.0
        %2607 = vmatpush2.msra.mxu0 0.0
        %2608 = vmatprep.subr.mxu0 0.0
        %2609 = vmatpush2.msra.mxu0 0.0
        %2610 = vmatprep.subr.mxu0 0.0
        %2611 = vmatpush2.msra.mxu0 0.0
        %2612 = vmatprep.subr.mxu0 0.0
        %2613 = vmatpush2.msra.mxu0 0.0
        %2614 = vmatprep.mubr.f32.mxu0 0.0
        %2615 = vmatmul.mubr.f32.gmra.mxu0 %v872
        %v2616 = vpop.f32.mrf.mxu0
        %v2617 = vadd.f32 0.0, %v2616
        %v2618 = vpop.f32.mrf.mxu0
        %2619 = vmatprep.mubr.f32.mxu0 0.0
        %2620 = vmatmul.mubr.f32.gmra.mxu0 %v875
        %v2621 = vpop.f32.mrf.mxu0
        %v2622 = vadd.f32 0.0, %v2621
        %v2623 = vpop.f32.mrf.mxu0
        %2624 = vmatprep.mubr.f32.mxu0 0.0
        %2625 = vmatmul.mubr.f32.gmra.mxu0 %v878
        %v2626 = vpop.f32.mrf.mxu0
        %v2627 = vadd.f32 0.0, %v2626
        %v2628 = vpop.f32.mrf.mxu0
        %2629 = vmatprep.mubr.f32.mxu0 0.0
        %2630 = vmatmul.mubr.f32.gmra.mxu0 %v881
        %v2631 = vpop.f32.mrf.mxu0
        %v2632 = vadd.f32 0.0, %v2631
        %v2633 = vpop.f32.mrf.mxu0
        %2634 = vdwg.mxu0
        %v2636 = vsel %vm864, %v2538, 0
        %v2639 = vsel %vm864, %v2539, 0
        %v2642 = vsel %vm864, %v2540, 0
        %v2645 = vsel %vm864, %v2541, 0
        %2647 = vmatprep.subr.mxu0 0.0
        %2648 = vmatpush1.msra.mxu0 0.0
        %2649 = vmatprep.subr.mxu0 0.0
        %2650 = vmatpush1.msra.mxu0 0.0
        %2651 = vmatprep.subr.mxu0 0.0
        %2652 = vmatpush1.msra.mxu0 0.0
        %2653 = vmatprep.subr.mxu0 0.0
        %2654 = vmatpush1.msra.mxu0 0.0
        %2655 = vmatprep.subr.mxu0 0.0
        %2656 = vmatpush1.msra.mxu0 0.0
        %2657 = vmatprep.subr.mxu0 0.0
        %2658 = vmatpush1.msra.mxu0 0.0
        %2659 = vmatprep.subr.mxu0 0.0
        %2660 = vmatpush1.msra.mxu0 0.0
        %2661 = vmatprep.subr.mxu0 0.0
        %2662 = vmatpush1.msra.mxu0 0.0
        %2663 = vmatprep.subr.mxu0 0.0
        %2664 = vmatpush1.msra.mxu0 0.0
        %2665 = vmatprep.subr.mxu0 0.0
        %2666 = vmatpush1.msra.mxu0 0.0
        %2667 = vmatprep.subr.mxu0 0.0
        %2668 = vmatpush1.msra.mxu0 0.0
        %2669 = vmatprep.subr.mxu0 0.0
        %2670 = vmatpush1.msra.mxu0 0.0
        %2671 = vmatprep.subr.mxu0 0.0
        %2672 = vmatpush1.msra.mxu0 %v2545
        %2673 = vmatprep.subr.mxu0 0.0
        %2674 = vmatpush1.msra.mxu0 %v2544
        %2675 = vmatprep.subr.mxu0 0.0
        %2676 = vmatpush1.msra.mxu0 %v2543
        %2677 = vmatprep.subr.mxu0 0.0
        %2678 = vmatpush1.msra.mxu0 %v2542
        %2679 = vmatprep.subr.mxu0 0.0
        %2680 = vmatpush2.msra.mxu0 0.0
        %2681 = vmatprep.subr.mxu0 0.0
        %2682 = vmatpush2.msra.mxu0 0.0
        %2683 = vmatprep.subr.mxu0 0.0
        %2684 = vmatpush2.msra.mxu0 0.0
        %2685 = vmatprep.subr.mxu0 0.0
        %2686 = vmatpush2.msra.mxu0 0.0
        %2687 = vmatprep.subr.mxu0 0.0
        %2688 = vmatpush2.msra.mxu0 0.0
        %2689 = vmatprep.subr.mxu0 0.0
        %2690 = vmatpush2.msra.mxu0 0.0
        %2691 = vmatprep.subr.mxu0 0.0
        %2692 = vmatpush2.msra.mxu0 0.0
        %2693 = vmatprep.subr.mxu0 0.0
        %2694 = vmatpush2.msra.mxu0 0.0
        %2695 = vmatprep.subr.mxu0 0.0
        %2696 = vmatpush2.msra.mxu0 0.0
        %2697 = vmatprep.subr.mxu0 0.0
        %2698 = vmatpush2.msra.mxu0 0.0
        %2699 = vmatprep.subr.mxu0 0.0
        %2700 = vmatpush2.msra.mxu0 0.0
        %2701 = vmatprep.subr.mxu0 0.0
        %2702 = vmatpush2.msra.mxu0 0.0
        %2703 = vmatprep.subr.mxu0 0.0
        %2704 = vmatpush2.msra.mxu0 0.0
        %2705 = vmatprep.subr.mxu0 0.0
        %2706 = vmatpush2.msra.mxu0 0.0
        %2707 = vmatprep.subr.mxu0 0.0
        %2708 = vmatpush2.msra.mxu0 0.0
        %2709 = vmatprep.subr.mxu0 0.0
        %2710 = vmatpush2.msra.mxu0 0.0
        %2711 = vmatprep.mubr.f32.mxu0 0.0
        %2712 = vmatmul.mubr.f32.gmra.mxu0 %v2636
        %v2713 = vpop.f32.mrf.mxu0
        %v2714 = vadd.f32 %v2617, %v2713
        %v2715 = vpop.f32.mrf.mxu0
        %2716 = vmatprep.mubr.f32.mxu0 0.0
        %2717 = vmatmul.mubr.f32.gmra.mxu0 %v2639
        %v2718 = vpop.f32.mrf.mxu0
        %v2719 = vadd.f32 %v2622, %v2718
        %v2720 = vpop.f32.mrf.mxu0
        %2721 = vmatprep.mubr.f32.mxu0 0.0
        %2722 = vmatmul.mubr.f32.gmra.mxu0 %v2642
        %v2723 = vpop.f32.mrf.mxu0
        %v2724 = vadd.f32 %v2627, %v2723
        %v2725 = vpop.f32.mrf.mxu0
        %2726 = vmatprep.mubr.f32.mxu0 0.0
        %2727 = vmatmul.mubr.f32.gmra.mxu0 %v2645
        %v2728 = vpop.f32.mrf.mxu0
        %v2729 = vadd.f32 %v2632, %v2728
        %v2730 = vpop.f32.mrf.mxu0
        %2731 = vdwg.mxu0
        %v2732 = vld [vmem:[%s11] sm:$0x1]
        %v2734 = vlaneseq
        %v2735 = vshrl.u32 %v2734, 7
        %v2736 = vsub.s32 0, %v2735
        %v2737 = vrot.slane %v2732, %v2736
        %v2739 = vadd.f32 %v2714, %v2737
        %v2740 = vadd.f32 %v2719, %v2737
        %v2741 = vadd.f32 %v2724, %v2737
        %v2742 = vadd.f32 %v2729, %v2737
        %v2743 = vtanh.pop %v2739
        %v2744 = vtanh.pop %v2740
        %v2745 = vtanh.pop %v2741
        %v2746 = vtanh.pop %v2742
        %v2747 = vld [vmem:[#allocation18] sm:$0xff]
        %v2748 = vld [vmem:[#allocation18 + $0x8] sm:$0xff]
        %v2749 = vld [vmem:[#allocation18 + $0x10] sm:$0xff]
        %v2750 = vld [vmem:[#allocation18 + $0x18] sm:$0xff]
        %v2751 = vld [vmem:[#allocation19] sm:$0xff]
        %v2752 = vld [vmem:[#allocation19 + $0x8] sm:$0xff]
        %v2753 = vld [vmem:[#allocation19 + $0x10] sm:$0xff]
        %v2754 = vld [vmem:[#allocation19 + $0x18] sm:$0xff]
        %v2755 = vld [vmem:[%s739] sm:$0xff]
        %v2756 = vld [vmem:[%s739 + $0x8] sm:$0xff]
        %v2757 = vld [vmem:[%s739 + $0x10] sm:$0xff]
        %v2758 = vld [vmem:[%s739 + $0x18] sm:$0xff]
        %v2760 = vsel %vm864, %v2751, 0
        %v2763 = vsel %vm864, %v2752, 0
        %v2766 = vsel %vm864, %v2753, 0
        %v2769 = vsel %vm864, %v2754, 0
        %v2772 = vsel %vm864, %v2755, 0
        %v2775 = vsel %vm864, %v2756, 0
        %v2778 = vsel %vm864, %v2757, 0
        %v2781 = vsel %vm864, %v2758, 0
        %2783 = vmatprep.subr.mxu0 0.0
        %2784 = vmatpush1.xpose.msra.mxu0 0.0
        %2785 = vmatprep.subr.mxu0 0.0
        %2786 = vmatpush1.xpose.msra.mxu0 0.0
        %2787 = vmatprep.subr.mxu0 0.0
        %2788 = vmatpush1.xpose.msra.mxu0 0.0
        %2789 = vmatprep.subr.mxu0 0.0
        %2790 = vmatpush1.xpose.msra.mxu0 0.0
        %2791 = vmatprep.subr.mxu0 0.0
        %2792 = vmatpush1.xpose.msra.mxu0 0.0
        %2793 = vmatprep.subr.mxu0 0.0
        %2794 = vmatpush1.xpose.msra.mxu0 0.0
        %2795 = vmatprep.subr.mxu0 0.0
        %2796 = vmatpush1.xpose.msra.mxu0 0.0
        %2797 = vmatprep.subr.mxu0 0.0
        %2798 = vmatpush1.xpose.msra.mxu0 0.0
        %2799 = vmatprep.subr.mxu0 0.0
        %2800 = vmatpush1.xpose.msra.mxu0 0.0
        %2801 = vmatprep.subr.mxu0 0.0
        %2802 = vmatpush1.xpose.msra.mxu0 0.0
        %2803 = vmatprep.subr.mxu0 0.0
        %2804 = vmatpush1.xpose.msra.mxu0 0.0
        %2805 = vmatprep.subr.mxu0 0.0
        %2806 = vmatpush1.xpose.msra.mxu0 0.0
        %2807 = vmatprep.subr.mxu0 0.0
        %2808 = vmatpush1.xpose.msra.mxu0 %v2781
        %2809 = vmatprep.subr.mxu0 0.0
        %2810 = vmatpush1.xpose.msra.mxu0 %v2778
        %2811 = vmatprep.subr.mxu0 0.0
        %2812 = vmatpush1.xpose.msra.mxu0 %v2775
        %2813 = vmatprep.subr.mxu0 0.0
        %2814 = vmatpush1.xpose.msra.mxu0 %v2772
        %2815 = vmatprep.subr.mxu0 0.0
        %2816 = vmatpush2.xpose.msra.mxu0 0.0
        %2817 = vmatprep.subr.mxu0 0.0
        %2818 = vmatpush2.xpose.msra.mxu0 0.0
        %2819 = vmatprep.subr.mxu0 0.0
        %2820 = vmatpush2.xpose.msra.mxu0 0.0
        %2821 = vmatprep.subr.mxu0 0.0
        %2822 = vmatpush2.xpose.msra.mxu0 0.0
        %2823 = vmatprep.subr.mxu0 0.0
        %2824 = vmatpush2.xpose.msra.mxu0 0.0
        %2825 = vmatprep.subr.mxu0 0.0
        %2826 = vmatpush2.xpose.msra.mxu0 0.0
        %2827 = vmatprep.subr.mxu0 0.0
        %2828 = vmatpush2.xpose.msra.mxu0 0.0
        %2829 = vmatprep.subr.mxu0 0.0
        %2830 = vmatpush2.xpose.msra.mxu0 0.0
        %2831 = vmatprep.subr.mxu0 0.0
        %2832 = vmatpush2.xpose.msra.mxu0 0.0
        %2833 = vmatprep.subr.mxu0 0.0
        %2834 = vmatpush2.xpose.msra.mxu0 0.0
        %2835 = vmatprep.subr.mxu0 0.0
        %2836 = vmatpush2.xpose.msra.mxu0 0.0
        %2837 = vmatprep.subr.mxu0 0.0
        %2838 = vmatpush2.xpose.msra.mxu0 0.0
        %2839 = vmatprep.subr.mxu0 0.0
        %2840 = vmatpush2.xpose.msra.mxu0 0.0
        %2841 = vmatprep.subr.mxu0 0.0
        %2842 = vmatpush2.xpose.msra.mxu0 0.0
        %2843 = vmatprep.subr.mxu0 0.0
        %2844 = vmatpush2.xpose.msra.mxu0 0.0
        %2845 = vmatprep.subr.mxu0 0.0
        %2846 = vmatpush2.xpose.msra.mxu0 0.0
        %2847 = vmatprep.mubr.f32.mxu0 0.0
        %2848 = vmatmul.mubr.f32.gmra.mxu0 %v2760
        %v2849 = vpop.f32.mrf.mxu0
        %v2850 = vadd.f32 0.0, %v2849
        %v2851 = vpop.f32.mrf.mxu0
        %2852 = vmatprep.mubr.f32.mxu0 0.0
        %2853 = vmatmul.mubr.f32.gmra.mxu0 %v2763
        %v2854 = vpop.f32.mrf.mxu0
        %v2855 = vadd.f32 0.0, %v2854
        %v2856 = vpop.f32.mrf.mxu0
        %2857 = vmatprep.mubr.f32.mxu0 0.0
        %2858 = vmatmul.mubr.f32.gmra.mxu0 %v2766
        %v2859 = vpop.f32.mrf.mxu0
        %v2860 = vadd.f32 0.0, %v2859
        %v2861 = vpop.f32.mrf.mxu0
        %2862 = vmatprep.mubr.f32.mxu0 0.0
        %2863 = vmatmul.mubr.f32.gmra.mxu0 %v2769
        %v2864 = vpop.f32.mrf.mxu0
        %v2865 = vadd.f32 0.0, %v2864
        %v2866 = vpop.f32.mrf.mxu0
        %2867 = vdwg.mxu0
        %v2869 = vsel %vm864, %v2747, 0
        %v2872 = vsel %vm864, %v2748, 0
        %v2875 = vsel %vm864, %v2749, 0
        %v2878 = vsel %vm864, %v2750, 0
        %2880 = vmatprep.subr.mxu0 0.0
        %2881 = vmatpush1.xpose.msra.mxu0 0.0
        %2882 = vmatprep.subr.mxu0 0.0
        %2883 = vmatpush1.xpose.msra.mxu0 0.0
        %2884 = vmatprep.subr.mxu0 0.0
        %2885 = vmatpush1.xpose.msra.mxu0 0.0
        %2886 = vmatprep.subr.mxu0 0.0
        %2887 = vmatpush1.xpose.msra.mxu0 0.0
        %2888 = vmatprep.subr.mxu0 0.0
        %2889 = vmatpush1.xpose.msra.mxu0 0.0
        %2890 = vmatprep.subr.mxu0 0.0
        %2891 = vmatpush1.xpose.msra.mxu0 0.0
        %2892 = vmatprep.subr.mxu0 0.0
        %2893 = vmatpush1.xpose.msra.mxu0 0.0
        %2894 = vmatprep.subr.mxu0 0.0
        %2895 = vmatpush1.xpose.msra.mxu0 0.0
        %2896 = vmatprep.subr.mxu0 0.0
        %2897 = vmatpush1.xpose.msra.mxu0 0.0
        %2898 = vmatprep.subr.mxu0 0.0
        %2899 = vmatpush1.xpose.msra.mxu0 0.0
        %2900 = vmatprep.subr.mxu0 0.0
        %2901 = vmatpush1.xpose.msra.mxu0 0.0
        %2902 = vmatprep.subr.mxu0 0.0
        %2903 = vmatpush1.xpose.msra.mxu0 0.0
        %2904 = vmatprep.subr.mxu0 0.0
        %2905 = vmatpush1.xpose.msra.mxu0 %v1008
        %2906 = vmatprep.subr.mxu0 0.0
        %2907 = vmatpush1.xpose.msra.mxu0 %v1005
        %2908 = vmatprep.subr.mxu0 0.0
        %2909 = vmatpush1.xpose.msra.mxu0 %v1002
        %2910 = vmatprep.subr.mxu0 0.0
        %2911 = vmatpush1.xpose.msra.mxu0 %v999
        %2912 = vmatprep.subr.mxu0 0.0
        %2913 = vmatpush2.xpose.msra.mxu0 0.0
        %2914 = vmatprep.subr.mxu0 0.0
        %2915 = vmatpush2.xpose.msra.mxu0 0.0
        %2916 = vmatprep.subr.mxu0 0.0
        %2917 = vmatpush2.xpose.msra.mxu0 0.0
        %2918 = vmatprep.subr.mxu0 0.0
        %2919 = vmatpush2.xpose.msra.mxu0 0.0
        %2920 = vmatprep.subr.mxu0 0.0
        %2921 = vmatpush2.xpose.msra.mxu0 0.0
        %2922 = vmatprep.subr.mxu0 0.0
        %2923 = vmatpush2.xpose.msra.mxu0 0.0
        %2924 = vmatprep.subr.mxu0 0.0
        %2925 = vmatpush2.xpose.msra.mxu0 0.0
        %2926 = vmatprep.subr.mxu0 0.0
        %2927 = vmatpush2.xpose.msra.mxu0 0.0
        %2928 = vmatprep.subr.mxu0 0.0
        %2929 = vmatpush2.xpose.msra.mxu0 0.0
        %2930 = vmatprep.subr.mxu0 0.0
        %2931 = vmatpush2.xpose.msra.mxu0 0.0
        %2932 = vmatprep.subr.mxu0 0.0
        %2933 = vmatpush2.xpose.msra.mxu0 0.0
        %2934 = vmatprep.subr.mxu0 0.0
        %2935 = vmatpush2.xpose.msra.mxu0 0.0
        %2936 = vmatprep.subr.mxu0 0.0
        %2937 = vmatpush2.xpose.msra.mxu0 0.0
        %2938 = vmatprep.subr.mxu0 0.0
        %2939 = vmatpush2.xpose.msra.mxu0 0.0
        %2940 = vmatprep.subr.mxu0 0.0
        %2941 = vmatpush2.xpose.msra.mxu0 0.0
        %2942 = vmatprep.subr.mxu0 0.0
        %2943 = vmatpush2.xpose.msra.mxu0 0.0
        %2944 = vmatprep.mubr.f32.mxu0 0.0
        %2945 = vmatmul.mubr.f32.gmra.mxu0 %v2869
        %v2946 = vpop.f32.mrf.mxu0
        %v2947 = vadd.f32 %v2850, %v2946
        %v2948 = vpop.f32.mrf.mxu0
        %2949 = vmatprep.mubr.f32.mxu0 0.0
        %2950 = vmatmul.mubr.f32.gmra.mxu0 %v2872
        %v2951 = vpop.f32.mrf.mxu0
        %v2952 = vadd.f32 %v2855, %v2951
        %v2953 = vpop.f32.mrf.mxu0
        %2954 = vmatprep.mubr.f32.mxu0 0.0
        %2955 = vmatmul.mubr.f32.gmra.mxu0 %v2875
        %v2956 = vpop.f32.mrf.mxu0
        %v2957 = vadd.f32 %v2860, %v2956
        %v2958 = vpop.f32.mrf.mxu0
        %2959 = vmatprep.mubr.f32.mxu0 0.0
        %2960 = vmatmul.mubr.f32.gmra.mxu0 %v2878
        %v2961 = vpop.f32.mrf.mxu0
        %v2962 = vadd.f32 %v2865, %v2961
        %v2963 = vpop.f32.mrf.mxu0
        %2964 = vdwg.mxu0
        %v2965 = vld [vmem:[%s14] sm:$0xff]
        %v2966 = vld [vmem:[%s14 + $0x8] sm:$0xff]
        %v2967 = vld [vmem:[%s14 + $0x10] sm:$0xff]
        %v2968 = vld [vmem:[%s14 + $0x18] sm:$0xff]
        %2970 = vset.pattern.permute.xlu0 0
        %2971 = vperm.xlu0 %2970, %v2965
        %v2972 = vpop.permute.xlu0 %2971
        %2975 = vset.pattern.permute.xlu0 0
        %2976 = vperm.xlu0 %2975, %v2966
        %v2977 = vpop.permute.xlu0 %2976
        %2980 = vset.pattern.permute.xlu0 0
        %2981 = vperm.xlu0 %2980, %v2967
        %v2982 = vpop.permute.xlu0 %2981
        %2985 = vset.pattern.permute.xlu0 0
        %2986 = vperm.xlu0 %2985, %v2968
        %v2987 = vpop.permute.xlu0 %2986
        %v2989 = vadd.f32 %v2947, %v2972
        %v2990 = vadd.f32 %v2952, %v2977
        %v2991 = vadd.f32 %v2957, %v2982
        %v2992 = vadd.f32 %v2962, %v2987
        %v2993 = vmax.f32 %v2989, 0.0
        %v2994 = vmax.f32 %v2990, 0.0
        %v2995 = vmax.f32 %v2991, 0.0
        %v2996 = vmax.f32 %v2992, 0.0
        %v2997 = vld [vmem:[%s15] sm:$0x1]
        %v2999 = vlaneseq
        %v3000 = vshrl.u32 %v2999, 7
        %v3001 = vsub.s32 0, %v3000
        %v3002 = vrot.slane %v2997, %v3001
        %v3004 = vmul.f32 %v2743, %v3002
        %v3005 = vmul.f32 %v2744, %v3002
        %v3006 = vmul.f32 %v2745, %v3002
        %v3007 = vmul.f32 %v2746, %v3002
        %v3008 = vsel %vm864, %v3004, 0.0
        %3009 = vadd.xlane.f32.xlu0 %v3008
        %v3010 = vpop.xlane.xlu0 %3009
        %v3011 = vsel %vm864, %v3005, 0.0
        %3012 = vadd.xlane.f32.xlu0 %v3011
        %v3013 = vpop.xlane.xlu0 %3012
        %v3014 = vsel %vm864, %v3006, 0.0
        %3015 = vadd.xlane.f32.xlu0 %v3014
        %v3016 = vpop.xlane.xlu0 %3015
        %v3017 = vsel %vm864, %v3007, 0.0
        %3018 = vadd.xlane.f32.xlu0 %v3017
        %v3019 = vpop.xlane.xlu0 %3018
        %v3020 = vld [vmem:[%s16] sm:$0x1]
        %v3022 = vlaneseq
        %v3023 = vshrl.u32 %v3022, 7
        %v3024 = vsub.s32 0, %v3023
        %v3025 = vrot.slane %v3020, %v3024
        %v3027 = vmul.f32 %v2993, %v3025
        %v3028 = vmul.f32 %v2994, %v3025
        %v3029 = vmul.f32 %v2995, %v3025
        %v3030 = vmul.f32 %v2996, %v3025
        %v3031 = vsel %vm864, %v3027, 0.0
        %3032 = vadd.xlane.f32.xlu0 %v3031
        %v3033 = vpop.xlane.xlu0 %3032
        %v3034 = vsel %vm864, %v3028, 0.0
        %3035 = vadd.xlane.f32.xlu0 %v3034
        %v3036 = vpop.xlane.xlu0 %3035
        %v3037 = vsel %vm864, %v3029, 0.0
        %3038 = vadd.xlane.f32.xlu0 %v3037
        %v3039 = vpop.xlane.xlu0 %3038
        %v3040 = vsel %vm864, %v3030, 0.0
        %3041 = vadd.xlane.f32.xlu0 %v3040
        %v3042 = vpop.xlane.xlu0 %3041
        %v3043 = vadd.f32 %v3010, %v3033
        %v3044 = vadd.f32 %v3013, %v3036
        %v3045 = vadd.f32 %v3016, %v3039
        %v3046 = vadd.f32 %v3019, %v3042
        %v3047 = vld [vmem:[#allocation3] sm:$0x1]
        %v3049 = vlaneseq
        %v3050 = vshrl.u32 %v3049, 7
        %v3051 = vsub.s32 0, %v3050
        %v3052 = vrot.slane %v3047, %v3051
        %v3054 = vadd.f32 %v3043, %v3052
        %v3055 = vadd.f32 %v3044, %v3052
        %v3056 = vadd.f32 %v3045, %v3052
        %v3057 = vadd.f32 %v3046, %v3052
        %v3058 = vxor.u32 %v3054, 2147483648
        %v3059 = vxor.u32 %v3055, 2147483648
        %v3060 = vxor.u32 %v3056, 2147483648
        %v3061 = vxor.u32 %v3057, 2147483648
        %v3062 = vmul.f32 %v3058, 1.442695
        %v3063 = vpow.pop %v3062
        %v3064 = vmul.f32 %v3059, 1.442695
        %v3065 = vpow.pop %v3064
        %v3066 = vmul.f32 %v3060, 1.442695
        %v3067 = vpow.pop %v3066
        %v3068 = vmul.f32 %v3061, 1.442695
        %v3069 = vpow.pop %v3068
        %v3070 = vadd.f32 %v3063, 1.0
        %v3071 = vadd.f32 %v3065, 1.0
        %v3072 = vadd.f32 %v3067, 1.0
        %v3073 = vadd.f32 %v3069, 1.0
        %v3074 = vrcp.pop %v3070
        %v3075 = vmul.f32 1.0, %v3074
        %v3076 = vrcp.pop %v3071
        %v3077 = vmul.f32 1.0, %v3076
        %v3078 = vrcp.pop %v3072
        %v3079 = vmul.f32 1.0, %v3078
        %v3080 = vrcp.pop %v3073
        %v3081 = vmul.f32 1.0, %v3080
        %vm3082 = vcmask 7168
        %3083 = vst.msk [vmem:[%s848] sm:$0xff] %vm3082, %v3075
        %3084 = vst.msk [vmem:[%s848 + $0x8] sm:$0xff] %vm3082, %v3077
        %3085 = vst.msk [vmem:[%s848 + $0x10] sm:$0xff] %vm3082, %v3079
        %3086 = vst.msk [vmem:[%s848 + $0x18] sm:$0xff] %vm3082, %v3081
        %p3087 = scmp.lt.s32.totalorder %s47, 1
        %s3088 = scalar_select %p3087, %s47, 1
        %s3089 = smul.addr %s3088, 4
        %s3090 = smul.addr %s3089, 8
        %s3091 = scalar_lea.vmem %s18, %s3090
        %p3092 = scmp.lt.s32.totalorder %s47, 1
        %s3093 = scalar_select %p3092, %s47, 1
        %s3094 = smul.addr %s3093, 66
        %s3095 = smul.addr %s3094, 8
        %s3096 = scalar_lea.vmem %s19, %s3095
        %s3097 = sand.u32 %s500, 1
        %s3098 = scalar_lea.sflag [#allocation6], %s3097
        %s3099 = sand.u32 %s500, 1
        %s3100 = smul.addr %s3099, 16
        %s3101 = scalar_lea.vmem [#allocation21], %s3100
        // Predicated region
        $region133: #{tpu_custom_call.1} parent=91 // pred_check
          %p3102 = pneg %p458
        $region134: #{tpu_custom_call.1} parent=91 // pred_check_branch
          %3104 = sbr.rel (%p3102) target = $region136
        $region135: #{tpu_custom_call.1} parent=91 // pred_region
          _
        $region136: #{tpu_custom_call.1} parent=91 // pred_fallthru
          _
        // Predicated region
        $region137: #{tpu_custom_call.1} parent=91 // pred_check
          %p3105 = pneg %p484
        $region138: #{tpu_custom_call.1} parent=91 // pred_check_branch
          %3107 = sbr.rel (%p3105) target = $region140
        $region139: #{tpu_custom_call.1} parent=91 // pred_region
          _
        $region140: #{tpu_custom_call.1} parent=91 // pred_fallthru
          _
        // Predicated region
        $region141: #{tpu_custom_call.1} parent=91 // pred_check
          %p3108 = pneg %p510
        $region142: #{tpu_custom_call.1} parent=91 // pred_check_branch
          %3110 = sbr.rel (%p3108) target = $region144
        $region143: #{tpu_custom_call.1} parent=91 // pred_region
          %s3112 = ssub.s32 256, 256
          %3113 = vsyncadd %s3098, %s3112
          %s3114 = smul.addr %s47, 2
          %s3115 = smul.addr %s3114, 128
          %s3116 = scalar_lea.hbm %s20, %s3115
          %s3117 = sshll.u32 %s3101, 4
          %s3118 = int_to_ptr.vmem [resolvable:$true] %s3117
          %3123 = dma.vmem_to_hbm [thread:$0]  %s3118, 256, %s3116, %s3098, 128, 128, 8
        $region144: #{tpu_custom_call.1} parent=91 // pred_fallthru
          _
      $region92: #{tpu_custom_call.1} parent=5 // pred_fallthru
        _
      %p3124 = scmp.le.s32.totalorder 2, %s42
      // Predicated region
      $region145: #{tpu_custom_call.1} parent=5 // pred_check
        %p3125 = pneg %p3124
      $region146: #{tpu_custom_call.1} parent=5 // pred_check_branch
        %3127 = sbr.rel (%p3125) target = $region148
      $region147: #{tpu_custom_call.1} parent=5 // pred_region
        %s3128 = ssub.s32 %s42, 2
        // Predicated region
        $region149: #{tpu_custom_call.1} parent=147 // pred_check
          %p3129 = pneg %p464
        $region150: #{tpu_custom_call.1} parent=147 // pred_check_branch
          %3131 = sbr.rel (%p3129) target = $region152
        $region151: #{tpu_custom_call.1} parent=147 // pred_region
          %p3132 = scmp.lt.s32.totalorder %s48, 1
          %s3133 = scalar_select %p3132, %s48, 1
          %s3134 = smul.addr %s3133, 4
          %s3135 = smul.addr %s3134, 8
          %s3136 = scalar_lea.vmem %s18, %s3135
        $region152: #{tpu_custom_call.1} parent=147 // pred_fallthru
          _
        // Predicated region
        $region153: #{tpu_custom_call.1} parent=147 // pred_check
          %p3137 = pneg %p490
        $region154: #{tpu_custom_call.1} parent=147 // pred_check_branch
          %3139 = sbr.rel (%p3137) target = $region156
        $region155: #{tpu_custom_call.1} parent=147 // pred_region
          %p3140 = scmp.lt.s32.totalorder %s48, 1
          %s3141 = scalar_select %p3140, %s48, 1
          %s3142 = smul.addr %s3141, 66
          %s3143 = smul.addr %s3142, 8
          %s3144 = scalar_lea.vmem %s19, %s3143
        $region156: #{tpu_custom_call.1} parent=147 // pred_fallthru
          _
        // Predicated region
        $region157: #{tpu_custom_call.1} parent=147 // pred_check
          %p3145 = pneg %p516
        $region158: #{tpu_custom_call.1} parent=147 // pred_check_branch
          %3147 = sbr.rel (%p3145) target = $region160
        $region159: #{tpu_custom_call.1} parent=147 // pred_region
          %s3148 = sand.u32 %s501, 1
          %s3149 = scalar_lea.sflag [#allocation6], %s3148
          %s3150 = sand.u32 %s501, 1
          %s3151 = smul.addr %s3150, 16
          %s3152 = scalar_lea.vmem [#allocation21], %s3151
          %3153 = dma.done %s3149, 256
        $region160: #{tpu_custom_call.1} parent=147 // pred_fallthru
          _
      $region148: #{tpu_custom_call.1} parent=5 // pred_fallthru
        _
    $region6: #{tpu_custom_call.1} parent=1 // loop_footer
      %s46 = sadd.s32 1, %s42
    $region7: #{tpu_custom_call.1} parent=1 // loop_footer_branch
      %41 = sbr.rel target = $region3
    $region8: #{tpu_custom_call.1} parent=1 // loop_exit
      _
    %3154 = vsyncpa [#allocation5], 1
    %s3155 = scalar_lea.sflag [#allocation5], 1
    %3156 = vsyncpa %s3155, 1
    %3157 = vsyncpa [#allocation8], 1
    %s3158 = scalar_lea.sflag [#allocation8], 1
    %3159 = vsyncpa %s3158, 1
    %3160 = vsyncpa [#allocation11], 1
    %3161 = vsyncpa [#allocation14], 1
    %3162 = vsyncpa [#allocation17], 1
    %3163 = vsyncpa [#allocation20], 1
    %3164 = vsyncpa [#allocation6], 1
    %s3165 = scalar_lea.sflag [#allocation6], 1
    %3166 = vsyncpa %s3165, 1

</llo_original>
